<compile_context>
chip_gen: v7x
topology: tpu7x:2x2x1
jax: 0.10.0
libtpu: 0.0.40
codegen_flags: <defaults>
</compile_context>

<pallas_src>
import functools
import math

import jax
import jax.numpy as jnp
from jax.experimental import pallas as pl
from jax.experimental.pallas import tpu as pltpu


def _local_param_net_kernel(x_ref, feats_ref,
                            w1_ref, b1_ref, w2_ref, b2_ref, w3_ref, b3_ref,
                            packed_ref):
    """One grid step = one wide lane-tile of the flattened (batch*spatial) axis."""
    x = x_ref[...]            # (Nc, T)
    feats = feats_ref[...]    # (Nc, Nf, T)
    w1 = w1_ref[...]          # (H, Nc)
    nc = x.shape[0]
    nf = feats.shape[1]
    t = x.shape[1]

    # --- layer 1: Conv1d(Nc -> H, k=1).  K = Nc = 2, so keep it off the MXU:
    #     Nc broadcast multiply-adds on the VPU, bias fused into the first MAC.
    h = w1[:, 0:1] * x[0:1, :] + b1_ref[...]
    for c in range(1, nc):
        h = h + w1[:, c:c + 1] * x[c:c + 1, :]
    h = jnp.sin(h)

    # --- layer 2: Conv1d(H -> H, k=1) -> MXU matmul, f32 accumulation.
    h = jnp.dot(w2_ref[...], h, preferred_element_type=jnp.float32) + b2_ref[...]
    h = jnp.sin(h)

    # --- layer 3: Conv1d(H -> Nc*(Nf+1), k=1) -> MXU matmul.
    lf = jnp.dot(w3_ref[...], h, preferred_element_type=jnp.float32) + b3_ref[...]

    # Split head rows into per-class local coefficients and growth.
    # (Nc*(Nf+1), T) -> (Nc, Nf+1, T): Nf+1 = 8 matches the f32 sublane tile,
    # so this split is tile-aligned (no data movement).
    lf3 = lf.reshape(nc, nf + 1, t)
    growth = lf3[:, nf, :]                             # (Nc, T)
    ft = jnp.sum(lf3[:, :nf, :] * feats, axis=1)       # VPU mul + XLU sublane reduce
    out = ft * growth

    # Single dense (3*Nc, T) writeback: [output ; feature_terms ; growth].
    packed_ref[...] = jnp.concatenate([out, ft, growth], axis=0)


def init_params(key, num_classes=2, num_coefs=7, num_hidden=64):
    """Deterministic parameter init (shapes mirror the PyTorch module)."""
    ks = jax.random.split(key, 6)
    f32 = jnp.float32
    nc, nf, h = num_classes, num_coefs, num_hidden
    n_head = nc * (nf + 1)
    w1 = jax.random.normal(ks[0], (h, nc), f32) / jnp.sqrt(nc)
    b1 = 0.01 * jax.random.normal(ks[1], (h,), f32)
    w2 = jax.random.normal(ks[2], (h, h), f32) / jnp.sqrt(h)
    b2 = 0.01 * jax.random.normal(ks[3], (h,), f32)
    w3 = jax.random.normal(ks[4], (n_head, h), f32) / jnp.sqrt(h)
    b3 = 0.01 * jax.random.normal(ks[5], (n_head,), f32)
    return dict(w1=w1, b1=b1, w2=w2, b2=b2, w3=w3, b3=b3)


def _round_up(x, m):
    return ((x + m - 1) // m) * m


def _const_spec(shape):
    nd = len(shape)
    return pl.BlockSpec(shape, lambda n, _nd=nd: (0,) * _nd)


@functools.partial(jax.jit, static_argnames=("batched", "lane_tile"))
def local_parameter_network_forward(params, inputs, features, batched=False,
                                    lane_tile=512):
    """Pallas implementation of LocalCoefficientsParameterNetwork.forward.

    inputs   : [B, Nc, *spatial]      (or [Nc, *spatial] if batched=False)
    features : [B, Nc, Nf, *spatial]  (or [Nc, Nf, *spatial])
    returns  : (output, (feature_terms, growth)) with the same layout as inputs.
    """
    if not batched:
        inputs = inputs[None]
        features = features[None]

    B, Nc = inputs.shape[:2]
    spatial = inputs.shape[2:]
    Nf = features.shape[2]
    H = params["w1"].shape[0]
    n_head = params["w3"].shape[0]          # Nc * (Nf + 1)

    L = int(math.prod(spatial))
    N = B * L

    # Fold batch + spatial onto the lane axis: channels on sublanes, positions
    # on lanes.
    x2d = jnp.transpose(inputs.reshape(B, Nc, L), (1, 0, 2)).reshape(Nc, N)
    f3d = jnp.transpose(features.reshape(B, Nc, Nf, L), (1, 2, 0, 3)).reshape(Nc, Nf, N)

    # Wide, 128-aligned lane tiles; pad the tail tile (padding is sliced off).
    T = min(lane_tile, _round_up(N, 128))
    N_pad = _round_up(N, T)
    if N_pad != N:
        x2d = jnp.pad(x2d, ((0, 0), (0, N_pad - N)))
        f3d = jnp.pad(f3d, ((0, 0), (0, 0), (0, N_pad - N)))

    # Biases as 2-D columns so they broadcast against (rows, T) tiles in-kernel.
    b1 = params["b1"].reshape(H, 1)
    b2 = params["b2"].reshape(H, 1)
    b3 = params["b3"].reshape(n_head, 1)

    grid = (N_pad // T,)

    packed = pl.pallas_call(
        _local_param_net_kernel,
        out_shape=jax.ShapeDtypeStruct((3 * Nc, N_pad), jnp.float32),
        grid=grid,
        in_specs=[
            pl.BlockSpec((Nc, T), lambda n: (0, n)),          # inputs (folded)
            pl.BlockSpec((Nc, Nf, T), lambda n: (0, 0, n)),   # features (folded)
            _const_spec(params["w1"].shape), _const_spec(b1.shape),
            _const_spec(params["w2"].shape), _const_spec(b2.shape),
            _const_spec(params["w3"].shape), _const_spec(b3.shape),
        ],
        out_specs=pl.BlockSpec((3 * Nc, T), lambda n: (0, n)),
        compiler_params=pltpu.CompilerParams(
            dimension_semantics=("parallel",)),
    )(x2d, f3d, params["w1"], b1, params["w2"], b2, params["w3"], b3)

    packed = packed[:, :N]

    def unflatten(a2d):
        return jnp.transpose(a2d.reshape(Nc, B, L), (1, 0, 2)).reshape(
            (B, Nc) + spatial)

    output = unflatten(packed[0:Nc])
    feature_terms = unflatten(packed[Nc:2 * Nc])
    growth = unflatten(packed[2 * Nc:3 * Nc])

    if batched:
        return output, (feature_terms, growth)
    return output[0], (feature_terms[0], growth[0])


def _reference_forward(params, inputs, features):
    """Plain-JAX reference matching the PyTorch module semantics (batched)."""
    B, Nc = inputs.shape[:2]
    spatial = inputs.shape[2:]
    Nf = features.shape[2]
    L = int(math.prod(spatial))
    x = inputs.reshape(B, Nc, L)
    h = jnp.sin(jnp.einsum("oc,bcl->bol", params["w1"], x)
                + params["b1"][None, :, None])
    h = jnp.sin(jnp.einsum("oc,bcl->bol", params["w2"], h)
                + params["b2"][None, :, None])
    lf = (jnp.einsum("oc,bcl->bol", params["w3"], h)
          + params["b3"][None, :, None])
    lf = lf.reshape(B, Nc, Nf + 1, L)
    coefs = lf[:, :, :Nf]
    growth = lf[:, :, Nf].reshape((B, Nc) + spatial)
    ft = (coefs * features.reshape(B, Nc, Nf, L)).sum(axis=2)
    ft = ft.reshape((B, Nc) + spatial)
    out = ft * growth
    return out, ft, growth


if __name__ == "__main__":
    B, Nc, Nf, H, L = 2, 2, 7, 64, 512

    key = jax.random.PRNGKey(0)
    k_params, k_in, k_feat, k_in2, k_feat2 = jax.random.split(key, 5)
    params = init_params(k_params, num_classes=Nc, num_coefs=Nf, num_hidden=H)

    inputs = jax.random.normal(k_in, (B, Nc, L), jnp.float32)
    features = jax.random.normal(k_feat, (B, Nc, Nf, L), jnp.float32)

    output, (feature_terms, growth) = local_parameter_network_forward(
        params, inputs, features, batched=True, lane_tile=256)
    jax.block_until_ready((output, feature_terms, growth))

    ref_out, ref_ft, ref_g = _reference_forward(params, inputs, features)
    assert output.shape == (B, Nc, L)
    assert jnp.allclose(output, ref_out, atol=2e-4, rtol=2e-4)
    assert jnp.allclose(feature_terms, ref_ft, atol=2e-4, rtol=2e-4)
    assert jnp.allclose(growth, ref_g, atol=2e-4, rtol=2e-4)

    # Unbatched path (the module's default) with a non-128-aligned spatial
    # size to exercise the lane-padding path.
    L2 = 100
    inputs_u = jax.random.normal(k_in2, (Nc, L2), jnp.float32)
    features_u = jax.random.normal(k_feat2, (Nc, Nf, L2), jnp.float32)
    out_u, (ft_u, g_u) = local_parameter_network_forward(
        params, inputs_u, features_u, batched=False)
    jax.block_until_ready(out_u)
    ref_out_u, ref_ft_u, ref_g_u = _reference_forward(
        params, inputs_u[None], features_u[None])
    assert out_u.shape == (Nc, L2)
    assert jnp.allclose(out_u, ref_out_u[0], atol=2e-4, rtol=2e-4)
    assert jnp.allclose(ft_u, ref_ft_u[0], atol=2e-4, rtol=2e-4)
    assert jnp.allclose(g_u, ref_g_u[0], atol=2e-4, rtol=2e-4)

    print("KERNEL_OK")
</pallas_src>

<mosaic_0001>
module attributes {stable_mosaic.version = 11 : i64} {
  func.func @_local_param_net_kernel(%arg0: i32, %arg1: memref<2x256xf32, #tpu.memory_space<vmem>>, %arg2: memref<2x7x256xf32, #tpu.memory_space<vmem>>, %arg3: memref<64x2xf32, #tpu.memory_space<vmem>>, %arg4: memref<64x1xf32, #tpu.memory_space<vmem>>, %arg5: memref<64x64xf32, #tpu.memory_space<vmem>>, %arg6: memref<64x1xf32, #tpu.memory_space<vmem>>, %arg7: memref<16x64xf32, #tpu.memory_space<vmem>>, %arg8: memref<16x1xf32, #tpu.memory_space<vmem>>, %arg9: memref<6x256xf32, #tpu.memory_space<vmem>>) attributes {dimension_semantics = [#tpu.dimension_semantics<parallel>], iteration_bounds = array<i64: 4>, scalar_prefetch = 0 : i64, scratch_operands = 0 : i64, tpu.core_type = #tpu.core_type<tc>, window_params = [{transform_indices = @transform_0, window_bounds = array<i64: 2, 256>}, {transform_indices = @transform_1, window_bounds = array<i64: 2, 7, 256>}, {pipeline_mode = #tpu.pipeline_mode<synchronous>, transform_indices = @transform_2, window_bounds = array<i64: 64, 2>}, {pipeline_mode = #tpu.pipeline_mode<synchronous>, transform_indices = @transform_3, window_bounds = array<i64: 64, 1>}, {pipeline_mode = #tpu.pipeline_mode<synchronous>, transform_indices = @transform_4, window_bounds = array<i64: 64, 64>}, {pipeline_mode = #tpu.pipeline_mode<synchronous>, transform_indices = @transform_5, window_bounds = array<i64: 64, 1>}, {pipeline_mode = #tpu.pipeline_mode<synchronous>, transform_indices = @transform_6, window_bounds = array<i64: 16, 64>}, {pipeline_mode = #tpu.pipeline_mode<synchronous>, transform_indices = @transform_7, window_bounds = array<i64: 16, 1>}, {transform_indices = @transform_8, window_bounds = array<i64: 6, 256>}]} {
    %c0 = arith.constant 0 : index
    %c0_0 = arith.constant 0 : index
    %0 = vector.load %arg1[%c0, %c0_0] : memref<2x256xf32, #tpu.memory_space<vmem>>, vector<2x256xf32>
    %c0_1 = arith.constant 0 : index
    %c0_2 = arith.constant 0 : index
    %c0_3 = arith.constant 0 : index
    %1 = vector.load %arg2[%c0_1, %c0_2, %c0_3] : memref<2x7x256xf32, #tpu.memory_space<vmem>>, vector<2x7x256xf32>
    %c0_4 = arith.constant 0 : index
    %c0_5 = arith.constant 0 : index
    %2 = vector.load %arg3[%c0_4, %c0_5] : memref<64x2xf32, #tpu.memory_space<vmem>>, vector<64x2xf32>
    %3 = vector.extract_strided_slice %2 {offsets = [0, 0], sizes = [64, 1], strides = [1, 1]} : vector<64x2xf32> to vector<64x1xf32>
    %4 = vector.extract_strided_slice %0 {offsets = [0, 0], sizes = [1, 256], strides = [1, 1]} : vector<2x256xf32> to vector<1x256xf32>
    %5 = vector.broadcast %3 : vector<64x1xf32> to vector<64x256xf32>
    %6 = vector.broadcast %4 : vector<1x256xf32> to vector<64x256xf32>
    %7 = arith.mulf %5, %6 : vector<64x256xf32>
    %c0_6 = arith.constant 0 : index
    %c0_7 = arith.constant 0 : index
    %8 = vector.load %arg4[%c0_6, %c0_7] : memref<64x1xf32, #tpu.memory_space<vmem>>, vector<64x1xf32>
    %9 = vector.broadcast %8 : vector<64x1xf32> to vector<64x256xf32>
    %10 = arith.addf %7, %9 : vector<64x256xf32>
    %11 = vector.extract_strided_slice %2 {offsets = [0, 1], sizes = [64, 1], strides = [1, 1]} : vector<64x2xf32> to vector<64x1xf32>
    %12 = vector.extract_strided_slice %0 {offsets = [1, 0], sizes = [1, 256], strides = [1, 1]} : vector<2x256xf32> to vector<1x256xf32>
    %13 = vector.broadcast %11 : vector<64x1xf32> to vector<64x256xf32>
    %14 = vector.broadcast %12 : vector<1x256xf32> to vector<64x256xf32>
    %15 = arith.mulf %13, %14 : vector<64x256xf32>
    %16 = arith.addf %10, %15 : vector<64x256xf32>
    %17 = math.sin %16 : vector<64x256xf32>
    %c0_8 = arith.constant 0 : index
    %c0_9 = arith.constant 0 : index
    %18 = vector.load %arg5[%c0_8, %c0_9] : memref<64x64xf32, #tpu.memory_space<vmem>>, vector<64x64xf32>
    %cst = arith.constant dense<0.000000e+00> : vector<64x256xf32>
    %19 = tpu.matmul %18, %17, %cst {dimension_numbers = #tpu.dot_dimension_numbers<[1], [0], [0], [1], [0, 0, 1, 1], [], []>} : vector<64x64xf32>, vector<64x256xf32>, vector<64x256xf32> -> vector<64x256xf32>
    %c0_10 = arith.constant 0 : index
    %c0_11 = arith.constant 0 : index
    %20 = vector.load %arg6[%c0_10, %c0_11] : memref<64x1xf32, #tpu.memory_space<vmem>>, vector<64x1xf32>
    %21 = vector.broadcast %20 : vector<64x1xf32> to vector<64x256xf32>
    %22 = arith.addf %19, %21 : vector<64x256xf32>
    %23 = math.sin %22 : vector<64x256xf32>
    %c0_12 = arith.constant 0 : index
    %c0_13 = arith.constant 0 : index
    %24 = vector.load %arg7[%c0_12, %c0_13] : memref<16x64xf32, #tpu.memory_space<vmem>>, vector<16x64xf32>
    %cst_14 = arith.constant dense<0.000000e+00> : vector<16x256xf32>
    %25 = tpu.matmul %24, %23, %cst_14 {dimension_numbers = #tpu.dot_dimension_numbers<[1], [0], [0], [1], [0, 0, 1, 1], [], []>} : vector<16x64xf32>, vector<64x256xf32>, vector<16x256xf32> -> vector<16x256xf32>
    %c0_15 = arith.constant 0 : index
    %c0_16 = arith.constant 0 : index
    %26 = vector.load %arg8[%c0_15, %c0_16] : memref<16x1xf32, #tpu.memory_space<vmem>>, vector<16x1xf32>
    %27 = vector.broadcast %26 : vector<16x1xf32> to vector<16x256xf32>
    %28 = arith.addf %25, %27 : vector<16x256xf32>
    %29 = vector.shape_cast %28 : vector<16x256xf32> to vector<2x8x256xf32>
    %30 = vector.extract_strided_slice %29 {offsets = [0, 7, 0], sizes = [2, 1, 256], strides = [1, 1, 1]} : vector<2x8x256xf32> to vector<2x1x256xf32>
    %31 = vector.shape_cast %30 : vector<2x1x256xf32> to vector<2x256xf32>
    %32 = vector.extract_strided_slice %29 {offsets = [0, 0, 0], sizes = [2, 7, 256], strides = [1, 1, 1]} : vector<2x8x256xf32> to vector<2x7x256xf32>
    %33 = arith.mulf %32, %1 : vector<2x7x256xf32>
    %cst_17 = arith.constant dense<0.000000e+00> : vector<2x256xf32>
    %34 = vector.multi_reduction <add>, %33, %cst_17 [1] : vector<2x7x256xf32> to vector<2x256xf32>
    %35 = arith.mulf %34, %31 : vector<2x256xf32>
    %36 = tpu.concatenate %35, %34, %31 in 0 : vector<2x256xf32>, vector<2x256xf32>, vector<2x256xf32> -> vector<6x256xf32>
    %c0_18 = arith.constant 0 : index
    %c0_19 = arith.constant 0 : index
    %37 = vector.load %arg9[%c0_18, %c0_19] : memref<6x256xf32, #tpu.memory_space<vmem>>, vector<6x256xf32>
    tpu.vector_store %arg9[%c0_18, %c0_19], %36 {strides = array<i32>} : memref<6x256xf32, #tpu.memory_space<vmem>>, vector<6x256xf32>,
    return
  }
  func.func @transform_0(%arg0: i32) -> (i32, i32) {
    %c0_i32 = arith.constant 0 : i32
    %c0_i32_0 = arith.constant 0 : i32
    return %c0_i32, %arg0 : i32, i32
  }
  func.func @transform_1(%arg0: i32) -> (i32, i32, i32) {
    %c0_i32 = arith.constant 0 : i32
    %c0_i32_0 = arith.constant 0 : i32
    %c0_i32_1 = arith.constant 0 : i32
    return %c0_i32, %c0_i32_0, %arg0 : i32, i32, i32
  }
  func.func @transform_2(%arg0: i32) -> (i32, i32) {
    %c0_i32 = arith.constant 0 : i32
    %c0_i32_0 = arith.constant 0 : i32
    %c0_i32_1 = arith.constant 0 : i32
    return %c0_i32, %c0_i32_0 : i32, i32
  }
  func.func @transform_3(%arg0: i32) -> (i32, i32) {
    %c0_i32 = arith.constant 0 : i32
    %c0_i32_0 = arith.constant 0 : i32
    %c0_i32_1 = arith.constant 0 : i32
    return %c0_i32, %c0_i32_0 : i32, i32
  }
  func.func @transform_4(%arg0: i32) -> (i32, i32) {
    %c0_i32 = arith.constant 0 : i32
    %c0_i32_0 = arith.constant 0 : i32
    %c0_i32_1 = arith.constant 0 : i32
    return %c0_i32, %c0_i32_0 : i32, i32
  }
  func.func @transform_5(%arg0: i32) -> (i32, i32) {
    %c0_i32 = arith.constant 0 : i32
    %c0_i32_0 = arith.constant 0 : i32
    %c0_i32_1 = arith.constant 0 : i32
    return %c0_i32, %c0_i32_0 : i32, i32
  }
  func.func @transform_6(%arg0: i32) -> (i32, i32) {
    %c0_i32 = arith.constant 0 : i32
    %c0_i32_0 = arith.constant 0 : i32
    %c0_i32_1 = arith.constant 0 : i32
    return %c0_i32, %c0_i32_0 : i32, i32
  }
  func.func @transform_7(%arg0: i32) -> (i32, i32) {
    %c0_i32 = arith.constant 0 : i32
    %c0_i32_0 = arith.constant 0 : i32
    %c0_i32_1 = arith.constant 0 : i32
    return %c0_i32, %c0_i32_0 : i32, i32
  }
  func.func @transform_8(%arg0: i32) -> (i32, i32) {
    %c0_i32 = arith.constant 0 : i32
    %c0_i32_0 = arith.constant 0 : i32
    return %c0_i32, %arg0 : i32, i32
  }
}

</mosaic_0001>

<llo_original>
// kernel: local_parameter_network_forward.1
$region0: #{local_parameter_network_forward.1}
  #allocation0 [shape = 'u32[]', space=smem, size = 0x4, offset = 0x4, fixed_abs, tag = 'smem constant byte address 0x4 - core index']
  #allocation1 [shape = 'u32[144,128]{1,0:T(1,128)}', space=vmem, size = 0x12000, scoped, tag = 'internal scratch']
  %s0 = inlined_call_operand.vmem [shape: f32[2,1024], index: 0, kind: input, shape index: {}]
  %s1 = inlined_call_operand.vmem [shape: f32[2,7,1024], index: 1, kind: input, shape index: {}]
  %s2 = inlined_call_operand.vmem [shape: f32[64,2], index: 2, kind: input, shape index: {}]
  %s3 = inlined_call_operand.vmem [shape: f32[64,1], index: 3, kind: input, shape index: {}]
  %s4 = inlined_call_operand.vmem [shape: f32[64,64], index: 4, kind: input, shape index: {}]
  %s5 = inlined_call_operand.vmem [shape: f32[64,1], index: 5, kind: input, shape index: {}]
  %s6 = inlined_call_operand.vmem [shape: f32[16,64], index: 6, kind: input, shape index: {}]
  %s7 = inlined_call_operand.vmem [shape: f32[16,1], index: 7, kind: input, shape index: {}]
  %s8 = inlined_call_operand.vmem [shape: f32[6,1024], index: 8, kind: output, shape index: {}]
  %s9 = sld [smem:[#allocation0]]
  $region88: #{local_parameter_network_forward.1} parent=0
    _
  %s11 = ssub.s32 1, %s9
  %s12 = scalar_select 0, %s11, %s9
  $region1: #{local_parameter_network_forward.1} parent=0
    #allocation2 [shape = 'u8[32768]{0}', space=vmem, size = 0x8000, scoped, tag = 'input window, operand 1']
    loop: start=0, step=1, limit=6
    $region2: #{local_parameter_network_forward.1} parent=1 // loop_pre_header
      _
    $region3: #{local_parameter_network_forward.1} parent=1 // loop_header
      %s14 = sphi 0, %s18
      %p15 = scmp.ge.s32.totalorder %s14, 6
      %s24 = sphi 0, %s26
      %s27 = sphi 0, %s24
      %s28 = sphi 0, %s27
      %s44 = sphi 0, %s28
      %s50 = sphi 0, %s52
      %s53 = sphi 0, %s50
      %s54 = sphi 0, %s53
      %s70 = sphi 0, %s54
      %s74 = sphi 0, %s74
      %s76 = sphi 0, %s74
      %s77 = sphi 0, %s76
      %s91 = sphi 0, %s77
      %s95 = sphi 0, %s95
      %s97 = sphi 0, %s95
      %s98 = sphi 0, %s97
      %s112 = sphi 0, %s98
      %s116 = sphi 0, %s116
      %s118 = sphi 0, %s116
      %s119 = sphi 0, %s118
      %s133 = sphi 0, %s119
      %s137 = sphi 0, %s137
      %s139 = sphi 0, %s137
      %s140 = sphi 0, %s139
      %s154 = sphi 0, %s140
      %s158 = sphi 0, %s158
      %s160 = sphi 0, %s158
      %s161 = sphi 0, %s160
      %s175 = sphi 0, %s161
      %s179 = sphi 0, %s179
      %s181 = sphi 0, %s179
      %s182 = sphi 0, %s181
      %s196 = sphi 0, %s182
      %s202 = sphi 0, %s204
      %s205 = sphi 0, %s202
      %s206 = sphi 0, %s205
      %s222 = sphi 0, %s206
    $region4: #{local_parameter_network_forward.1} parent=1 // loop_header_branch
      %17 = sbr.rel (%p15) target = $region8
    $region5: #{local_parameter_network_forward.1} parent=1 // loop_body
      %s19 = ssub.s32 %s14, 1
      %s20 = ssub.s32 %s14, 2
      %s21 = sadd.s32 %s14, 1
      %s22 = ssub.s32 %s14, %s21
      %p23 = scmp.eq.s32.totalorder %s22, 0
      %s25 = sadd.s32 %s24, 1
      %s26 = scalar_select %p23, %s24, %s25
      %p29 = pneg %p23
      %p30 = scmp.eq.s32.totalorder %s14, 3
      %p31 = por %p29, %p30
      %p32 = scmp.ne.s32.totalorder %s24, %s27
      %p33 = scmp.eq.s32.totalorder %s14, 0
      %p34 = por %p32, %p33
      %p35 = scmp.ne.s32.totalorder %s24, %s27
      %p36 = scmp.eq.s32.totalorder %s19, 3
      %p37 = por %p35, %p36
      %p38 = scmp.ne.s32.totalorder %s27, %s28
      %p39 = scmp.eq.s32.totalorder %s19, 0
      %p40 = por %p38, %p39
      %p41 = scmp.ne.s32.totalorder %s27, %s28
      %p42 = scmp.eq.s32.totalorder %s20, 3
      %p43 = por %p41, %p42
      %p45 = scmp.ne.s32.totalorder %s28, %s44
      %p46 = scmp.eq.s32.totalorder %s20, 0
      %p47 = por %p45, %p46
      %s48 = ssub.s32 %s14, %s21
      %p49 = scmp.eq.s32.totalorder %s48, 0
      %s51 = sadd.s32 %s50, 1
      %s52 = scalar_select %p49, %s50, %s51
      %p55 = pneg %p49
      %p56 = scmp.eq.s32.totalorder %s14, 3
      %p57 = por %p55, %p56
      %p58 = scmp.ne.s32.totalorder %s50, %s53
      %p59 = scmp.eq.s32.totalorder %s14, 0
      %p60 = por %p58, %p59
      %p61 = scmp.ne.s32.totalorder %s50, %s53
      %p62 = scmp.eq.s32.totalorder %s19, 3
      %p63 = por %p61, %p62
      %p64 = scmp.ne.s32.totalorder %s53, %s54
      %p65 = scmp.eq.s32.totalorder %s19, 0
      %p66 = por %p64, %p65
      %p67 = scmp.ne.s32.totalorder %s53, %s54
      %p68 = scmp.eq.s32.totalorder %s20, 3
      %p69 = por %p67, %p68
      %p71 = scmp.ne.s32.totalorder %s54, %s70
      %p72 = scmp.eq.s32.totalorder %s20, 0
      %p73 = por %p71, %p72
      %s75 = sadd.s32 %s74, 1
      %p78 = scmp.eq.s32.totalorder %s14, 3
      %p79 = scmp.ne.s32.totalorder %s74, %s76
      %p80 = scmp.eq.s32.totalorder %s14, 0
      %p81 = por %p79, %p80
      %p82 = scmp.ne.s32.totalorder %s74, %s76
      %p83 = scmp.eq.s32.totalorder %s19, 3
      %p84 = por %p82, %p83
      %p85 = scmp.ne.s32.totalorder %s76, %s77
      %p86 = scmp.eq.s32.totalorder %s19, 0
      %p87 = por %p85, %p86
      %p88 = scmp.ne.s32.totalorder %s76, %s77
      %p89 = scmp.eq.s32.totalorder %s20, 3
      %p90 = por %p88, %p89
      %p92 = scmp.ne.s32.totalorder %s77, %s91
      %p93 = scmp.eq.s32.totalorder %s20, 0
      %p94 = por %p92, %p93
      %s96 = sadd.s32 %s95, 1
      %p99 = scmp.eq.s32.totalorder %s14, 3
      %p100 = scmp.ne.s32.totalorder %s95, %s97
      %p101 = scmp.eq.s32.totalorder %s14, 0
      %p102 = por %p100, %p101
      %p103 = scmp.ne.s32.totalorder %s95, %s97
      %p104 = scmp.eq.s32.totalorder %s19, 3
      %p105 = por %p103, %p104
      %p106 = scmp.ne.s32.totalorder %s97, %s98
      %p107 = scmp.eq.s32.totalorder %s19, 0
      %p108 = por %p106, %p107
      %p109 = scmp.ne.s32.totalorder %s97, %s98
      %p110 = scmp.eq.s32.totalorder %s20, 3
      %p111 = por %p109, %p110
      %p113 = scmp.ne.s32.totalorder %s98, %s112
      %p114 = scmp.eq.s32.totalorder %s20, 0
      %p115 = por %p113, %p114
      %s117 = sadd.s32 %s116, 1
      %p120 = scmp.eq.s32.totalorder %s14, 3
      %p121 = scmp.ne.s32.totalorder %s116, %s118
      %p122 = scmp.eq.s32.totalorder %s14, 0
      %p123 = por %p121, %p122
      %p124 = scmp.ne.s32.totalorder %s116, %s118
      %p125 = scmp.eq.s32.totalorder %s19, 3
      %p126 = por %p124, %p125
      %p127 = scmp.ne.s32.totalorder %s118, %s119
      %p128 = scmp.eq.s32.totalorder %s19, 0
      %p129 = por %p127, %p128
      %p130 = scmp.ne.s32.totalorder %s118, %s119
      %p131 = scmp.eq.s32.totalorder %s20, 3
      %p132 = por %p130, %p131
      %p134 = scmp.ne.s32.totalorder %s119, %s133
      %p135 = scmp.eq.s32.totalorder %s20, 0
      %p136 = por %p134, %p135
      %s138 = sadd.s32 %s137, 1
      %p141 = scmp.eq.s32.totalorder %s14, 3
      %p142 = scmp.ne.s32.totalorder %s137, %s139
      %p143 = scmp.eq.s32.totalorder %s14, 0
      %p144 = por %p142, %p143
      %p145 = scmp.ne.s32.totalorder %s137, %s139
      %p146 = scmp.eq.s32.totalorder %s19, 3
      %p147 = por %p145, %p146
      %p148 = scmp.ne.s32.totalorder %s139, %s140
      %p149 = scmp.eq.s32.totalorder %s19, 0
      %p150 = por %p148, %p149
      %p151 = scmp.ne.s32.totalorder %s139, %s140
      %p152 = scmp.eq.s32.totalorder %s20, 3
      %p153 = por %p151, %p152
      %p155 = scmp.ne.s32.totalorder %s140, %s154
      %p156 = scmp.eq.s32.totalorder %s20, 0
      %p157 = por %p155, %p156
      %s159 = sadd.s32 %s158, 1
      %p162 = scmp.eq.s32.totalorder %s14, 3
      %p163 = scmp.ne.s32.totalorder %s158, %s160
      %p164 = scmp.eq.s32.totalorder %s14, 0
      %p165 = por %p163, %p164
      %p166 = scmp.ne.s32.totalorder %s158, %s160
      %p167 = scmp.eq.s32.totalorder %s19, 3
      %p168 = por %p166, %p167
      %p169 = scmp.ne.s32.totalorder %s160, %s161
      %p170 = scmp.eq.s32.totalorder %s19, 0
      %p171 = por %p169, %p170
      %p172 = scmp.ne.s32.totalorder %s160, %s161
      %p173 = scmp.eq.s32.totalorder %s20, 3
      %p174 = por %p172, %p173
      %p176 = scmp.ne.s32.totalorder %s161, %s175
      %p177 = scmp.eq.s32.totalorder %s20, 0
      %p178 = por %p176, %p177
      %s180 = sadd.s32 %s179, 1
      %p183 = scmp.eq.s32.totalorder %s14, 3
      %p184 = scmp.ne.s32.totalorder %s179, %s181
      %p185 = scmp.eq.s32.totalorder %s14, 0
      %p186 = por %p184, %p185
      %p187 = scmp.ne.s32.totalorder %s179, %s181
      %p188 = scmp.eq.s32.totalorder %s19, 3
      %p189 = por %p187, %p188
      %p190 = scmp.ne.s32.totalorder %s181, %s182
      %p191 = scmp.eq.s32.totalorder %s19, 0
      %p192 = por %p190, %p191
      %p193 = scmp.ne.s32.totalorder %s181, %s182
      %p194 = scmp.eq.s32.totalorder %s20, 3
      %p195 = por %p193, %p194
      %p197 = scmp.ne.s32.totalorder %s182, %s196
      %p198 = scmp.eq.s32.totalorder %s20, 0
      %p199 = por %p197, %p198
      %s200 = ssub.s32 %s14, %s21
      %p201 = scmp.eq.s32.totalorder %s200, 0
      %s203 = sadd.s32 %s202, 1
      %s204 = scalar_select %p201, %s202, %s203
      %p207 = pneg %p201
      %p208 = scmp.eq.s32.totalorder %s14, 3
      %p209 = por %p207, %p208
      %p210 = scmp.ne.s32.totalorder %s202, %s205
      %p211 = scmp.eq.s32.totalorder %s14, 0
      %p212 = por %p210, %p211
      %p213 = scmp.ne.s32.totalorder %s202, %s205
      %p214 = scmp.eq.s32.totalorder %s19, 3
      %p215 = por %p213, %p214
      %p216 = scmp.ne.s32.totalorder %s205, %s206
      %p217 = scmp.eq.s32.totalorder %s19, 0
      %p218 = por %p216, %p217
      %p219 = scmp.ne.s32.totalorder %s205, %s206
      %p220 = scmp.eq.s32.totalorder %s20, 3
      %p221 = por %p219, %p220
      %p223 = scmp.ne.s32.totalorder %s206, %s222
      %p224 = scmp.eq.s32.totalorder %s20, 0
      %p225 = por %p223, %p224
      %p226 = scmp.le.s32.totalorder 1, %s14
      %p227 = scmp.lt.s32.totalorder %s14, 5
      %p228 = pnand %p226, %p227
      %p229 = pneg %p228
      // Predicated region
      $region9: #{local_parameter_network_forward.1} parent=5 // pred_check
        _
      $region10: #{local_parameter_network_forward.1} parent=5 // pred_check_branch
        %231 = sbr.rel (%p228) target = $region12
      $region11: #{local_parameter_network_forward.1} parent=5 // pred_region
        %s232 = ssub.s32 %s14, 1
        // Predicated region
        $region13: #{local_parameter_network_forward.1} parent=11 // pred_check
          %p233 = pneg %p87
        $region14: #{local_parameter_network_forward.1} parent=11 // pred_check_branch
          %235 = sbr.rel (%p233) target = $region16
        $region15: #{local_parameter_network_forward.1} parent=11 // pred_region
          _
        $region16: #{local_parameter_network_forward.1} parent=11 // pred_fallthru
          _
        // Predicated region
        $region17: #{local_parameter_network_forward.1} parent=11 // pred_check
          %p236 = pneg %p108
        $region18: #{local_parameter_network_forward.1} parent=11 // pred_check_branch
          %238 = sbr.rel (%p236) target = $region20
        $region19: #{local_parameter_network_forward.1} parent=11 // pred_region
          _
        $region20: #{local_parameter_network_forward.1} parent=11 // pred_fallthru
          _
        // Predicated region
        $region21: #{local_parameter_network_forward.1} parent=11 // pred_check
          %p239 = pneg %p129
        $region22: #{local_parameter_network_forward.1} parent=11 // pred_check_branch
          %241 = sbr.rel (%p239) target = $region24
        $region23: #{local_parameter_network_forward.1} parent=11 // pred_region
          _
        $region24: #{local_parameter_network_forward.1} parent=11 // pred_fallthru
          _
        // Predicated region
        $region25: #{local_parameter_network_forward.1} parent=11 // pred_check
          %p242 = pneg %p150
        $region26: #{local_parameter_network_forward.1} parent=11 // pred_check_branch
          %244 = sbr.rel (%p242) target = $region28
        $region27: #{local_parameter_network_forward.1} parent=11 // pred_region
          _
        $region28: #{local_parameter_network_forward.1} parent=11 // pred_fallthru
          _
        // Predicated region
        $region29: #{local_parameter_network_forward.1} parent=11 // pred_check
          %p245 = pneg %p171
        $region30: #{local_parameter_network_forward.1} parent=11 // pred_check_branch
          %247 = sbr.rel (%p245) target = $region32
        $region31: #{local_parameter_network_forward.1} parent=11 // pred_region
          _
        $region32: #{local_parameter_network_forward.1} parent=11 // pred_fallthru
          _
        // Predicated region
        $region33: #{local_parameter_network_forward.1} parent=11 // pred_check
          %p248 = pneg %p192
        $region34: #{local_parameter_network_forward.1} parent=11 // pred_check_branch
          %250 = sbr.rel (%p248) target = $region36
        $region35: #{local_parameter_network_forward.1} parent=11 // pred_region
          _
        $region36: #{local_parameter_network_forward.1} parent=11 // pred_fallthru
          _
      $region12: #{local_parameter_network_forward.1} parent=5 // pred_fallthru
        _
      %p251 = scmp.lt.s32.totalorder %s14, 4
      // Predicated region
      $region37: #{local_parameter_network_forward.1} parent=5 // pred_check
        %p252 = pneg %p251
      $region38: #{local_parameter_network_forward.1} parent=5 // pred_check_branch
        %254 = sbr.rel (%p252) target = $region40
      $region39: #{local_parameter_network_forward.1} parent=5 // pred_region
        // Predicated region
        $region41: #{local_parameter_network_forward.1} parent=39 // pred_check
          %p255 = pneg %p34
        $region42: #{local_parameter_network_forward.1} parent=39 // pred_check_branch
          %257 = sbr.rel (%p255) target = $region44
        $region43: #{local_parameter_network_forward.1} parent=39 // pred_region
          %s258 = smul.u32 2, %s14
          %p259 = scmp.lt.s32.totalorder %s258, 7
          %s260 = scalar_select %p259, %s258, 7
          %s261 = smul.addr %s260, 2
          %s262 = scalar_lea.vmem %s0, %s261
          %s263 = smul.u32 2, %s14
        $region44: #{local_parameter_network_forward.1} parent=39 // pred_fallthru
          _
        // Predicated region
        $region45: #{local_parameter_network_forward.1} parent=39 // pred_check
          %p264 = pneg %p60
        $region46: #{local_parameter_network_forward.1} parent=39 // pred_check_branch
          %266 = sbr.rel (%p264) target = $region48
        $region47: #{local_parameter_network_forward.1} parent=39 // pred_region
          %s267 = sand.u32 %s50, 1
          %s268 = sand.u32 %s50, 1
          %s269 = smul.addr %s268, 32
          %s270 = scalar_lea.vmem [#allocation2], %s269
          %s271 = smul.u32 2, %s14
          %s272 = smul.addr %s271, 8
          %s273 = scalar_lea.vmem %s1, %s272
          // Predicated region
          $region49: #{local_parameter_network_forward.1} parent=47 // pred_check
            _
          $region50: #{local_parameter_network_forward.1} parent=47 // pred_check_branch
            %275 = sbr.rel (0) target = $region52
          $region51: #{local_parameter_network_forward.1} parent=47 // pred_region
            // Predicated region
            $region53: #{local_parameter_network_forward.1} parent=51 // pred_check
              _
            $region54: #{local_parameter_network_forward.1} parent=51 // pred_check_branch
              %277 = sbr.rel (0) target = $region56
            $region55: #{local_parameter_network_forward.1} parent=51 // pred_region
              loop: start=0, step=1, limit=1
              $region57: #{local_parameter_network_forward.1} parent=55 // loop_pre_header
                _
              $region58: #{local_parameter_network_forward.1} parent=55 // loop_header
                %s279 = sphi 0, %s283
                %p280 = scmp.ge.s32.totalorder %s279, 1
                %s284 = sphi %s273, %s273
                %s285 = sphi %s270, %s270
              $region59: #{local_parameter_network_forward.1} parent=55 // loop_header_branch
                %282 = sbr.rel (%p280) target = $region63
              $region60: #{local_parameter_network_forward.1} parent=55 // loop_body
                %v286 = vld [vmem:[%s284] sm:$0xff]
                %287 = vst [vmem:[%s285] sm:$0xff] %v286
                %v288 = vld [vmem:[%s284 + $0x8] sm:$0xff]
                %289 = vst [vmem:[%s285 + $0x8] sm:$0xff] %v288
                %v290 = vld [vmem:[%s284 + $0x40] sm:$0xff]
                %291 = vst [vmem:[%s285 + $0x10] sm:$0xff] %v290
                %v292 = vld [vmem:[%s284 + $0x48] sm:$0xff]
                %293 = vst [vmem:[%s285 + $0x18] sm:$0xff] %v292
              $region61: #{local_parameter_network_forward.1} parent=55 // loop_footer
                %s283 = sadd.s32 1, %s279
              $region62: #{local_parameter_network_forward.1} parent=55 // loop_footer_branch
                %278 = sbr.rel target = $region58
              $region63: #{local_parameter_network_forward.1} parent=55 // loop_exit
                _
            $region56: #{local_parameter_network_forward.1} parent=51 // pred_fallthru
              _
            // Predicated region
            $region64: #{local_parameter_network_forward.1} parent=51 // pred_check
              _
            $region65: #{local_parameter_network_forward.1} parent=51 // pred_check_branch
              %295 = sbr.rel target = $region67
            $region66: #{local_parameter_network_forward.1} parent=51 // pred_region
              _
            $region67: #{local_parameter_network_forward.1} parent=51 // pred_fallthru
              _
          $region52: #{local_parameter_network_forward.1} parent=47 // pred_fallthru
            _
          %296 = vnop
        $region48: #{local_parameter_network_forward.1} parent=39 // pred_fallthru
          _
      $region40: #{local_parameter_network_forward.1} parent=5 // pred_fallthru
        _
      %p297 = scmp.le.s32.totalorder 1, %s14
      %p298 = scmp.lt.s32.totalorder %s14, 5
      %p299 = pnand %p297, %p298
      %p300 = pneg %p299
      // Predicated region
      $region68: #{local_parameter_network_forward.1} parent=5 // pred_check
        _
      $region69: #{local_parameter_network_forward.1} parent=5 // pred_check_branch
        %302 = sbr.rel (%p299) target = $region71
      $region70: #{local_parameter_network_forward.1} parent=5 // pred_region
        %s303 = ssub.s32 %s14, 1
        %s304 = sand.u32 %s53, 1
        %s305 = sand.u32 %s53, 1
        %s306 = smul.addr %s305, 32
        %s307 = scalar_lea.vmem [#allocation2], %s306
        // Predicated region
        $region72: #{local_parameter_network_forward.1} parent=70 // pred_check
          %p308 = pneg %p66
        $region73: #{local_parameter_network_forward.1} parent=70 // pred_check_branch
          %310 = sbr.rel (%p308) target = $region75
        $region74: #{local_parameter_network_forward.1} parent=70 // pred_region
          _
        $region75: #{local_parameter_network_forward.1} parent=70 // pred_fallthru
          _
        %s311 = smul.u32 2, %s19
        %p312 = scmp.lt.s32.totalorder %s311, 7
        %s313 = scalar_select %p312, %s311, 7
        %s314 = smul.addr %s313, 2
        %s315 = scalar_lea.vmem %s0, %s314
        %p316 = pneg %p40
        %p317 = pneg %p37
        %s318 = sand.u32 %s53, 1
        %s319 = sand.u32 %s53, 1
        %s320 = smul.addr %s319, 32
        %s321 = scalar_lea.vmem [#allocation2], %s320
        %p322 = pneg %p66
        %p323 = pneg %p63
        %p324 = pneg %p87
        %p325 = pneg %p84
        %p326 = pneg %p108
        %p327 = pneg %p105
        %p328 = pneg %p129
        %p329 = pneg %p126
        %p330 = pneg %p150
        %p331 = pneg %p147
        %p332 = pneg %p171
        %p333 = pneg %p168
        %p334 = pneg %p192
        %p335 = pneg %p189
        %p336 = pneg %p218
        %p337 = pneg %p215
        %s338 = smul.u32 2, %s19
        %p339 = scmp.lt.s32.totalorder %s338, 7
        %s340 = scalar_select %p339, %s338, 7
        %s341 = smul.addr %s340, 8
        %s342 = scalar_lea.vmem %s8, %s341
        %s343 = smul.u32 2, %s19
        %p344 = scmp.lt.s32.totalorder %s343, 7
        %s345 = scalar_select %p344, %s343, 7
        %s346 = smul.addr %s345, 2
        %s347 = scalar_lea.vmem %s0, %s346
        %s348 = smul.u32 2, %s19
        %s349 = smul.u32 2, %s19
        %s350 = smul.u32 2, %s19
        %p351 = scmp.lt.s32.totalorder %s350, 7
        %s352 = scalar_select %p351, %s350, 7
        %s353 = smul.addr %s352, 8
        %s354 = scalar_lea.vmem %s8, %s353
        %s355 = smul.u32 2, %s19
        %v356 = vld [vmem:[%s347] sm:$0xf]
        %v357 = vld [vmem:[%s307] sm:$0x7f]
        %v358 = vld [vmem:[%s307 + $0x8] sm:$0x7f]
        %v359 = vld [vmem:[%s307 + $0x10] sm:$0x7f]
        %v360 = vld [vmem:[%s307 + $0x18] sm:$0x7f]
        %v361 = vld [vmem:[%s2] sm:$0xff]
        %v362 = vld [vmem:[%s2 + $0x8] sm:$0xff]
        %v363 = vld [vmem:[%s2 + $0x10] sm:$0xff]
        %v364 = vld [vmem:[%s2 + $0x18] sm:$0xff]
        %v365 = vld [vmem:[%s2 + $0x20] sm:$0xff]
        %v366 = vld [vmem:[%s2 + $0x28] sm:$0xff]
        %v367 = vld [vmem:[%s2 + $0x30] sm:$0xff]
        %v368 = vld [vmem:[%s2 + $0x38] sm:$0xff]
        %370 = vset.pattern.permute.xlu0 0
        %371 = vperm.xlu0 %370, %v361
        %v372 = vpop.permute.xlu0 %371
        %375 = vset.pattern.permute.xlu0 0
        %376 = vperm.xlu0 %375, %v362
        %v377 = vpop.permute.xlu0 %376
        %380 = vset.pattern.permute.xlu0 0
        %381 = vperm.xlu0 %380, %v363
        %v382 = vpop.permute.xlu0 %381
        %385 = vset.pattern.permute.xlu0 0
        %386 = vperm.xlu0 %385, %v364
        %v387 = vpop.permute.xlu0 %386
        %390 = vset.pattern.permute.xlu0 0
        %391 = vperm.xlu0 %390, %v365
        %v392 = vpop.permute.xlu0 %391
        %395 = vset.pattern.permute.xlu0 0
        %396 = vperm.xlu0 %395, %v366
        %v397 = vpop.permute.xlu0 %396
        %400 = vset.pattern.permute.xlu0 0
        %401 = vperm.xlu0 %400, %v367
        %v402 = vpop.permute.xlu0 %401
        %405 = vset.pattern.permute.xlu0 0
        %406 = vperm.xlu0 %405, %v368
        %v407 = vpop.permute.xlu0 %406
        %v410 = vlaneseq
        %v411 = vshrl.u32 %v410, 7
        %v412 = vsub.s32 0, %v411
        %v413 = vrot.slane %v356, %v412
        %v414 = vlaneseq
        %v415 = vshrl.u32 %v414, 7
        %v416 = vsub.s32 2, %v415
        %v417 = vrot.slane %v356, %v416
        %v420 = vlaneseq
        %v421 = vshrl.u32 %v420, 7
        %v422 = vsub.s32 0, %v421
        %v423 = vrot.slane %v413, %v422
        %v424 = vlaneseq
        %v425 = vshrl.u32 %v424, 7
        %v426 = vsub.s32 0, %v425
        %v427 = vrot.slane %v417, %v426
        %v428 = vmul.f32 %v372, %v423
        %v429 = vmul.f32 %v372, %v427
        %v430 = vmul.f32 %v377, %v423
        %v431 = vmul.f32 %v377, %v427
        %v432 = vmul.f32 %v382, %v423
        %v433 = vmul.f32 %v382, %v427
        %v434 = vmul.f32 %v387, %v423
        %v435 = vmul.f32 %v387, %v427
        %v436 = vmul.f32 %v392, %v423
        %v437 = vmul.f32 %v392, %v427
        %v438 = vmul.f32 %v397, %v423
        %v439 = vmul.f32 %v397, %v427
        %v440 = vmul.f32 %v402, %v423
        %v441 = vmul.f32 %v402, %v427
        %v442 = vmul.f32 %v407, %v423
        %v443 = vmul.f32 %v407, %v427
        %v444 = vld [vmem:[%s3] sm:$0xff]
        %v445 = vld [vmem:[%s3 + $0x8] sm:$0xff]
        %v446 = vld [vmem:[%s3 + $0x10] sm:$0xff]
        %v447 = vld [vmem:[%s3 + $0x18] sm:$0xff]
        %v448 = vld [vmem:[%s3 + $0x20] sm:$0xff]
        %v449 = vld [vmem:[%s3 + $0x28] sm:$0xff]
        %v450 = vld [vmem:[%s3 + $0x30] sm:$0xff]
        %v451 = vld [vmem:[%s3 + $0x38] sm:$0xff]
        %453 = vset.pattern.permute.xlu0 0
        %454 = vperm.xlu0 %453, %v444
        %v455 = vpop.permute.xlu0 %454
        %458 = vset.pattern.permute.xlu0 0
        %459 = vperm.xlu0 %458, %v445
        %v460 = vpop.permute.xlu0 %459
        %463 = vset.pattern.permute.xlu0 0
        %464 = vperm.xlu0 %463, %v446
        %v465 = vpop.permute.xlu0 %464
        %468 = vset.pattern.permute.xlu0 0
        %469 = vperm.xlu0 %468, %v447
        %v470 = vpop.permute.xlu0 %469
        %473 = vset.pattern.permute.xlu0 0
        %474 = vperm.xlu0 %473, %v448
        %v475 = vpop.permute.xlu0 %474
        %478 = vset.pattern.permute.xlu0 0
        %479 = vperm.xlu0 %478, %v449
        %v480 = vpop.permute.xlu0 %479
        %483 = vset.pattern.permute.xlu0 0
        %484 = vperm.xlu0 %483, %v450
        %v485 = vpop.permute.xlu0 %484
        %488 = vset.pattern.permute.xlu0 0
        %489 = vperm.xlu0 %488, %v451
        %v490 = vpop.permute.xlu0 %489
        %v492 = vadd.f32 %v428, %v455
        %v493 = vadd.f32 %v429, %v455
        %v494 = vadd.f32 %v430, %v460
        %v495 = vadd.f32 %v431, %v460
        %v496 = vadd.f32 %v432, %v465
        %v497 = vadd.f32 %v433, %v465
        %v498 = vadd.f32 %v434, %v470
        %v499 = vadd.f32 %v435, %v470
        %v500 = vadd.f32 %v436, %v475
        %v501 = vadd.f32 %v437, %v475
        %v502 = vadd.f32 %v438, %v480
        %v503 = vadd.f32 %v439, %v480
        %v504 = vadd.f32 %v440, %v485
        %v505 = vadd.f32 %v441, %v485
        %v506 = vadd.f32 %v442, %v490
        %v507 = vadd.f32 %v443, %v490
        %508 = vset.pattern.permute.xlu0 1
        %509 = vperm.xlu0 %508, %v361
        %v510 = vpop.permute.xlu0 %509
        %512 = vset.pattern.permute.xlu0 1
        %513 = vperm.xlu0 %512, %v362
        %v514 = vpop.permute.xlu0 %513
        %516 = vset.pattern.permute.xlu0 1
        %517 = vperm.xlu0 %516, %v363
        %v518 = vpop.permute.xlu0 %517
        %520 = vset.pattern.permute.xlu0 1
        %521 = vperm.xlu0 %520, %v364
        %v522 = vpop.permute.xlu0 %521
        %524 = vset.pattern.permute.xlu0 1
        %525 = vperm.xlu0 %524, %v365
        %v526 = vpop.permute.xlu0 %525
        %528 = vset.pattern.permute.xlu0 1
        %529 = vperm.xlu0 %528, %v366
        %v530 = vpop.permute.xlu0 %529
        %532 = vset.pattern.permute.xlu0 1
        %533 = vperm.xlu0 %532, %v367
        %v534 = vpop.permute.xlu0 %533
        %536 = vset.pattern.permute.xlu0 1
        %537 = vperm.xlu0 %536, %v368
        %v538 = vpop.permute.xlu0 %537
        %v540 = vlaneseq
        %v541 = vshrl.u32 %v540, 7
        %v542 = vsub.s32 1, %v541
        %v543 = vrot.slane %v356, %v542
        %v544 = vlaneseq
        %v545 = vshrl.u32 %v544, 7
        %v546 = vsub.s32 3, %v545
        %v547 = vrot.slane %v356, %v546
        %v550 = vlaneseq
        %v551 = vshrl.u32 %v550, 7
        %v552 = vsub.s32 1, %v551
        %v553 = vrot.slane %v543, %v552
        %v554 = vlaneseq
        %v555 = vshrl.u32 %v554, 7
        %v556 = vsub.s32 1, %v555
        %v557 = vrot.slane %v547, %v556
        %v558 = vmul.f32 %v510, %v553
        %v559 = vmul.f32 %v510, %v557
        %v560 = vmul.f32 %v514, %v553
        %v561 = vmul.f32 %v514, %v557
        %v562 = vmul.f32 %v518, %v553
        %v563 = vmul.f32 %v518, %v557
        %v564 = vmul.f32 %v522, %v553
        %v565 = vmul.f32 %v522, %v557
        %v566 = vmul.f32 %v526, %v553
        %v567 = vmul.f32 %v526, %v557
        %v568 = vmul.f32 %v530, %v553
        %v569 = vmul.f32 %v530, %v557
        %v570 = vmul.f32 %v534, %v553
        %v571 = vmul.f32 %v534, %v557
        %v572 = vmul.f32 %v538, %v553
        %v573 = vmul.f32 %v538, %v557
        %v574 = vadd.f32 %v492, %v558
        %v575 = vadd.f32 %v493, %v559
        %v576 = vadd.f32 %v494, %v560
        %v577 = vadd.f32 %v495, %v561
        %v578 = vadd.f32 %v496, %v562
        %v579 = vadd.f32 %v497, %v563
        %v580 = vadd.f32 %v498, %v564
        %v581 = vadd.f32 %v499, %v565
        %v582 = vadd.f32 %v500, %v566
        %v583 = vadd.f32 %v501, %v567
        %v584 = vadd.f32 %v502, %v568
        %v585 = vadd.f32 %v503, %v569
        %v586 = vadd.f32 %v504, %v570
        %v587 = vadd.f32 %v505, %v571
        %v588 = vadd.f32 %v506, %v572
        %v589 = vadd.f32 %v507, %v573
        %v590 = vand.u32 2147483647, %v574
        %vm591 = vcmp.le.f32.partialorder %v590, 0.7853982
        %vm592 = vcmp.lt.s32.totalorder %v574, 0
        %v593 = vand.u32 %v574, 2139095040
        %v594 = vshrl.u32 %v593, 23
        %v595 = vsub.s32 %v594, 127
        %v596 = vand.u32 2147483647, %v574
        %v597 = vand.u32 %v596, 8388607
        %v598 = vor.u32 %v597, 8388608
        %v599 = vsub.s32 0, %v598
        %v600 = vadd.s32 %v595, 1
        %vm601 = vcmp.gt.s32.totalorder %v600, 0
        %v602 = vsel %vm601, %v600, 0
        %v603 = vshrl.u32 %v602, 5
        %v604 = vand.u32 %v602, 31
        %v605 = vsub.s32 32, %v604
        %v606 = vshrl.u32 683565275, %v605
        %v607 = vshll.u32 683565275, %v604
        %v608 = vshrl.u32 2475754826, %v605
        %v609 = vor.u32 %v607, %v608
        %v610 = vshll.u32 2475754826, %v604
        %v611 = vshrl.u32 2131351028, %v605
        %v612 = vor.u32 %v610, %v611
        %v613 = vshll.u32 2131351028, %v604
        %v614 = vshrl.u32 2102212464, %v605
        %v615 = vor.u32 %v613, %v614
        %v616 = vshll.u32 2102212464, %v604
        %v617 = vshrl.u32 920167782, %v605
        %v618 = vor.u32 %v616, %v617
        %v619 = vshll.u32 920167782, %v604
        %v620 = vshrl.u32 1326507024, %v605
        %v621 = vor.u32 %v619, %v620
        %vm622 = vcmp.lt.s32.totalorder %v603, 1
        %vm623 = vcmp.lt.s32.totalorder %v603, 2
        %vm624 = vcmp.lt.s32.totalorder %v603, 3
        %vm625 = vcmp.lt.s32.totalorder %v603, 4
        %v626 = vsel %vm622, %v606, %v609
        %v627 = vsel %vm625, %v615, 2102212464
        %v628 = vsel %vm624, %v612, %v627
        %v629 = vsel %vm623, %v626, %v628
        %v630 = vsel %vm622, %v609, %v612
        %v631 = vsel %vm625, %v618, 920167782
        %v632 = vsel %vm624, %v615, %v631
        %v633 = vsel %vm623, %v630, %v632
        %v634 = vsel %vm622, %v612, %v615
        %v635 = vsel %vm625, %v621, 1326507024
        %v636 = vsel %vm624, %v618, %v635
        %v637 = vsel %vm623, %v634, %v636
        %v638 = vshll.u32 %v598, 8
        %v639 = vmul.u32.u64.compose %v638, %v637
        %v640 = vextract.low.u32 %v639
        %v641 = vextract.high.u32 %v639
        %v642 = vmul.u32.u64.compose %v638, %v633
        %v643 = vextract.low.u32 %v642
        %v644 = vextract.high.u32 %v642
        %v645 = vmul.u32 %v638, %v629
        %v646 = vadd.s32 %v641, %v643
        %vm647 = vc.u32 %v641, %v643
        %v648 = vadd.s32 %v644, 1
        %v649 = vsel %vm647, %v648, %v644
        %v650 = vadd.s32 %v645, %v649
        %v651 = vadd.s32 %v650, 536870912
        %v652 = vshrl.u32 %v651, 30
        %v653 = vshll.u32 %v652, 30
        %v654 = vsub.s32 %v650, %v653
        %vm655 = vcmp.lt.s32.totalorder %v654, 0
        %v656 = vsub.s32 0, %v654
        %v657 = vsel %vm655, %v656, %v654
        %v658 = vclz %v657
        %v659 = vsub.s32 %v658, 2
        %vm660 = vcmp.gt.s32.totalorder 0, %v659
        %v661 = vsel %vm660, 0, %v659
        %v662 = vsub.s32 32, %v661
        %v663 = vshll.u32 %v654, %v661
        %v664 = vshrl.u32 %v646, %v662
        %v665 = vor.u32 %v663, %v664
        %v666 = vsub.s32 4294967266, %v661
        %v667 = vadd.s32 %v666, 127
        %v668 = vshll.u32 %v667, 23
        %v669 = vor.u32 4788187, %v668
        %v670 = vand.u32 2147483647, %v669
        %v672 = vcvt.s32.f32 %v665
        %v673 = vmul.f32 %v672, %v670
        %v674 = vxor.u32 %v673, 2147483648
        %v675 = vsel %vm592, %v674, %v673
        %v676 = vsub.s32 4, %v652
        %v677 = vsel %vm592, %v676, %v652
        %v678 = vsel %vm591, %v574, %v675
        %v679 = vsel %vm591, 0, %v677
        %v680 = vcosq.f32.pop %v678
        %v681 = vsinq.f32.pop %v678
        %vm682 = vweird.f32 %v574
        %v683 = vadd.s32 %v679, 3
        %v684 = vand.u32 %v683, 3
        %vm685 = vcmp.lt.s32.totalorder %v684, 2
        %vm686 = vcmp.eq.s32.totalorder %v684, 0
        %v687 = vxor.u32 %v681, 2147483648
        %v688 = vsel %vm686, %v680, %v687
        %vm689 = vcmp.eq.s32.totalorder %v684, 2
        %v690 = vxor.u32 %v680, 2147483648
        %v691 = vsel %vm689, %v690, %v681
        %v692 = vsel %vm685, %v688, %v691
        %v693 = vsel %vm682, nan, %v692
        %v694 = vand.u32 2147483647, %v575
        %vm695 = vcmp.le.f32.partialorder %v694, 0.7853982
        %vm696 = vcmp.lt.s32.totalorder %v575, 0
        %v697 = vand.u32 %v575, 2139095040
        %v698 = vshrl.u32 %v697, 23
        %v699 = vsub.s32 %v698, 127
        %v700 = vand.u32 2147483647, %v575
        %v701 = vand.u32 %v700, 8388607
        %v702 = vor.u32 %v701, 8388608
        %v703 = vsub.s32 0, %v702
        %v704 = vadd.s32 %v699, 1
        %vm705 = vcmp.gt.s32.totalorder %v704, 0
        %v706 = vsel %vm705, %v704, 0
        %v707 = vshrl.u32 %v706, 5
        %v708 = vand.u32 %v706, 31
        %v709 = vsub.s32 32, %v708
        %v710 = vshrl.u32 683565275, %v709
        %v711 = vshll.u32 683565275, %v708
        %v712 = vshrl.u32 2475754826, %v709
        %v713 = vor.u32 %v711, %v712
        %v714 = vshll.u32 2475754826, %v708
        %v715 = vshrl.u32 2131351028, %v709
        %v716 = vor.u32 %v714, %v715
        %v717 = vshll.u32 2131351028, %v708
        %v718 = vshrl.u32 2102212464, %v709
        %v719 = vor.u32 %v717, %v718
        %v720 = vshll.u32 2102212464, %v708
        %v721 = vshrl.u32 920167782, %v709
        %v722 = vor.u32 %v720, %v721
        %v723 = vshll.u32 920167782, %v708
        %v724 = vshrl.u32 1326507024, %v709
        %v725 = vor.u32 %v723, %v724
        %vm726 = vcmp.lt.s32.totalorder %v707, 1
        %vm727 = vcmp.lt.s32.totalorder %v707, 2
        %vm728 = vcmp.lt.s32.totalorder %v707, 3
        %vm729 = vcmp.lt.s32.totalorder %v707, 4
        %v730 = vsel %vm726, %v710, %v713
        %v731 = vsel %vm729, %v719, 2102212464
        %v732 = vsel %vm728, %v716, %v731
        %v733 = vsel %vm727, %v730, %v732
        %v734 = vsel %vm726, %v713, %v716
        %v735 = vsel %vm729, %v722, 920167782
        %v736 = vsel %vm728, %v719, %v735
        %v737 = vsel %vm727, %v734, %v736
        %v738 = vsel %vm726, %v716, %v719
        %v739 = vsel %vm729, %v725, 1326507024
        %v740 = vsel %vm728, %v722, %v739
        %v741 = vsel %vm727, %v738, %v740
        %v742 = vshll.u32 %v702, 8
        %v743 = vmul.u32.u64.compose %v742, %v741
        %v744 = vextract.low.u32 %v743
        %v745 = vextract.high.u32 %v743
        %v746 = vmul.u32.u64.compose %v742, %v737
        %v747 = vextract.low.u32 %v746
        %v748 = vextract.high.u32 %v746
        %v749 = vmul.u32 %v742, %v733
        %v750 = vadd.s32 %v745, %v747
        %vm751 = vc.u32 %v745, %v747
        %v752 = vadd.s32 %v748, 1
        %v753 = vsel %vm751, %v752, %v748
        %v754 = vadd.s32 %v749, %v753
        %v755 = vadd.s32 %v754, 536870912
        %v756 = vshrl.u32 %v755, 30
        %v757 = vshll.u32 %v756, 30
        %v758 = vsub.s32 %v754, %v757
        %vm759 = vcmp.lt.s32.totalorder %v758, 0
        %v760 = vsub.s32 0, %v758
        %v761 = vsel %vm759, %v760, %v758
        %v762 = vclz %v761
        %v763 = vsub.s32 %v762, 2
        %vm764 = vcmp.gt.s32.totalorder 0, %v763
        %v765 = vsel %vm764, 0, %v763
        %v766 = vsub.s32 32, %v765
        %v767 = vshll.u32 %v758, %v765
        %v768 = vshrl.u32 %v750, %v766
        %v769 = vor.u32 %v767, %v768
        %v770 = vsub.s32 4294967266, %v765
        %v771 = vadd.s32 %v770, 127
        %v772 = vshll.u32 %v771, 23
        %v773 = vor.u32 4788187, %v772
        %v774 = vand.u32 2147483647, %v773
        %v776 = vcvt.s32.f32 %v769
        %v777 = vmul.f32 %v776, %v774
        %v778 = vxor.u32 %v777, 2147483648
        %v779 = vsel %vm696, %v778, %v777
        %v780 = vsub.s32 4, %v756
        %v781 = vsel %vm696, %v780, %v756
        %v782 = vsel %vm695, %v575, %v779
        %v783 = vsel %vm695, 0, %v781
        %v784 = vcosq.f32.pop %v782
        %v785 = vsinq.f32.pop %v782
        %vm786 = vweird.f32 %v575
        %v787 = vadd.s32 %v783, 3
        %v788 = vand.u32 %v787, 3
        %vm789 = vcmp.lt.s32.totalorder %v788, 2
        %vm790 = vcmp.eq.s32.totalorder %v788, 0
        %v791 = vxor.u32 %v785, 2147483648
        %v792 = vsel %vm790, %v784, %v791
        %vm793 = vcmp.eq.s32.totalorder %v788, 2
        %v794 = vxor.u32 %v784, 2147483648
        %v795 = vsel %vm793, %v794, %v785
        %v796 = vsel %vm789, %v792, %v795
        %v797 = vsel %vm786, nan, %v796
        %v798 = vand.u32 2147483647, %v576
        %vm799 = vcmp.le.f32.partialorder %v798, 0.7853982
        %vm800 = vcmp.lt.s32.totalorder %v576, 0
        %v801 = vand.u32 %v576, 2139095040
        %v802 = vshrl.u32 %v801, 23
        %v803 = vsub.s32 %v802, 127
        %v804 = vand.u32 2147483647, %v576
        %v805 = vand.u32 %v804, 8388607
        %v806 = vor.u32 %v805, 8388608
        %v807 = vsub.s32 0, %v806
        %v808 = vadd.s32 %v803, 1
        %vm809 = vcmp.gt.s32.totalorder %v808, 0
        %v810 = vsel %vm809, %v808, 0
        %v811 = vshrl.u32 %v810, 5
        %v812 = vand.u32 %v810, 31
        %v813 = vsub.s32 32, %v812
        %v814 = vshrl.u32 683565275, %v813
        %v815 = vshll.u32 683565275, %v812
        %v816 = vshrl.u32 2475754826, %v813
        %v817 = vor.u32 %v815, %v816
        %v818 = vshll.u32 2475754826, %v812
        %v819 = vshrl.u32 2131351028, %v813
        %v820 = vor.u32 %v818, %v819
        %v821 = vshll.u32 2131351028, %v812
        %v822 = vshrl.u32 2102212464, %v813
        %v823 = vor.u32 %v821, %v822
        %v824 = vshll.u32 2102212464, %v812
        %v825 = vshrl.u32 920167782, %v813
        %v826 = vor.u32 %v824, %v825
        %v827 = vshll.u32 920167782, %v812
        %v828 = vshrl.u32 1326507024, %v813
        %v829 = vor.u32 %v827, %v828
        %vm830 = vcmp.lt.s32.totalorder %v811, 1
        %vm831 = vcmp.lt.s32.totalorder %v811, 2
        %vm832 = vcmp.lt.s32.totalorder %v811, 3
        %vm833 = vcmp.lt.s32.totalorder %v811, 4
        %v834 = vsel %vm830, %v814, %v817
        %v835 = vsel %vm833, %v823, 2102212464
        %v836 = vsel %vm832, %v820, %v835
        %v837 = vsel %vm831, %v834, %v836
        %v838 = vsel %vm830, %v817, %v820
        %v839 = vsel %vm833, %v826, 920167782
        %v840 = vsel %vm832, %v823, %v839
        %v841 = vsel %vm831, %v838, %v840
        %v842 = vsel %vm830, %v820, %v823
        %v843 = vsel %vm833, %v829, 1326507024
        %v844 = vsel %vm832, %v826, %v843
        %v845 = vsel %vm831, %v842, %v844
        %v846 = vshll.u32 %v806, 8
        %v847 = vmul.u32.u64.compose %v846, %v845
        %v848 = vextract.low.u32 %v847
        %v849 = vextract.high.u32 %v847
        %v850 = vmul.u32.u64.compose %v846, %v841
        %v851 = vextract.low.u32 %v850
        %v852 = vextract.high.u32 %v850
        %v853 = vmul.u32 %v846, %v837
        %v854 = vadd.s32 %v849, %v851
        %vm855 = vc.u32 %v849, %v851
        %v856 = vadd.s32 %v852, 1
        %v857 = vsel %vm855, %v856, %v852
        %v858 = vadd.s32 %v853, %v857
        %v859 = vadd.s32 %v858, 536870912
        %v860 = vshrl.u32 %v859, 30
        %v861 = vshll.u32 %v860, 30
        %v862 = vsub.s32 %v858, %v861
        %vm863 = vcmp.lt.s32.totalorder %v862, 0
        %v864 = vsub.s32 0, %v862
        %v865 = vsel %vm863, %v864, %v862
        %v866 = vclz %v865
        %v867 = vsub.s32 %v866, 2
        %vm868 = vcmp.gt.s32.totalorder 0, %v867
        %v869 = vsel %vm868, 0, %v867
        %v870 = vsub.s32 32, %v869
        %v871 = vshll.u32 %v862, %v869
        %v872 = vshrl.u32 %v854, %v870
        %v873 = vor.u32 %v871, %v872
        %v874 = vsub.s32 4294967266, %v869
        %v875 = vadd.s32 %v874, 127
        %v876 = vshll.u32 %v875, 23
        %v877 = vor.u32 4788187, %v876
        %v878 = vand.u32 2147483647, %v877
        %v880 = vcvt.s32.f32 %v873
        %v881 = vmul.f32 %v880, %v878
        %v882 = vxor.u32 %v881, 2147483648
        %v883 = vsel %vm800, %v882, %v881
        %v884 = vsub.s32 4, %v860
        %v885 = vsel %vm800, %v884, %v860
        %v886 = vsel %vm799, %v576, %v883
        %v887 = vsel %vm799, 0, %v885
        %v888 = vcosq.f32.pop %v886
        %v889 = vsinq.f32.pop %v886
        %vm890 = vweird.f32 %v576
        %v891 = vadd.s32 %v887, 3
        %v892 = vand.u32 %v891, 3
        %vm893 = vcmp.lt.s32.totalorder %v892, 2
        %vm894 = vcmp.eq.s32.totalorder %v892, 0
        %v895 = vxor.u32 %v889, 2147483648
        %v896 = vsel %vm894, %v888, %v895
        %vm897 = vcmp.eq.s32.totalorder %v892, 2
        %v898 = vxor.u32 %v888, 2147483648
        %v899 = vsel %vm897, %v898, %v889
        %v900 = vsel %vm893, %v896, %v899
        %v901 = vsel %vm890, nan, %v900
        %v902 = vand.u32 2147483647, %v577
        %vm903 = vcmp.le.f32.partialorder %v902, 0.7853982
        %vm904 = vcmp.lt.s32.totalorder %v577, 0
        %v905 = vand.u32 %v577, 2139095040
        %v906 = vshrl.u32 %v905, 23
        %v907 = vsub.s32 %v906, 127
        %v908 = vand.u32 2147483647, %v577
        %v909 = vand.u32 %v908, 8388607
        %v910 = vor.u32 %v909, 8388608
        %v911 = vsub.s32 0, %v910
        %v912 = vadd.s32 %v907, 1
        %vm913 = vcmp.gt.s32.totalorder %v912, 0
        %v914 = vsel %vm913, %v912, 0
        %v915 = vshrl.u32 %v914, 5
        %v916 = vand.u32 %v914, 31
        %v917 = vsub.s32 32, %v916
        %v918 = vshrl.u32 683565275, %v917
        %v919 = vshll.u32 683565275, %v916
        %v920 = vshrl.u32 2475754826, %v917
        %v921 = vor.u32 %v919, %v920
        %v922 = vshll.u32 2475754826, %v916
        %v923 = vshrl.u32 2131351028, %v917
        %v924 = vor.u32 %v922, %v923
        %v925 = vshll.u32 2131351028, %v916
        %v926 = vshrl.u32 2102212464, %v917
        %v927 = vor.u32 %v925, %v926
        %v928 = vshll.u32 2102212464, %v916
        %v929 = vshrl.u32 920167782, %v917
        %v930 = vor.u32 %v928, %v929
        %v931 = vshll.u32 920167782, %v916
        %v932 = vshrl.u32 1326507024, %v917
        %v933 = vor.u32 %v931, %v932
        %vm934 = vcmp.lt.s32.totalorder %v915, 1
        %vm935 = vcmp.lt.s32.totalorder %v915, 2
        %vm936 = vcmp.lt.s32.totalorder %v915, 3
        %vm937 = vcmp.lt.s32.totalorder %v915, 4
        %v938 = vsel %vm934, %v918, %v921
        %v939 = vsel %vm937, %v927, 2102212464
        %v940 = vsel %vm936, %v924, %v939
        %v941 = vsel %vm935, %v938, %v940
        %v942 = vsel %vm934, %v921, %v924
        %v943 = vsel %vm937, %v930, 920167782
        %v944 = vsel %vm936, %v927, %v943
        %v945 = vsel %vm935, %v942, %v944
        %v946 = vsel %vm934, %v924, %v927
        %v947 = vsel %vm937, %v933, 1326507024
        %v948 = vsel %vm936, %v930, %v947
        %v949 = vsel %vm935, %v946, %v948
        %v950 = vshll.u32 %v910, 8
        %v951 = vmul.u32.u64.compose %v950, %v949
        %v952 = vextract.low.u32 %v951
        %v953 = vextract.high.u32 %v951
        %v954 = vmul.u32.u64.compose %v950, %v945
        %v955 = vextract.low.u32 %v954
        %v956 = vextract.high.u32 %v954
        %v957 = vmul.u32 %v950, %v941
        %v958 = vadd.s32 %v953, %v955
        %vm959 = vc.u32 %v953, %v955
        %v960 = vadd.s32 %v956, 1
        %v961 = vsel %vm959, %v960, %v956
        %v962 = vadd.s32 %v957, %v961
        %v963 = vadd.s32 %v962, 536870912
        %v964 = vshrl.u32 %v963, 30
        %v965 = vshll.u32 %v964, 30
        %v966 = vsub.s32 %v962, %v965
        %vm967 = vcmp.lt.s32.totalorder %v966, 0
        %v968 = vsub.s32 0, %v966
        %v969 = vsel %vm967, %v968, %v966
        %v970 = vclz %v969
        %v971 = vsub.s32 %v970, 2
        %vm972 = vcmp.gt.s32.totalorder 0, %v971
        %v973 = vsel %vm972, 0, %v971
        %v974 = vsub.s32 32, %v973
        %v975 = vshll.u32 %v966, %v973
        %v976 = vshrl.u32 %v958, %v974
        %v977 = vor.u32 %v975, %v976
        %v978 = vsub.s32 4294967266, %v973
        %v979 = vadd.s32 %v978, 127
        %v980 = vshll.u32 %v979, 23
        %v981 = vor.u32 4788187, %v980
        %v982 = vand.u32 2147483647, %v981
        %v984 = vcvt.s32.f32 %v977
        %v985 = vmul.f32 %v984, %v982
        %v986 = vxor.u32 %v985, 2147483648
        %v987 = vsel %vm904, %v986, %v985
        %v988 = vsub.s32 4, %v964
        %v989 = vsel %vm904, %v988, %v964
        %v990 = vsel %vm903, %v577, %v987
        %v991 = vsel %vm903, 0, %v989
        %v992 = vcosq.f32.pop %v990
        %v993 = vsinq.f32.pop %v990
        %vm994 = vweird.f32 %v577
        %v995 = vadd.s32 %v991, 3
        %v996 = vand.u32 %v995, 3
        %vm997 = vcmp.lt.s32.totalorder %v996, 2
        %vm998 = vcmp.eq.s32.totalorder %v996, 0
        %v999 = vxor.u32 %v993, 2147483648
        %v1000 = vsel %vm998, %v992, %v999
        %vm1001 = vcmp.eq.s32.totalorder %v996, 2
        %v1002 = vxor.u32 %v992, 2147483648
        %v1003 = vsel %vm1001, %v1002, %v993
        %v1004 = vsel %vm997, %v1000, %v1003
        %v1005 = vsel %vm994, nan, %v1004
        %v1006 = vand.u32 2147483647, %v578
        %vm1007 = vcmp.le.f32.partialorder %v1006, 0.7853982
        %vm1008 = vcmp.lt.s32.totalorder %v578, 0
        %v1009 = vand.u32 %v578, 2139095040
        %v1010 = vshrl.u32 %v1009, 23
        %v1011 = vsub.s32 %v1010, 127
        %v1012 = vand.u32 2147483647, %v578
        %v1013 = vand.u32 %v1012, 8388607
        %v1014 = vor.u32 %v1013, 8388608
        %v1015 = vsub.s32 0, %v1014
        %v1016 = vadd.s32 %v1011, 1
        %vm1017 = vcmp.gt.s32.totalorder %v1016, 0
        %v1018 = vsel %vm1017, %v1016, 0
        %v1019 = vshrl.u32 %v1018, 5
        %v1020 = vand.u32 %v1018, 31
        %v1021 = vsub.s32 32, %v1020
        %v1022 = vshrl.u32 683565275, %v1021
        %v1023 = vshll.u32 683565275, %v1020
        %v1024 = vshrl.u32 2475754826, %v1021
        %v1025 = vor.u32 %v1023, %v1024
        %v1026 = vshll.u32 2475754826, %v1020
        %v1027 = vshrl.u32 2131351028, %v1021
        %v1028 = vor.u32 %v1026, %v1027
        %v1029 = vshll.u32 2131351028, %v1020
        %v1030 = vshrl.u32 2102212464, %v1021
        %v1031 = vor.u32 %v1029, %v1030
        %v1032 = vshll.u32 2102212464, %v1020
        %v1033 = vshrl.u32 920167782, %v1021
        %v1034 = vor.u32 %v1032, %v1033
        %v1035 = vshll.u32 920167782, %v1020
        %v1036 = vshrl.u32 1326507024, %v1021
        %v1037 = vor.u32 %v1035, %v1036
        %vm1038 = vcmp.lt.s32.totalorder %v1019, 1
        %vm1039 = vcmp.lt.s32.totalorder %v1019, 2
        %vm1040 = vcmp.lt.s32.totalorder %v1019, 3
        %vm1041 = vcmp.lt.s32.totalorder %v1019, 4
        %v1042 = vsel %vm1038, %v1022, %v1025
        %v1043 = vsel %vm1041, %v1031, 2102212464
        %v1044 = vsel %vm1040, %v1028, %v1043
        %v1045 = vsel %vm1039, %v1042, %v1044
        %v1046 = vsel %vm1038, %v1025, %v1028
        %v1047 = vsel %vm1041, %v1034, 920167782
        %v1048 = vsel %vm1040, %v1031, %v1047
        %v1049 = vsel %vm1039, %v1046, %v1048
        %v1050 = vsel %vm1038, %v1028, %v1031
        %v1051 = vsel %vm1041, %v1037, 1326507024
        %v1052 = vsel %vm1040, %v1034, %v1051
        %v1053 = vsel %vm1039, %v1050, %v1052
        %v1054 = vshll.u32 %v1014, 8
        %v1055 = vmul.u32.u64.compose %v1054, %v1053
        %v1056 = vextract.low.u32 %v1055
        %v1057 = vextract.high.u32 %v1055
        %v1058 = vmul.u32.u64.compose %v1054, %v1049
        %v1059 = vextract.low.u32 %v1058
        %v1060 = vextract.high.u32 %v1058
        %v1061 = vmul.u32 %v1054, %v1045
        %v1062 = vadd.s32 %v1057, %v1059
        %vm1063 = vc.u32 %v1057, %v1059
        %v1064 = vadd.s32 %v1060, 1
        %v1065 = vsel %vm1063, %v1064, %v1060
        %v1066 = vadd.s32 %v1061, %v1065
        %v1067 = vadd.s32 %v1066, 536870912
        %v1068 = vshrl.u32 %v1067, 30
        %v1069 = vshll.u32 %v1068, 30
        %v1070 = vsub.s32 %v1066, %v1069
        %vm1071 = vcmp.lt.s32.totalorder %v1070, 0
        %v1072 = vsub.s32 0, %v1070
        %v1073 = vsel %vm1071, %v1072, %v1070
        %v1074 = vclz %v1073
        %v1075 = vsub.s32 %v1074, 2
        %vm1076 = vcmp.gt.s32.totalorder 0, %v1075
        %v1077 = vsel %vm1076, 0, %v1075
        %v1078 = vsub.s32 32, %v1077
        %v1079 = vshll.u32 %v1070, %v1077
        %v1080 = vshrl.u32 %v1062, %v1078
        %v1081 = vor.u32 %v1079, %v1080
        %v1082 = vsub.s32 4294967266, %v1077
        %v1083 = vadd.s32 %v1082, 127
        %v1084 = vshll.u32 %v1083, 23
        %v1085 = vor.u32 4788187, %v1084
        %v1086 = vand.u32 2147483647, %v1085
        %v1088 = vcvt.s32.f32 %v1081
        %v1089 = vmul.f32 %v1088, %v1086
        %v1090 = vxor.u32 %v1089, 2147483648
        %v1091 = vsel %vm1008, %v1090, %v1089
        %v1092 = vsub.s32 4, %v1068
        %v1093 = vsel %vm1008, %v1092, %v1068
        %v1094 = vsel %vm1007, %v578, %v1091
        %v1095 = vsel %vm1007, 0, %v1093
        %v1096 = vcosq.f32.pop %v1094
        %v1097 = vsinq.f32.pop %v1094
        %vm1098 = vweird.f32 %v578
        %v1099 = vadd.s32 %v1095, 3
        %v1100 = vand.u32 %v1099, 3
        %vm1101 = vcmp.lt.s32.totalorder %v1100, 2
        %vm1102 = vcmp.eq.s32.totalorder %v1100, 0
        %v1103 = vxor.u32 %v1097, 2147483648
        %v1104 = vsel %vm1102, %v1096, %v1103
        %vm1105 = vcmp.eq.s32.totalorder %v1100, 2
        %v1106 = vxor.u32 %v1096, 2147483648
        %v1107 = vsel %vm1105, %v1106, %v1097
        %v1108 = vsel %vm1101, %v1104, %v1107
        %v1109 = vsel %vm1098, nan, %v1108
        %v1110 = vand.u32 2147483647, %v579
        %vm1111 = vcmp.le.f32.partialorder %v1110, 0.7853982
        %vm1112 = vcmp.lt.s32.totalorder %v579, 0
        %v1113 = vand.u32 %v579, 2139095040
        %v1114 = vshrl.u32 %v1113, 23
        %v1115 = vsub.s32 %v1114, 127
        %v1116 = vand.u32 2147483647, %v579
        %v1117 = vand.u32 %v1116, 8388607
        %v1118 = vor.u32 %v1117, 8388608
        %v1119 = vsub.s32 0, %v1118
        %v1120 = vadd.s32 %v1115, 1
        %vm1121 = vcmp.gt.s32.totalorder %v1120, 0
        %v1122 = vsel %vm1121, %v1120, 0
        %v1123 = vshrl.u32 %v1122, 5
        %v1124 = vand.u32 %v1122, 31
        %v1125 = vsub.s32 32, %v1124
        %v1126 = vshrl.u32 683565275, %v1125
        %v1127 = vshll.u32 683565275, %v1124
        %v1128 = vshrl.u32 2475754826, %v1125
        %v1129 = vor.u32 %v1127, %v1128
        %v1130 = vshll.u32 2475754826, %v1124
        %v1131 = vshrl.u32 2131351028, %v1125
        %v1132 = vor.u32 %v1130, %v1131
        %v1133 = vshll.u32 2131351028, %v1124
        %v1134 = vshrl.u32 2102212464, %v1125
        %v1135 = vor.u32 %v1133, %v1134
        %v1136 = vshll.u32 2102212464, %v1124
        %v1137 = vshrl.u32 920167782, %v1125
        %v1138 = vor.u32 %v1136, %v1137
        %v1139 = vshll.u32 920167782, %v1124
        %v1140 = vshrl.u32 1326507024, %v1125
        %v1141 = vor.u32 %v1139, %v1140
        %vm1142 = vcmp.lt.s32.totalorder %v1123, 1
        %vm1143 = vcmp.lt.s32.totalorder %v1123, 2
        %vm1144 = vcmp.lt.s32.totalorder %v1123, 3
        %vm1145 = vcmp.lt.s32.totalorder %v1123, 4
        %v1146 = vsel %vm1142, %v1126, %v1129
        %v1147 = vsel %vm1145, %v1135, 2102212464
        %v1148 = vsel %vm1144, %v1132, %v1147
        %v1149 = vsel %vm1143, %v1146, %v1148
        %v1150 = vsel %vm1142, %v1129, %v1132
        %v1151 = vsel %vm1145, %v1138, 920167782
        %v1152 = vsel %vm1144, %v1135, %v1151
        %v1153 = vsel %vm1143, %v1150, %v1152
        %v1154 = vsel %vm1142, %v1132, %v1135
        %v1155 = vsel %vm1145, %v1141, 1326507024
        %v1156 = vsel %vm1144, %v1138, %v1155
        %v1157 = vsel %vm1143, %v1154, %v1156
        %v1158 = vshll.u32 %v1118, 8
        %v1159 = vmul.u32.u64.compose %v1158, %v1157
        %v1160 = vextract.low.u32 %v1159
        %v1161 = vextract.high.u32 %v1159
        %v1162 = vmul.u32.u64.compose %v1158, %v1153
        %v1163 = vextract.low.u32 %v1162
        %v1164 = vextract.high.u32 %v1162
        %v1165 = vmul.u32 %v1158, %v1149
        %v1166 = vadd.s32 %v1161, %v1163
        %vm1167 = vc.u32 %v1161, %v1163
        %v1168 = vadd.s32 %v1164, 1
        %v1169 = vsel %vm1167, %v1168, %v1164
        %v1170 = vadd.s32 %v1165, %v1169
        %v1171 = vadd.s32 %v1170, 536870912
        %v1172 = vshrl.u32 %v1171, 30
        %v1173 = vshll.u32 %v1172, 30
        %v1174 = vsub.s32 %v1170, %v1173
        %vm1175 = vcmp.lt.s32.totalorder %v1174, 0
        %v1176 = vsub.s32 0, %v1174
        %v1177 = vsel %vm1175, %v1176, %v1174
        %v1178 = vclz %v1177
        %v1179 = vsub.s32 %v1178, 2
        %vm1180 = vcmp.gt.s32.totalorder 0, %v1179
        %v1181 = vsel %vm1180, 0, %v1179
        %v1182 = vsub.s32 32, %v1181
        %v1183 = vshll.u32 %v1174, %v1181
        %v1184 = vshrl.u32 %v1166, %v1182
        %v1185 = vor.u32 %v1183, %v1184
        %v1186 = vsub.s32 4294967266, %v1181
        %v1187 = vadd.s32 %v1186, 127
        %v1188 = vshll.u32 %v1187, 23
        %v1189 = vor.u32 4788187, %v1188
        %v1190 = vand.u32 2147483647, %v1189
        %v1192 = vcvt.s32.f32 %v1185
        %v1193 = vmul.f32 %v1192, %v1190
        %v1194 = vxor.u32 %v1193, 2147483648
        %v1195 = vsel %vm1112, %v1194, %v1193
        %v1196 = vsub.s32 4, %v1172
        %v1197 = vsel %vm1112, %v1196, %v1172
        %v1198 = vsel %vm1111, %v579, %v1195
        %v1199 = vsel %vm1111, 0, %v1197
        %v1200 = vcosq.f32.pop %v1198
        %v1201 = vsinq.f32.pop %v1198
        %vm1202 = vweird.f32 %v579
        %v1203 = vadd.s32 %v1199, 3
        %v1204 = vand.u32 %v1203, 3
        %vm1205 = vcmp.lt.s32.totalorder %v1204, 2
        %vm1206 = vcmp.eq.s32.totalorder %v1204, 0
        %v1207 = vxor.u32 %v1201, 2147483648
        %v1208 = vsel %vm1206, %v1200, %v1207
        %vm1209 = vcmp.eq.s32.totalorder %v1204, 2
        %v1210 = vxor.u32 %v1200, 2147483648
        %v1211 = vsel %vm1209, %v1210, %v1201
        %v1212 = vsel %vm1205, %v1208, %v1211
        %v1213 = vsel %vm1202, nan, %v1212
        %v1214 = vand.u32 2147483647, %v580
        %vm1215 = vcmp.le.f32.partialorder %v1214, 0.7853982
        %vm1216 = vcmp.lt.s32.totalorder %v580, 0
        %v1217 = vand.u32 %v580, 2139095040
        %v1218 = vshrl.u32 %v1217, 23
        %v1219 = vsub.s32 %v1218, 127
        %v1220 = vand.u32 2147483647, %v580
        %v1221 = vand.u32 %v1220, 8388607
        %v1222 = vor.u32 %v1221, 8388608
        %v1223 = vsub.s32 0, %v1222
        %v1224 = vadd.s32 %v1219, 1
        %vm1225 = vcmp.gt.s32.totalorder %v1224, 0
        %v1226 = vsel %vm1225, %v1224, 0
        %v1227 = vshrl.u32 %v1226, 5
        %v1228 = vand.u32 %v1226, 31
        %v1229 = vsub.s32 32, %v1228
        %v1230 = vshrl.u32 683565275, %v1229
        %v1231 = vshll.u32 683565275, %v1228
        %v1232 = vshrl.u32 2475754826, %v1229
        %v1233 = vor.u32 %v1231, %v1232
        %v1234 = vshll.u32 2475754826, %v1228
        %v1235 = vshrl.u32 2131351028, %v1229
        %v1236 = vor.u32 %v1234, %v1235
        %v1237 = vshll.u32 2131351028, %v1228
        %v1238 = vshrl.u32 2102212464, %v1229
        %v1239 = vor.u32 %v1237, %v1238
        %v1240 = vshll.u32 2102212464, %v1228
        %v1241 = vshrl.u32 920167782, %v1229
        %v1242 = vor.u32 %v1240, %v1241
        %v1243 = vshll.u32 920167782, %v1228
        %v1244 = vshrl.u32 1326507024, %v1229
        %v1245 = vor.u32 %v1243, %v1244
        %vm1246 = vcmp.lt.s32.totalorder %v1227, 1
        %vm1247 = vcmp.lt.s32.totalorder %v1227, 2
        %vm1248 = vcmp.lt.s32.totalorder %v1227, 3
        %vm1249 = vcmp.lt.s32.totalorder %v1227, 4
        %v1250 = vsel %vm1246, %v1230, %v1233
        %v1251 = vsel %vm1249, %v1239, 2102212464
        %v1252 = vsel %vm1248, %v1236, %v1251
        %v1253 = vsel %vm1247, %v1250, %v1252
        %v1254 = vsel %vm1246, %v1233, %v1236
        %v1255 = vsel %vm1249, %v1242, 920167782
        %v1256 = vsel %vm1248, %v1239, %v1255
        %v1257 = vsel %vm1247, %v1254, %v1256
        %v1258 = vsel %vm1246, %v1236, %v1239
        %v1259 = vsel %vm1249, %v1245, 1326507024
        %v1260 = vsel %vm1248, %v1242, %v1259
        %v1261 = vsel %vm1247, %v1258, %v1260
        %v1262 = vshll.u32 %v1222, 8
        %v1263 = vmul.u32.u64.compose %v1262, %v1261
        %v1264 = vextract.low.u32 %v1263
        %v1265 = vextract.high.u32 %v1263
        %v1266 = vmul.u32.u64.compose %v1262, %v1257
        %v1267 = vextract.low.u32 %v1266
        %v1268 = vextract.high.u32 %v1266
        %v1269 = vmul.u32 %v1262, %v1253
        %v1270 = vadd.s32 %v1265, %v1267
        %vm1271 = vc.u32 %v1265, %v1267
        %v1272 = vadd.s32 %v1268, 1
        %v1273 = vsel %vm1271, %v1272, %v1268
        %v1274 = vadd.s32 %v1269, %v1273
        %v1275 = vadd.s32 %v1274, 536870912
        %v1276 = vshrl.u32 %v1275, 30
        %v1277 = vshll.u32 %v1276, 30
        %v1278 = vsub.s32 %v1274, %v1277
        %vm1279 = vcmp.lt.s32.totalorder %v1278, 0
        %v1280 = vsub.s32 0, %v1278
        %v1281 = vsel %vm1279, %v1280, %v1278
        %v1282 = vclz %v1281
        %v1283 = vsub.s32 %v1282, 2
        %vm1284 = vcmp.gt.s32.totalorder 0, %v1283
        %v1285 = vsel %vm1284, 0, %v1283
        %v1286 = vsub.s32 32, %v1285
        %v1287 = vshll.u32 %v1278, %v1285
        %v1288 = vshrl.u32 %v1270, %v1286
        %v1289 = vor.u32 %v1287, %v1288
        %v1290 = vsub.s32 4294967266, %v1285
        %v1291 = vadd.s32 %v1290, 127
        %v1292 = vshll.u32 %v1291, 23
        %v1293 = vor.u32 4788187, %v1292
        %v1294 = vand.u32 2147483647, %v1293
        %v1296 = vcvt.s32.f32 %v1289
        %v1297 = vmul.f32 %v1296, %v1294
        %v1298 = vxor.u32 %v1297, 2147483648
        %v1299 = vsel %vm1216, %v1298, %v1297
        %v1300 = vsub.s32 4, %v1276
        %v1301 = vsel %vm1216, %v1300, %v1276
        %v1302 = vsel %vm1215, %v580, %v1299
        %v1303 = vsel %vm1215, 0, %v1301
        %v1304 = vcosq.f32.pop %v1302
        %v1305 = vsinq.f32.pop %v1302
        %vm1306 = vweird.f32 %v580
        %v1307 = vadd.s32 %v1303, 3
        %v1308 = vand.u32 %v1307, 3
        %vm1309 = vcmp.lt.s32.totalorder %v1308, 2
        %vm1310 = vcmp.eq.s32.totalorder %v1308, 0
        %v1311 = vxor.u32 %v1305, 2147483648
        %v1312 = vsel %vm1310, %v1304, %v1311
        %vm1313 = vcmp.eq.s32.totalorder %v1308, 2
        %v1314 = vxor.u32 %v1304, 2147483648
        %v1315 = vsel %vm1313, %v1314, %v1305
        %v1316 = vsel %vm1309, %v1312, %v1315
        %v1317 = vsel %vm1306, nan, %v1316
        %v1318 = vand.u32 2147483647, %v581
        %vm1319 = vcmp.le.f32.partialorder %v1318, 0.7853982
        %vm1320 = vcmp.lt.s32.totalorder %v581, 0
        %v1321 = vand.u32 %v581, 2139095040
        %v1322 = vshrl.u32 %v1321, 23
        %v1323 = vsub.s32 %v1322, 127
        %v1324 = vand.u32 2147483647, %v581
        %v1325 = vand.u32 %v1324, 8388607
        %v1326 = vor.u32 %v1325, 8388608
        %v1327 = vsub.s32 0, %v1326
        %v1328 = vadd.s32 %v1323, 1
        %vm1329 = vcmp.gt.s32.totalorder %v1328, 0
        %v1330 = vsel %vm1329, %v1328, 0
        %v1331 = vshrl.u32 %v1330, 5
        %v1332 = vand.u32 %v1330, 31
        %v1333 = vsub.s32 32, %v1332
        %v1334 = vshrl.u32 683565275, %v1333
        %v1335 = vshll.u32 683565275, %v1332
        %v1336 = vshrl.u32 2475754826, %v1333
        %v1337 = vor.u32 %v1335, %v1336
        %v1338 = vshll.u32 2475754826, %v1332
        %v1339 = vshrl.u32 2131351028, %v1333
        %v1340 = vor.u32 %v1338, %v1339
        %v1341 = vshll.u32 2131351028, %v1332
        %v1342 = vshrl.u32 2102212464, %v1333
        %v1343 = vor.u32 %v1341, %v1342
        %v1344 = vshll.u32 2102212464, %v1332
        %v1345 = vshrl.u32 920167782, %v1333
        %v1346 = vor.u32 %v1344, %v1345
        %v1347 = vshll.u32 920167782, %v1332
        %v1348 = vshrl.u32 1326507024, %v1333
        %v1349 = vor.u32 %v1347, %v1348
        %vm1350 = vcmp.lt.s32.totalorder %v1331, 1
        %vm1351 = vcmp.lt.s32.totalorder %v1331, 2
        %vm1352 = vcmp.lt.s32.totalorder %v1331, 3
        %vm1353 = vcmp.lt.s32.totalorder %v1331, 4
        %v1354 = vsel %vm1350, %v1334, %v1337
        %v1355 = vsel %vm1353, %v1343, 2102212464
        %v1356 = vsel %vm1352, %v1340, %v1355
        %v1357 = vsel %vm1351, %v1354, %v1356
        %v1358 = vsel %vm1350, %v1337, %v1340
        %v1359 = vsel %vm1353, %v1346, 920167782
        %v1360 = vsel %vm1352, %v1343, %v1359
        %v1361 = vsel %vm1351, %v1358, %v1360
        %v1362 = vsel %vm1350, %v1340, %v1343
        %v1363 = vsel %vm1353, %v1349, 1326507024
        %v1364 = vsel %vm1352, %v1346, %v1363
        %v1365 = vsel %vm1351, %v1362, %v1364
        %v1366 = vshll.u32 %v1326, 8
        %v1367 = vmul.u32.u64.compose %v1366, %v1365
        %v1368 = vextract.low.u32 %v1367
        %v1369 = vextract.high.u32 %v1367
        %v1370 = vmul.u32.u64.compose %v1366, %v1361
        %v1371 = vextract.low.u32 %v1370
        %v1372 = vextract.high.u32 %v1370
        %v1373 = vmul.u32 %v1366, %v1357
        %v1374 = vadd.s32 %v1369, %v1371
        %vm1375 = vc.u32 %v1369, %v1371
        %v1376 = vadd.s32 %v1372, 1
        %v1377 = vsel %vm1375, %v1376, %v1372
        %v1378 = vadd.s32 %v1373, %v1377
        %v1379 = vadd.s32 %v1378, 536870912
        %v1380 = vshrl.u32 %v1379, 30
        %v1381 = vshll.u32 %v1380, 30
        %v1382 = vsub.s32 %v1378, %v1381
        %vm1383 = vcmp.lt.s32.totalorder %v1382, 0
        %v1384 = vsub.s32 0, %v1382
        %v1385 = vsel %vm1383, %v1384, %v1382
        %v1386 = vclz %v1385
        %v1387 = vsub.s32 %v1386, 2
        %vm1388 = vcmp.gt.s32.totalorder 0, %v1387
        %v1389 = vsel %vm1388, 0, %v1387
        %v1390 = vsub.s32 32, %v1389
        %v1391 = vshll.u32 %v1382, %v1389
        %v1392 = vshrl.u32 %v1374, %v1390
        %v1393 = vor.u32 %v1391, %v1392
        %v1394 = vsub.s32 4294967266, %v1389
        %v1395 = vadd.s32 %v1394, 127
        %v1396 = vshll.u32 %v1395, 23
        %v1397 = vor.u32 4788187, %v1396
        %v1398 = vand.u32 2147483647, %v1397
        %v1400 = vcvt.s32.f32 %v1393
        %v1401 = vmul.f32 %v1400, %v1398
        %v1402 = vxor.u32 %v1401, 2147483648
        %v1403 = vsel %vm1320, %v1402, %v1401
        %v1404 = vsub.s32 4, %v1380
        %v1405 = vsel %vm1320, %v1404, %v1380
        %v1406 = vsel %vm1319, %v581, %v1403
        %v1407 = vsel %vm1319, 0, %v1405
        %v1408 = vcosq.f32.pop %v1406
        %v1409 = vsinq.f32.pop %v1406
        %vm1410 = vweird.f32 %v581
        %v1411 = vadd.s32 %v1407, 3
        %v1412 = vand.u32 %v1411, 3
        %vm1413 = vcmp.lt.s32.totalorder %v1412, 2
        %vm1414 = vcmp.eq.s32.totalorder %v1412, 0
        %v1415 = vxor.u32 %v1409, 2147483648
        %v1416 = vsel %vm1414, %v1408, %v1415
        %vm1417 = vcmp.eq.s32.totalorder %v1412, 2
        %v1418 = vxor.u32 %v1408, 2147483648
        %v1419 = vsel %vm1417, %v1418, %v1409
        %v1420 = vsel %vm1413, %v1416, %v1419
        %v1421 = vsel %vm1410, nan, %v1420
        %v1422 = vand.u32 2147483647, %v582
        %vm1423 = vcmp.le.f32.partialorder %v1422, 0.7853982
        %vm1424 = vcmp.lt.s32.totalorder %v582, 0
        %v1425 = vand.u32 %v582, 2139095040
        %v1426 = vshrl.u32 %v1425, 23
        %v1427 = vsub.s32 %v1426, 127
        %v1428 = vand.u32 2147483647, %v582
        %v1429 = vand.u32 %v1428, 8388607
        %v1430 = vor.u32 %v1429, 8388608
        %v1431 = vsub.s32 0, %v1430
        %v1432 = vadd.s32 %v1427, 1
        %vm1433 = vcmp.gt.s32.totalorder %v1432, 0
        %v1434 = vsel %vm1433, %v1432, 0
        %v1435 = vshrl.u32 %v1434, 5
        %v1436 = vand.u32 %v1434, 31
        %v1437 = vsub.s32 32, %v1436
        %v1438 = vshrl.u32 683565275, %v1437
        %v1439 = vshll.u32 683565275, %v1436
        %v1440 = vshrl.u32 2475754826, %v1437
        %v1441 = vor.u32 %v1439, %v1440
        %v1442 = vshll.u32 2475754826, %v1436
        %v1443 = vshrl.u32 2131351028, %v1437
        %v1444 = vor.u32 %v1442, %v1443
        %v1445 = vshll.u32 2131351028, %v1436
        %v1446 = vshrl.u32 2102212464, %v1437
        %v1447 = vor.u32 %v1445, %v1446
        %v1448 = vshll.u32 2102212464, %v1436
        %v1449 = vshrl.u32 920167782, %v1437
        %v1450 = vor.u32 %v1448, %v1449
        %v1451 = vshll.u32 920167782, %v1436
        %v1452 = vshrl.u32 1326507024, %v1437
        %v1453 = vor.u32 %v1451, %v1452
        %vm1454 = vcmp.lt.s32.totalorder %v1435, 1
        %vm1455 = vcmp.lt.s32.totalorder %v1435, 2
        %vm1456 = vcmp.lt.s32.totalorder %v1435, 3
        %vm1457 = vcmp.lt.s32.totalorder %v1435, 4
        %v1458 = vsel %vm1454, %v1438, %v1441
        %v1459 = vsel %vm1457, %v1447, 2102212464
        %v1460 = vsel %vm1456, %v1444, %v1459
        %v1461 = vsel %vm1455, %v1458, %v1460
        %v1462 = vsel %vm1454, %v1441, %v1444
        %v1463 = vsel %vm1457, %v1450, 920167782
        %v1464 = vsel %vm1456, %v1447, %v1463
        %v1465 = vsel %vm1455, %v1462, %v1464
        %v1466 = vsel %vm1454, %v1444, %v1447
        %v1467 = vsel %vm1457, %v1453, 1326507024
        %v1468 = vsel %vm1456, %v1450, %v1467
        %v1469 = vsel %vm1455, %v1466, %v1468
        %v1470 = vshll.u32 %v1430, 8
        %v1471 = vmul.u32.u64.compose %v1470, %v1469
        %v1472 = vextract.low.u32 %v1471
        %v1473 = vextract.high.u32 %v1471
        %v1474 = vmul.u32.u64.compose %v1470, %v1465
        %v1475 = vextract.low.u32 %v1474
        %v1476 = vextract.high.u32 %v1474
        %v1477 = vmul.u32 %v1470, %v1461
        %v1478 = vadd.s32 %v1473, %v1475
        %vm1479 = vc.u32 %v1473, %v1475
        %v1480 = vadd.s32 %v1476, 1
        %v1481 = vsel %vm1479, %v1480, %v1476
        %v1482 = vadd.s32 %v1477, %v1481
        %v1483 = vadd.s32 %v1482, 536870912
        %v1484 = vshrl.u32 %v1483, 30
        %v1485 = vshll.u32 %v1484, 30
        %v1486 = vsub.s32 %v1482, %v1485
        %vm1487 = vcmp.lt.s32.totalorder %v1486, 0
        %v1488 = vsub.s32 0, %v1486
        %v1489 = vsel %vm1487, %v1488, %v1486
        %v1490 = vclz %v1489
        %v1491 = vsub.s32 %v1490, 2
        %vm1492 = vcmp.gt.s32.totalorder 0, %v1491
        %v1493 = vsel %vm1492, 0, %v1491
        %v1494 = vsub.s32 32, %v1493
        %v1495 = vshll.u32 %v1486, %v1493
        %v1496 = vshrl.u32 %v1478, %v1494
        %v1497 = vor.u32 %v1495, %v1496
        %v1498 = vsub.s32 4294967266, %v1493
        %v1499 = vadd.s32 %v1498, 127
        %v1500 = vshll.u32 %v1499, 23
        %v1501 = vor.u32 4788187, %v1500
        %v1502 = vand.u32 2147483647, %v1501
        %v1504 = vcvt.s32.f32 %v1497
        %v1505 = vmul.f32 %v1504, %v1502
        %v1506 = vxor.u32 %v1505, 2147483648
        %v1507 = vsel %vm1424, %v1506, %v1505
        %v1508 = vsub.s32 4, %v1484
        %v1509 = vsel %vm1424, %v1508, %v1484
        %v1510 = vsel %vm1423, %v582, %v1507
        %v1511 = vsel %vm1423, 0, %v1509
        %v1512 = vcosq.f32.pop %v1510
        %v1513 = vsinq.f32.pop %v1510
        %vm1514 = vweird.f32 %v582
        %v1515 = vadd.s32 %v1511, 3
        %v1516 = vand.u32 %v1515, 3
        %vm1517 = vcmp.lt.s32.totalorder %v1516, 2
        %vm1518 = vcmp.eq.s32.totalorder %v1516, 0
        %v1519 = vxor.u32 %v1513, 2147483648
        %v1520 = vsel %vm1518, %v1512, %v1519
        %vm1521 = vcmp.eq.s32.totalorder %v1516, 2
        %v1522 = vxor.u32 %v1512, 2147483648
        %v1523 = vsel %vm1521, %v1522, %v1513
        %v1524 = vsel %vm1517, %v1520, %v1523
        %v1525 = vsel %vm1514, nan, %v1524
        %v1526 = vand.u32 2147483647, %v583
        %vm1527 = vcmp.le.f32.partialorder %v1526, 0.7853982
        %vm1528 = vcmp.lt.s32.totalorder %v583, 0
        %v1529 = vand.u32 %v583, 2139095040
        %v1530 = vshrl.u32 %v1529, 23
        %v1531 = vsub.s32 %v1530, 127
        %v1532 = vand.u32 2147483647, %v583
        %v1533 = vand.u32 %v1532, 8388607
        %v1534 = vor.u32 %v1533, 8388608
        %v1535 = vsub.s32 0, %v1534
        %v1536 = vadd.s32 %v1531, 1
        %vm1537 = vcmp.gt.s32.totalorder %v1536, 0
        %v1538 = vsel %vm1537, %v1536, 0
        %v1539 = vshrl.u32 %v1538, 5
        %v1540 = vand.u32 %v1538, 31
        %v1541 = vsub.s32 32, %v1540
        %v1542 = vshrl.u32 683565275, %v1541
        %v1543 = vshll.u32 683565275, %v1540
        %v1544 = vshrl.u32 2475754826, %v1541
        %v1545 = vor.u32 %v1543, %v1544
        %v1546 = vshll.u32 2475754826, %v1540
        %v1547 = vshrl.u32 2131351028, %v1541
        %v1548 = vor.u32 %v1546, %v1547
        %v1549 = vshll.u32 2131351028, %v1540
        %v1550 = vshrl.u32 2102212464, %v1541
        %v1551 = vor.u32 %v1549, %v1550
        %v1552 = vshll.u32 2102212464, %v1540
        %v1553 = vshrl.u32 920167782, %v1541
        %v1554 = vor.u32 %v1552, %v1553
        %v1555 = vshll.u32 920167782, %v1540
        %v1556 = vshrl.u32 1326507024, %v1541
        %v1557 = vor.u32 %v1555, %v1556
        %vm1558 = vcmp.lt.s32.totalorder %v1539, 1
        %vm1559 = vcmp.lt.s32.totalorder %v1539, 2
        %vm1560 = vcmp.lt.s32.totalorder %v1539, 3
        %vm1561 = vcmp.lt.s32.totalorder %v1539, 4
        %v1562 = vsel %vm1558, %v1542, %v1545
        %v1563 = vsel %vm1561, %v1551, 2102212464
        %v1564 = vsel %vm1560, %v1548, %v1563
        %v1565 = vsel %vm1559, %v1562, %v1564
        %v1566 = vsel %vm1558, %v1545, %v1548
        %v1567 = vsel %vm1561, %v1554, 920167782
        %v1568 = vsel %vm1560, %v1551, %v1567
        %v1569 = vsel %vm1559, %v1566, %v1568
        %v1570 = vsel %vm1558, %v1548, %v1551
        %v1571 = vsel %vm1561, %v1557, 1326507024
        %v1572 = vsel %vm1560, %v1554, %v1571
        %v1573 = vsel %vm1559, %v1570, %v1572
        %v1574 = vshll.u32 %v1534, 8
        %v1575 = vmul.u32.u64.compose %v1574, %v1573
        %v1576 = vextract.low.u32 %v1575
        %v1577 = vextract.high.u32 %v1575
        %v1578 = vmul.u32.u64.compose %v1574, %v1569
        %v1579 = vextract.low.u32 %v1578
        %v1580 = vextract.high.u32 %v1578
        %v1581 = vmul.u32 %v1574, %v1565
        %v1582 = vadd.s32 %v1577, %v1579
        %vm1583 = vc.u32 %v1577, %v1579
        %v1584 = vadd.s32 %v1580, 1
        %v1585 = vsel %vm1583, %v1584, %v1580
        %v1586 = vadd.s32 %v1581, %v1585
        %v1587 = vadd.s32 %v1586, 536870912
        %v1588 = vshrl.u32 %v1587, 30
        %v1589 = vshll.u32 %v1588, 30
        %v1590 = vsub.s32 %v1586, %v1589
        %vm1591 = vcmp.lt.s32.totalorder %v1590, 0
        %v1592 = vsub.s32 0, %v1590
        %v1593 = vsel %vm1591, %v1592, %v1590
        %v1594 = vclz %v1593
        %v1595 = vsub.s32 %v1594, 2
        %vm1596 = vcmp.gt.s32.totalorder 0, %v1595
        %v1597 = vsel %vm1596, 0, %v1595
        %v1598 = vsub.s32 32, %v1597
        %v1599 = vshll.u32 %v1590, %v1597
        %v1600 = vshrl.u32 %v1582, %v1598
        %v1601 = vor.u32 %v1599, %v1600
        %v1602 = vsub.s32 4294967266, %v1597
        %v1603 = vadd.s32 %v1602, 127
        %v1604 = vshll.u32 %v1603, 23
        %v1605 = vor.u32 4788187, %v1604
        %v1606 = vand.u32 2147483647, %v1605
        %v1608 = vcvt.s32.f32 %v1601
        %v1609 = vmul.f32 %v1608, %v1606
        %v1610 = vxor.u32 %v1609, 2147483648
        %v1611 = vsel %vm1528, %v1610, %v1609
        %v1612 = vsub.s32 4, %v1588
        %v1613 = vsel %vm1528, %v1612, %v1588
        %v1614 = vsel %vm1527, %v583, %v1611
        %v1615 = vsel %vm1527, 0, %v1613
        %v1616 = vcosq.f32.pop %v1614
        %v1617 = vsinq.f32.pop %v1614
        %vm1618 = vweird.f32 %v583
        %v1619 = vadd.s32 %v1615, 3
        %v1620 = vand.u32 %v1619, 3
        %vm1621 = vcmp.lt.s32.totalorder %v1620, 2
        %vm1622 = vcmp.eq.s32.totalorder %v1620, 0
        %v1623 = vxor.u32 %v1617, 2147483648
        %v1624 = vsel %vm1622, %v1616, %v1623
        %vm1625 = vcmp.eq.s32.totalorder %v1620, 2
        %v1626 = vxor.u32 %v1616, 2147483648
        %v1627 = vsel %vm1625, %v1626, %v1617
        %v1628 = vsel %vm1621, %v1624, %v1627
        %v1629 = vsel %vm1618, nan, %v1628
        %v1630 = vand.u32 2147483647, %v584
        %vm1631 = vcmp.le.f32.partialorder %v1630, 0.7853982
        %vm1632 = vcmp.lt.s32.totalorder %v584, 0
        %v1633 = vand.u32 %v584, 2139095040
        %v1634 = vshrl.u32 %v1633, 23
        %v1635 = vsub.s32 %v1634, 127
        %v1636 = vand.u32 2147483647, %v584
        %v1637 = vand.u32 %v1636, 8388607
        %v1638 = vor.u32 %v1637, 8388608
        %v1639 = vsub.s32 0, %v1638
        %v1640 = vadd.s32 %v1635, 1
        %vm1641 = vcmp.gt.s32.totalorder %v1640, 0
        %v1642 = vsel %vm1641, %v1640, 0
        %v1643 = vshrl.u32 %v1642, 5
        %v1644 = vand.u32 %v1642, 31
        %v1645 = vsub.s32 32, %v1644
        %v1646 = vshrl.u32 683565275, %v1645
        %v1647 = vshll.u32 683565275, %v1644
        %v1648 = vshrl.u32 2475754826, %v1645
        %v1649 = vor.u32 %v1647, %v1648
        %v1650 = vshll.u32 2475754826, %v1644
        %v1651 = vshrl.u32 2131351028, %v1645
        %v1652 = vor.u32 %v1650, %v1651
        %v1653 = vshll.u32 2131351028, %v1644
        %v1654 = vshrl.u32 2102212464, %v1645
        %v1655 = vor.u32 %v1653, %v1654
        %v1656 = vshll.u32 2102212464, %v1644
        %v1657 = vshrl.u32 920167782, %v1645
        %v1658 = vor.u32 %v1656, %v1657
        %v1659 = vshll.u32 920167782, %v1644
        %v1660 = vshrl.u32 1326507024, %v1645
        %v1661 = vor.u32 %v1659, %v1660
        %vm1662 = vcmp.lt.s32.totalorder %v1643, 1
        %vm1663 = vcmp.lt.s32.totalorder %v1643, 2
        %vm1664 = vcmp.lt.s32.totalorder %v1643, 3
        %vm1665 = vcmp.lt.s32.totalorder %v1643, 4
        %v1666 = vsel %vm1662, %v1646, %v1649
        %v1667 = vsel %vm1665, %v1655, 2102212464
        %v1668 = vsel %vm1664, %v1652, %v1667
        %v1669 = vsel %vm1663, %v1666, %v1668
        %v1670 = vsel %vm1662, %v1649, %v1652
        %v1671 = vsel %vm1665, %v1658, 920167782
        %v1672 = vsel %vm1664, %v1655, %v1671
        %v1673 = vsel %vm1663, %v1670, %v1672
        %v1674 = vsel %vm1662, %v1652, %v1655
        %v1675 = vsel %vm1665, %v1661, 1326507024
        %v1676 = vsel %vm1664, %v1658, %v1675
        %v1677 = vsel %vm1663, %v1674, %v1676
        %v1678 = vshll.u32 %v1638, 8
        %v1679 = vmul.u32.u64.compose %v1678, %v1677
        %v1680 = vextract.low.u32 %v1679
        %v1681 = vextract.high.u32 %v1679
        %v1682 = vmul.u32.u64.compose %v1678, %v1673
        %v1683 = vextract.low.u32 %v1682
        %v1684 = vextract.high.u32 %v1682
        %v1685 = vmul.u32 %v1678, %v1669
        %v1686 = vadd.s32 %v1681, %v1683
        %vm1687 = vc.u32 %v1681, %v1683
        %v1688 = vadd.s32 %v1684, 1
        %v1689 = vsel %vm1687, %v1688, %v1684
        %v1690 = vadd.s32 %v1685, %v1689
        %v1691 = vadd.s32 %v1690, 536870912
        %v1692 = vshrl.u32 %v1691, 30
        %v1693 = vshll.u32 %v1692, 30
        %v1694 = vsub.s32 %v1690, %v1693
        %vm1695 = vcmp.lt.s32.totalorder %v1694, 0
        %v1696 = vsub.s32 0, %v1694
        %v1697 = vsel %vm1695, %v1696, %v1694
        %v1698 = vclz %v1697
        %v1699 = vsub.s32 %v1698, 2
        %vm1700 = vcmp.gt.s32.totalorder 0, %v1699
        %v1701 = vsel %vm1700, 0, %v1699
        %v1702 = vsub.s32 32, %v1701
        %v1703 = vshll.u32 %v1694, %v1701
        %v1704 = vshrl.u32 %v1686, %v1702
        %v1705 = vor.u32 %v1703, %v1704
        %v1706 = vsub.s32 4294967266, %v1701
        %v1707 = vadd.s32 %v1706, 127
        %v1708 = vshll.u32 %v1707, 23
        %v1709 = vor.u32 4788187, %v1708
        %v1710 = vand.u32 2147483647, %v1709
        %v1712 = vcvt.s32.f32 %v1705
        %v1713 = vmul.f32 %v1712, %v1710
        %v1714 = vxor.u32 %v1713, 2147483648
        %v1715 = vsel %vm1632, %v1714, %v1713
        %v1716 = vsub.s32 4, %v1692
        %v1717 = vsel %vm1632, %v1716, %v1692
        %v1718 = vsel %vm1631, %v584, %v1715
        %v1719 = vsel %vm1631, 0, %v1717
        %v1720 = vcosq.f32.pop %v1718
        %v1721 = vsinq.f32.pop %v1718
        %vm1722 = vweird.f32 %v584
        %v1723 = vadd.s32 %v1719, 3
        %v1724 = vand.u32 %v1723, 3
        %vm1725 = vcmp.lt.s32.totalorder %v1724, 2
        %vm1726 = vcmp.eq.s32.totalorder %v1724, 0
        %v1727 = vxor.u32 %v1721, 2147483648
        %v1728 = vsel %vm1726, %v1720, %v1727
        %vm1729 = vcmp.eq.s32.totalorder %v1724, 2
        %v1730 = vxor.u32 %v1720, 2147483648
        %v1731 = vsel %vm1729, %v1730, %v1721
        %v1732 = vsel %vm1725, %v1728, %v1731
        %v1733 = vsel %vm1722, nan, %v1732
        %v1734 = vand.u32 2147483647, %v585
        %vm1735 = vcmp.le.f32.partialorder %v1734, 0.7853982
        %vm1736 = vcmp.lt.s32.totalorder %v585, 0
        %v1737 = vand.u32 %v585, 2139095040
        %v1738 = vshrl.u32 %v1737, 23
        %v1739 = vsub.s32 %v1738, 127
        %v1740 = vand.u32 2147483647, %v585
        %v1741 = vand.u32 %v1740, 8388607
        %v1742 = vor.u32 %v1741, 8388608
        %v1743 = vsub.s32 0, %v1742
        %v1744 = vadd.s32 %v1739, 1
        %vm1745 = vcmp.gt.s32.totalorder %v1744, 0
        %v1746 = vsel %vm1745, %v1744, 0
        %v1747 = vshrl.u32 %v1746, 5
        %v1748 = vand.u32 %v1746, 31
        %v1749 = vsub.s32 32, %v1748
        %v1750 = vshrl.u32 683565275, %v1749
        %v1751 = vshll.u32 683565275, %v1748
        %v1752 = vshrl.u32 2475754826, %v1749
        %v1753 = vor.u32 %v1751, %v1752
        %v1754 = vshll.u32 2475754826, %v1748
        %v1755 = vshrl.u32 2131351028, %v1749
        %v1756 = vor.u32 %v1754, %v1755
        %v1757 = vshll.u32 2131351028, %v1748
        %v1758 = vshrl.u32 2102212464, %v1749
        %v1759 = vor.u32 %v1757, %v1758
        %v1760 = vshll.u32 2102212464, %v1748
        %v1761 = vshrl.u32 920167782, %v1749
        %v1762 = vor.u32 %v1760, %v1761
        %v1763 = vshll.u32 920167782, %v1748
        %v1764 = vshrl.u32 1326507024, %v1749
        %v1765 = vor.u32 %v1763, %v1764
        %vm1766 = vcmp.lt.s32.totalorder %v1747, 1
        %vm1767 = vcmp.lt.s32.totalorder %v1747, 2
        %vm1768 = vcmp.lt.s32.totalorder %v1747, 3
        %vm1769 = vcmp.lt.s32.totalorder %v1747, 4
        %v1770 = vsel %vm1766, %v1750, %v1753
        %v1771 = vsel %vm1769, %v1759, 2102212464
        %v1772 = vsel %vm1768, %v1756, %v1771
        %v1773 = vsel %vm1767, %v1770, %v1772
        %v1774 = vsel %vm1766, %v1753, %v1756
        %v1775 = vsel %vm1769, %v1762, 920167782
        %v1776 = vsel %vm1768, %v1759, %v1775
        %v1777 = vsel %vm1767, %v1774, %v1776
        %v1778 = vsel %vm1766, %v1756, %v1759
        %v1779 = vsel %vm1769, %v1765, 1326507024
        %v1780 = vsel %vm1768, %v1762, %v1779
        %v1781 = vsel %vm1767, %v1778, %v1780
        %v1782 = vshll.u32 %v1742, 8
        %v1783 = vmul.u32.u64.compose %v1782, %v1781
        %v1784 = vextract.low.u32 %v1783
        %v1785 = vextract.high.u32 %v1783
        %v1786 = vmul.u32.u64.compose %v1782, %v1777
        %v1787 = vextract.low.u32 %v1786
        %v1788 = vextract.high.u32 %v1786
        %v1789 = vmul.u32 %v1782, %v1773
        %v1790 = vadd.s32 %v1785, %v1787
        %vm1791 = vc.u32 %v1785, %v1787
        %v1792 = vadd.s32 %v1788, 1
        %v1793 = vsel %vm1791, %v1792, %v1788
        %v1794 = vadd.s32 %v1789, %v1793
        %v1795 = vadd.s32 %v1794, 536870912
        %v1796 = vshrl.u32 %v1795, 30
        %v1797 = vshll.u32 %v1796, 30
        %v1798 = vsub.s32 %v1794, %v1797
        %vm1799 = vcmp.lt.s32.totalorder %v1798, 0
        %v1800 = vsub.s32 0, %v1798
        %v1801 = vsel %vm1799, %v1800, %v1798
        %v1802 = vclz %v1801
        %v1803 = vsub.s32 %v1802, 2
        %vm1804 = vcmp.gt.s32.totalorder 0, %v1803
        %v1805 = vsel %vm1804, 0, %v1803
        %v1806 = vsub.s32 32, %v1805
        %v1807 = vshll.u32 %v1798, %v1805
        %v1808 = vshrl.u32 %v1790, %v1806
        %v1809 = vor.u32 %v1807, %v1808
        %v1810 = vsub.s32 4294967266, %v1805
        %v1811 = vadd.s32 %v1810, 127
        %v1812 = vshll.u32 %v1811, 23
        %v1813 = vor.u32 4788187, %v1812
        %v1814 = vand.u32 2147483647, %v1813
        %v1816 = vcvt.s32.f32 %v1809
        %v1817 = vmul.f32 %v1816, %v1814
        %v1818 = vxor.u32 %v1817, 2147483648
        %v1819 = vsel %vm1736, %v1818, %v1817
        %v1820 = vsub.s32 4, %v1796
        %v1821 = vsel %vm1736, %v1820, %v1796
        %v1822 = vsel %vm1735, %v585, %v1819
        %v1823 = vsel %vm1735, 0, %v1821
        %v1824 = vcosq.f32.pop %v1822
        %v1825 = vsinq.f32.pop %v1822
        %vm1826 = vweird.f32 %v585
        %v1827 = vadd.s32 %v1823, 3
        %v1828 = vand.u32 %v1827, 3
        %vm1829 = vcmp.lt.s32.totalorder %v1828, 2
        %vm1830 = vcmp.eq.s32.totalorder %v1828, 0
        %v1831 = vxor.u32 %v1825, 2147483648
        %v1832 = vsel %vm1830, %v1824, %v1831
        %vm1833 = vcmp.eq.s32.totalorder %v1828, 2
        %v1834 = vxor.u32 %v1824, 2147483648
        %v1835 = vsel %vm1833, %v1834, %v1825
        %v1836 = vsel %vm1829, %v1832, %v1835
        %v1837 = vsel %vm1826, nan, %v1836
        %v1838 = vand.u32 2147483647, %v586
        %vm1839 = vcmp.le.f32.partialorder %v1838, 0.7853982
        %vm1840 = vcmp.lt.s32.totalorder %v586, 0
        %v1841 = vand.u32 %v586, 2139095040
        %v1842 = vshrl.u32 %v1841, 23
        %v1843 = vsub.s32 %v1842, 127
        %v1844 = vand.u32 2147483647, %v586
        %v1845 = vand.u32 %v1844, 8388607
        %v1846 = vor.u32 %v1845, 8388608
        %v1847 = vsub.s32 0, %v1846
        %v1848 = vadd.s32 %v1843, 1
        %vm1849 = vcmp.gt.s32.totalorder %v1848, 0
        %v1850 = vsel %vm1849, %v1848, 0
        %v1851 = vshrl.u32 %v1850, 5
        %v1852 = vand.u32 %v1850, 31
        %v1853 = vsub.s32 32, %v1852
        %v1854 = vshrl.u32 683565275, %v1853
        %v1855 = vshll.u32 683565275, %v1852
        %v1856 = vshrl.u32 2475754826, %v1853
        %v1857 = vor.u32 %v1855, %v1856
        %v1858 = vshll.u32 2475754826, %v1852
        %v1859 = vshrl.u32 2131351028, %v1853
        %v1860 = vor.u32 %v1858, %v1859
        %v1861 = vshll.u32 2131351028, %v1852
        %v1862 = vshrl.u32 2102212464, %v1853
        %v1863 = vor.u32 %v1861, %v1862
        %v1864 = vshll.u32 2102212464, %v1852
        %v1865 = vshrl.u32 920167782, %v1853
        %v1866 = vor.u32 %v1864, %v1865
        %v1867 = vshll.u32 920167782, %v1852
        %v1868 = vshrl.u32 1326507024, %v1853
        %v1869 = vor.u32 %v1867, %v1868
        %vm1870 = vcmp.lt.s32.totalorder %v1851, 1
        %vm1871 = vcmp.lt.s32.totalorder %v1851, 2
        %vm1872 = vcmp.lt.s32.totalorder %v1851, 3
        %vm1873 = vcmp.lt.s32.totalorder %v1851, 4
        %v1874 = vsel %vm1870, %v1854, %v1857
        %v1875 = vsel %vm1873, %v1863, 2102212464
        %v1876 = vsel %vm1872, %v1860, %v1875
        %v1877 = vsel %vm1871, %v1874, %v1876
        %v1878 = vsel %vm1870, %v1857, %v1860
        %v1879 = vsel %vm1873, %v1866, 920167782
        %v1880 = vsel %vm1872, %v1863, %v1879
        %v1881 = vsel %vm1871, %v1878, %v1880
        %v1882 = vsel %vm1870, %v1860, %v1863
        %v1883 = vsel %vm1873, %v1869, 1326507024
        %v1884 = vsel %vm1872, %v1866, %v1883
        %v1885 = vsel %vm1871, %v1882, %v1884
        %v1886 = vshll.u32 %v1846, 8
        %v1887 = vmul.u32.u64.compose %v1886, %v1885
        %v1888 = vextract.low.u32 %v1887
        %v1889 = vextract.high.u32 %v1887
        %v1890 = vmul.u32.u64.compose %v1886, %v1881
        %v1891 = vextract.low.u32 %v1890
        %v1892 = vextract.high.u32 %v1890
        %v1893 = vmul.u32 %v1886, %v1877
        %v1894 = vadd.s32 %v1889, %v1891
        %vm1895 = vc.u32 %v1889, %v1891
        %v1896 = vadd.s32 %v1892, 1
        %v1897 = vsel %vm1895, %v1896, %v1892
        %v1898 = vadd.s32 %v1893, %v1897
        %v1899 = vadd.s32 %v1898, 536870912
        %v1900 = vshrl.u32 %v1899, 30
        %v1901 = vshll.u32 %v1900, 30
        %v1902 = vsub.s32 %v1898, %v1901
        %vm1903 = vcmp.lt.s32.totalorder %v1902, 0
        %v1904 = vsub.s32 0, %v1902
        %v1905 = vsel %vm1903, %v1904, %v1902
        %v1906 = vclz %v1905
        %v1907 = vsub.s32 %v1906, 2
        %vm1908 = vcmp.gt.s32.totalorder 0, %v1907
        %v1909 = vsel %vm1908, 0, %v1907
        %v1910 = vsub.s32 32, %v1909
        %v1911 = vshll.u32 %v1902, %v1909
        %v1912 = vshrl.u32 %v1894, %v1910
        %v1913 = vor.u32 %v1911, %v1912
        %v1914 = vsub.s32 4294967266, %v1909
        %v1915 = vadd.s32 %v1914, 127
        %v1916 = vshll.u32 %v1915, 23
        %v1917 = vor.u32 4788187, %v1916
        %v1918 = vand.u32 2147483647, %v1917
        %v1920 = vcvt.s32.f32 %v1913
        %v1921 = vmul.f32 %v1920, %v1918
        %v1922 = vxor.u32 %v1921, 2147483648
        %v1923 = vsel %vm1840, %v1922, %v1921
        %v1924 = vsub.s32 4, %v1900
        %v1925 = vsel %vm1840, %v1924, %v1900
        %v1926 = vsel %vm1839, %v586, %v1923
        %v1927 = vsel %vm1839, 0, %v1925
        %v1928 = vcosq.f32.pop %v1926
        %v1929 = vsinq.f32.pop %v1926
        %vm1930 = vweird.f32 %v586
        %v1931 = vadd.s32 %v1927, 3
        %v1932 = vand.u32 %v1931, 3
        %vm1933 = vcmp.lt.s32.totalorder %v1932, 2
        %vm1934 = vcmp.eq.s32.totalorder %v1932, 0
        %v1935 = vxor.u32 %v1929, 2147483648
        %v1936 = vsel %vm1934, %v1928, %v1935
        %vm1937 = vcmp.eq.s32.totalorder %v1932, 2
        %v1938 = vxor.u32 %v1928, 2147483648
        %v1939 = vsel %vm1937, %v1938, %v1929
        %v1940 = vsel %vm1933, %v1936, %v1939
        %v1941 = vsel %vm1930, nan, %v1940
        %v1942 = vand.u32 2147483647, %v587
        %vm1943 = vcmp.le.f32.partialorder %v1942, 0.7853982
        %vm1944 = vcmp.lt.s32.totalorder %v587, 0
        %v1945 = vand.u32 %v587, 2139095040
        %v1946 = vshrl.u32 %v1945, 23
        %v1947 = vsub.s32 %v1946, 127
        %v1948 = vand.u32 2147483647, %v587
        %v1949 = vand.u32 %v1948, 8388607
        %v1950 = vor.u32 %v1949, 8388608
        %v1951 = vsub.s32 0, %v1950
        %v1952 = vadd.s32 %v1947, 1
        %vm1953 = vcmp.gt.s32.totalorder %v1952, 0
        %v1954 = vsel %vm1953, %v1952, 0
        %v1955 = vshrl.u32 %v1954, 5
        %v1956 = vand.u32 %v1954, 31
        %v1957 = vsub.s32 32, %v1956
        %v1958 = vshrl.u32 683565275, %v1957
        %v1959 = vshll.u32 683565275, %v1956
        %v1960 = vshrl.u32 2475754826, %v1957
        %v1961 = vor.u32 %v1959, %v1960
        %v1962 = vshll.u32 2475754826, %v1956
        %v1963 = vshrl.u32 2131351028, %v1957
        %v1964 = vor.u32 %v1962, %v1963
        %v1965 = vshll.u32 2131351028, %v1956
        %v1966 = vshrl.u32 2102212464, %v1957
        %v1967 = vor.u32 %v1965, %v1966
        %v1968 = vshll.u32 2102212464, %v1956
        %v1969 = vshrl.u32 920167782, %v1957
        %v1970 = vor.u32 %v1968, %v1969
        %v1971 = vshll.u32 920167782, %v1956
        %v1972 = vshrl.u32 1326507024, %v1957
        %v1973 = vor.u32 %v1971, %v1972
        %vm1974 = vcmp.lt.s32.totalorder %v1955, 1
        %vm1975 = vcmp.lt.s32.totalorder %v1955, 2
        %vm1976 = vcmp.lt.s32.totalorder %v1955, 3
        %vm1977 = vcmp.lt.s32.totalorder %v1955, 4
        %v1978 = vsel %vm1974, %v1958, %v1961
        %v1979 = vsel %vm1977, %v1967, 2102212464
        %v1980 = vsel %vm1976, %v1964, %v1979
        %v1981 = vsel %vm1975, %v1978, %v1980
        %v1982 = vsel %vm1974, %v1961, %v1964
        %v1983 = vsel %vm1977, %v1970, 920167782
        %v1984 = vsel %vm1976, %v1967, %v1983
        %v1985 = vsel %vm1975, %v1982, %v1984
        %v1986 = vsel %vm1974, %v1964, %v1967
        %v1987 = vsel %vm1977, %v1973, 1326507024
        %v1988 = vsel %vm1976, %v1970, %v1987
        %v1989 = vsel %vm1975, %v1986, %v1988
        %v1990 = vshll.u32 %v1950, 8
        %v1991 = vmul.u32.u64.compose %v1990, %v1989
        %v1992 = vextract.low.u32 %v1991
        %v1993 = vextract.high.u32 %v1991
        %v1994 = vmul.u32.u64.compose %v1990, %v1985
        %v1995 = vextract.low.u32 %v1994
        %v1996 = vextract.high.u32 %v1994
        %v1997 = vmul.u32 %v1990, %v1981
        %v1998 = vadd.s32 %v1993, %v1995
        %vm1999 = vc.u32 %v1993, %v1995
        %v2000 = vadd.s32 %v1996, 1
        %v2001 = vsel %vm1999, %v2000, %v1996
        %v2002 = vadd.s32 %v1997, %v2001
        %v2003 = vadd.s32 %v2002, 536870912
        %v2004 = vshrl.u32 %v2003, 30
        %v2005 = vshll.u32 %v2004, 30
        %v2006 = vsub.s32 %v2002, %v2005
        %vm2007 = vcmp.lt.s32.totalorder %v2006, 0
        %v2008 = vsub.s32 0, %v2006
        %v2009 = vsel %vm2007, %v2008, %v2006
        %v2010 = vclz %v2009
        %v2011 = vsub.s32 %v2010, 2
        %vm2012 = vcmp.gt.s32.totalorder 0, %v2011
        %v2013 = vsel %vm2012, 0, %v2011
        %v2014 = vsub.s32 32, %v2013
        %v2015 = vshll.u32 %v2006, %v2013
        %v2016 = vshrl.u32 %v1998, %v2014
        %v2017 = vor.u32 %v2015, %v2016
        %v2018 = vsub.s32 4294967266, %v2013
        %v2019 = vadd.s32 %v2018, 127
        %v2020 = vshll.u32 %v2019, 23
        %v2021 = vor.u32 4788187, %v2020
        %v2022 = vand.u32 2147483647, %v2021
        %v2024 = vcvt.s32.f32 %v2017
        %v2025 = vmul.f32 %v2024, %v2022
        %v2026 = vxor.u32 %v2025, 2147483648
        %v2027 = vsel %vm1944, %v2026, %v2025
        %v2028 = vsub.s32 4, %v2004
        %v2029 = vsel %vm1944, %v2028, %v2004
        %v2030 = vsel %vm1943, %v587, %v2027
        %v2031 = vsel %vm1943, 0, %v2029
        %v2032 = vcosq.f32.pop %v2030
        %v2033 = vsinq.f32.pop %v2030
        %vm2034 = vweird.f32 %v587
        %v2035 = vadd.s32 %v2031, 3
        %v2036 = vand.u32 %v2035, 3
        %vm2037 = vcmp.lt.s32.totalorder %v2036, 2
        %vm2038 = vcmp.eq.s32.totalorder %v2036, 0
        %v2039 = vxor.u32 %v2033, 2147483648
        %v2040 = vsel %vm2038, %v2032, %v2039
        %vm2041 = vcmp.eq.s32.totalorder %v2036, 2
        %v2042 = vxor.u32 %v2032, 2147483648
        %v2043 = vsel %vm2041, %v2042, %v2033
        %v2044 = vsel %vm2037, %v2040, %v2043
        %v2045 = vsel %vm2034, nan, %v2044
        %v2046 = vand.u32 2147483647, %v588
        %vm2047 = vcmp.le.f32.partialorder %v2046, 0.7853982
        %vm2048 = vcmp.lt.s32.totalorder %v588, 0
        %v2049 = vand.u32 %v588, 2139095040
        %v2050 = vshrl.u32 %v2049, 23
        %v2051 = vsub.s32 %v2050, 127
        %v2052 = vand.u32 2147483647, %v588
        %v2053 = vand.u32 %v2052, 8388607
        %v2054 = vor.u32 %v2053, 8388608
        %v2055 = vsub.s32 0, %v2054
        %v2056 = vadd.s32 %v2051, 1
        %vm2057 = vcmp.gt.s32.totalorder %v2056, 0
        %v2058 = vsel %vm2057, %v2056, 0
        %v2059 = vshrl.u32 %v2058, 5
        %v2060 = vand.u32 %v2058, 31
        %v2061 = vsub.s32 32, %v2060
        %v2062 = vshrl.u32 683565275, %v2061
        %v2063 = vshll.u32 683565275, %v2060
        %v2064 = vshrl.u32 2475754826, %v2061
        %v2065 = vor.u32 %v2063, %v2064
        %v2066 = vshll.u32 2475754826, %v2060
        %v2067 = vshrl.u32 2131351028, %v2061
        %v2068 = vor.u32 %v2066, %v2067
        %v2069 = vshll.u32 2131351028, %v2060
        %v2070 = vshrl.u32 2102212464, %v2061
        %v2071 = vor.u32 %v2069, %v2070
        %v2072 = vshll.u32 2102212464, %v2060
        %v2073 = vshrl.u32 920167782, %v2061
        %v2074 = vor.u32 %v2072, %v2073
        %v2075 = vshll.u32 920167782, %v2060
        %v2076 = vshrl.u32 1326507024, %v2061
        %v2077 = vor.u32 %v2075, %v2076
        %vm2078 = vcmp.lt.s32.totalorder %v2059, 1
        %vm2079 = vcmp.lt.s32.totalorder %v2059, 2
        %vm2080 = vcmp.lt.s32.totalorder %v2059, 3
        %vm2081 = vcmp.lt.s32.totalorder %v2059, 4
        %v2082 = vsel %vm2078, %v2062, %v2065
        %v2083 = vsel %vm2081, %v2071, 2102212464
        %v2084 = vsel %vm2080, %v2068, %v2083
        %v2085 = vsel %vm2079, %v2082, %v2084
        %v2086 = vsel %vm2078, %v2065, %v2068
        %v2087 = vsel %vm2081, %v2074, 920167782
        %v2088 = vsel %vm2080, %v2071, %v2087
        %v2089 = vsel %vm2079, %v2086, %v2088
        %v2090 = vsel %vm2078, %v2068, %v2071
        %v2091 = vsel %vm2081, %v2077, 1326507024
        %v2092 = vsel %vm2080, %v2074, %v2091
        %v2093 = vsel %vm2079, %v2090, %v2092
        %v2094 = vshll.u32 %v2054, 8
        %v2095 = vmul.u32.u64.compose %v2094, %v2093
        %v2096 = vextract.low.u32 %v2095
        %v2097 = vextract.high.u32 %v2095
        %v2098 = vmul.u32.u64.compose %v2094, %v2089
        %v2099 = vextract.low.u32 %v2098
        %v2100 = vextract.high.u32 %v2098
        %v2101 = vmul.u32 %v2094, %v2085
        %v2102 = vadd.s32 %v2097, %v2099
        %vm2103 = vc.u32 %v2097, %v2099
        %v2104 = vadd.s32 %v2100, 1
        %v2105 = vsel %vm2103, %v2104, %v2100
        %v2106 = vadd.s32 %v2101, %v2105
        %v2107 = vadd.s32 %v2106, 536870912
        %v2108 = vshrl.u32 %v2107, 30
        %v2109 = vshll.u32 %v2108, 30
        %v2110 = vsub.s32 %v2106, %v2109
        %vm2111 = vcmp.lt.s32.totalorder %v2110, 0
        %v2112 = vsub.s32 0, %v2110
        %v2113 = vsel %vm2111, %v2112, %v2110
        %v2114 = vclz %v2113
        %v2115 = vsub.s32 %v2114, 2
        %vm2116 = vcmp.gt.s32.totalorder 0, %v2115
        %v2117 = vsel %vm2116, 0, %v2115
        %v2118 = vsub.s32 32, %v2117
        %v2119 = vshll.u32 %v2110, %v2117
        %v2120 = vshrl.u32 %v2102, %v2118
        %v2121 = vor.u32 %v2119, %v2120
        %v2122 = vsub.s32 4294967266, %v2117
        %v2123 = vadd.s32 %v2122, 127
        %v2124 = vshll.u32 %v2123, 23
        %v2125 = vor.u32 4788187, %v2124
        %v2126 = vand.u32 2147483647, %v2125
        %v2128 = vcvt.s32.f32 %v2121
        %v2129 = vmul.f32 %v2128, %v2126
        %v2130 = vxor.u32 %v2129, 2147483648
        %v2131 = vsel %vm2048, %v2130, %v2129
        %v2132 = vsub.s32 4, %v2108
        %v2133 = vsel %vm2048, %v2132, %v2108
        %v2134 = vsel %vm2047, %v588, %v2131
        %v2135 = vsel %vm2047, 0, %v2133
        %v2136 = vcosq.f32.pop %v2134
        %v2137 = vsinq.f32.pop %v2134
        %vm2138 = vweird.f32 %v588
        %v2139 = vadd.s32 %v2135, 3
        %v2140 = vand.u32 %v2139, 3
        %vm2141 = vcmp.lt.s32.totalorder %v2140, 2
        %vm2142 = vcmp.eq.s32.totalorder %v2140, 0
        %v2143 = vxor.u32 %v2137, 2147483648
        %v2144 = vsel %vm2142, %v2136, %v2143
        %vm2145 = vcmp.eq.s32.totalorder %v2140, 2
        %v2146 = vxor.u32 %v2136, 2147483648
        %v2147 = vsel %vm2145, %v2146, %v2137
        %v2148 = vsel %vm2141, %v2144, %v2147
        %v2149 = vsel %vm2138, nan, %v2148
        %v2150 = vand.u32 2147483647, %v589
        %vm2151 = vcmp.le.f32.partialorder %v2150, 0.7853982
        %vm2152 = vcmp.lt.s32.totalorder %v589, 0
        %v2153 = vand.u32 %v589, 2139095040
        %v2154 = vshrl.u32 %v2153, 23
        %v2155 = vsub.s32 %v2154, 127
        %v2156 = vand.u32 2147483647, %v589
        %v2157 = vand.u32 %v2156, 8388607
        %v2158 = vor.u32 %v2157, 8388608
        %v2159 = vsub.s32 0, %v2158
        %v2160 = vadd.s32 %v2155, 1
        %vm2161 = vcmp.gt.s32.totalorder %v2160, 0
        %v2162 = vsel %vm2161, %v2160, 0
        %v2163 = vshrl.u32 %v2162, 5
        %v2164 = vand.u32 %v2162, 31
        %v2165 = vsub.s32 32, %v2164
        %v2166 = vshrl.u32 683565275, %v2165
        %v2167 = vshll.u32 683565275, %v2164
        %v2168 = vshrl.u32 2475754826, %v2165
        %v2169 = vor.u32 %v2167, %v2168
        %v2170 = vshll.u32 2475754826, %v2164
        %v2171 = vshrl.u32 2131351028, %v2165
        %v2172 = vor.u32 %v2170, %v2171
        %v2173 = vshll.u32 2131351028, %v2164
        %v2174 = vshrl.u32 2102212464, %v2165
        %v2175 = vor.u32 %v2173, %v2174
        %v2176 = vshll.u32 2102212464, %v2164
        %v2177 = vshrl.u32 920167782, %v2165
        %v2178 = vor.u32 %v2176, %v2177
        %v2179 = vshll.u32 920167782, %v2164
        %v2180 = vshrl.u32 1326507024, %v2165
        %v2181 = vor.u32 %v2179, %v2180
        %vm2182 = vcmp.lt.s32.totalorder %v2163, 1
        %vm2183 = vcmp.lt.s32.totalorder %v2163, 2
        %vm2184 = vcmp.lt.s32.totalorder %v2163, 3
        %vm2185 = vcmp.lt.s32.totalorder %v2163, 4
        %v2186 = vsel %vm2182, %v2166, %v2169
        %v2187 = vsel %vm2185, %v2175, 2102212464
        %v2188 = vsel %vm2184, %v2172, %v2187
        %v2189 = vsel %vm2183, %v2186, %v2188
        %v2190 = vsel %vm2182, %v2169, %v2172
        %v2191 = vsel %vm2185, %v2178, 920167782
        %v2192 = vsel %vm2184, %v2175, %v2191
        %v2193 = vsel %vm2183, %v2190, %v2192
        %v2194 = vsel %vm2182, %v2172, %v2175
        %v2195 = vsel %vm2185, %v2181, 1326507024
        %v2196 = vsel %vm2184, %v2178, %v2195
        %v2197 = vsel %vm2183, %v2194, %v2196
        %v2198 = vshll.u32 %v2158, 8
        %v2199 = vmul.u32.u64.compose %v2198, %v2197
        %v2200 = vextract.low.u32 %v2199
        %v2201 = vextract.high.u32 %v2199
        %v2202 = vmul.u32.u64.compose %v2198, %v2193
        %v2203 = vextract.low.u32 %v2202
        %v2204 = vextract.high.u32 %v2202
        %v2205 = vmul.u32 %v2198, %v2189
        %v2206 = vadd.s32 %v2201, %v2203
        %vm2207 = vc.u32 %v2201, %v2203
        %v2208 = vadd.s32 %v2204, 1
        %v2209 = vsel %vm2207, %v2208, %v2204
        %v2210 = vadd.s32 %v2205, %v2209
        %v2211 = vadd.s32 %v2210, 536870912
        %v2212 = vshrl.u32 %v2211, 30
        %v2213 = vshll.u32 %v2212, 30
        %v2214 = vsub.s32 %v2210, %v2213
        %vm2215 = vcmp.lt.s32.totalorder %v2214, 0
        %v2216 = vsub.s32 0, %v2214
        %v2217 = vsel %vm2215, %v2216, %v2214
        %v2218 = vclz %v2217
        %v2219 = vsub.s32 %v2218, 2
        %vm2220 = vcmp.gt.s32.totalorder 0, %v2219
        %v2221 = vsel %vm2220, 0, %v2219
        %v2222 = vsub.s32 32, %v2221
        %v2223 = vshll.u32 %v2214, %v2221
        %v2224 = vshrl.u32 %v2206, %v2222
        %v2225 = vor.u32 %v2223, %v2224
        %v2226 = vsub.s32 4294967266, %v2221
        %v2227 = vadd.s32 %v2226, 127
        %v2228 = vshll.u32 %v2227, 23
        %v2229 = vor.u32 4788187, %v2228
        %v2230 = vand.u32 2147483647, %v2229
        %v2232 = vcvt.s32.f32 %v2225
        %v2233 = vmul.f32 %v2232, %v2230
        %v2234 = vxor.u32 %v2233, 2147483648
        %v2235 = vsel %vm2152, %v2234, %v2233
        %v2236 = vsub.s32 4, %v2212
        %v2237 = vsel %vm2152, %v2236, %v2212
        %v2238 = vsel %vm2151, %v589, %v2235
        %v2239 = vsel %vm2151, 0, %v2237
        %v2240 = vcosq.f32.pop %v2238
        %v2241 = vsinq.f32.pop %v2238
        %vm2242 = vweird.f32 %v589
        %v2243 = vadd.s32 %v2239, 3
        %v2244 = vand.u32 %v2243, 3
        %vm2245 = vcmp.lt.s32.totalorder %v2244, 2
        %vm2246 = vcmp.eq.s32.totalorder %v2244, 0
        %v2247 = vxor.u32 %v2241, 2147483648
        %v2248 = vsel %vm2246, %v2240, %v2247
        %vm2249 = vcmp.eq.s32.totalorder %v2244, 2
        %v2250 = vxor.u32 %v2240, 2147483648
        %v2251 = vsel %vm2249, %v2250, %v2241
        %v2252 = vsel %vm2245, %v2248, %v2251
        %v2253 = vsel %vm2242, nan, %v2252
        %v2254 = vld [vmem:[%s4] sm:$0xff]
        %v2255 = vld [vmem:[%s4 + $0x8] sm:$0xff]
        %v2256 = vld [vmem:[%s4 + $0x10] sm:$0xff]
        %v2257 = vld [vmem:[%s4 + $0x18] sm:$0xff]
        %v2258 = vld [vmem:[%s4 + $0x20] sm:$0xff]
        %v2259 = vld [vmem:[%s4 + $0x28] sm:$0xff]
        %v2260 = vld [vmem:[%s4 + $0x30] sm:$0xff]
        %v2261 = vld [vmem:[%s4 + $0x38] sm:$0xff]
        %v2262 = vld [vmem:[%s5] sm:$0xff]
        %v2263 = vld [vmem:[%s5 + $0x8] sm:$0xff]
        %v2264 = vld [vmem:[%s5 + $0x10] sm:$0xff]
        %v2265 = vld [vmem:[%s5 + $0x18] sm:$0xff]
        %v2266 = vld [vmem:[%s5 + $0x20] sm:$0xff]
        %v2267 = vld [vmem:[%s5 + $0x28] sm:$0xff]
        %v2268 = vld [vmem:[%s5 + $0x30] sm:$0xff]
        %v2269 = vld [vmem:[%s5 + $0x38] sm:$0xff]
        %2271 = vset.pattern.permute.xlu0 0
        %2272 = vperm.xlu0 %2271, %v2262
        %v2273 = vpop.permute.xlu0 %2272
        %2276 = vset.pattern.permute.xlu0 0
        %2277 = vperm.xlu0 %2276, %v2263
        %v2278 = vpop.permute.xlu0 %2277
        %2281 = vset.pattern.permute.xlu0 0
        %2282 = vperm.xlu0 %2281, %v2264
        %v2283 = vpop.permute.xlu0 %2282
        %2286 = vset.pattern.permute.xlu0 0
        %2287 = vperm.xlu0 %2286, %v2265
        %v2288 = vpop.permute.xlu0 %2287
        %2291 = vset.pattern.permute.xlu0 0
        %2292 = vperm.xlu0 %2291, %v2266
        %v2293 = vpop.permute.xlu0 %2292
        %2296 = vset.pattern.permute.xlu0 0
        %2297 = vperm.xlu0 %2296, %v2267
        %v2298 = vpop.permute.xlu0 %2297
        %2301 = vset.pattern.permute.xlu0 0
        %2302 = vperm.xlu0 %2301, %v2268
        %v2303 = vpop.permute.xlu0 %2302
        %2306 = vset.pattern.permute.xlu0 0
        %2307 = vperm.xlu0 %2306, %v2269
        %v2308 = vpop.permute.xlu0 %2307
        %vm2310 = vcmask 523264
        %v2312 = vsel %vm2310, %v2254, 0
        %v2315 = vsel %vm2310, %v2255, 0
        %v2318 = vsel %vm2310, %v2256, 0
        %v2321 = vsel %vm2310, %v2257, 0
        %v2324 = vsel %vm2310, %v2258, 0
        %v2327 = vsel %vm2310, %v2259, 0
        %v2330 = vsel %vm2310, %v2260, 0
        %v2333 = vsel %vm2310, %v2261, 0
        %2335 = vmatprep.subr.mxu0 %v797
        %2336 = vmatpush1.msra.mxu0 %v693
        %2337 = vmatprep.subr.mxu0 %v1005
        %2338 = vmatpush1.msra.mxu0 %v901
        %2339 = vmatprep.subr.mxu0 %v1213
        %2340 = vmatpush1.msra.mxu0 %v1109
        %2341 = vmatprep.subr.mxu0 %v1421
        %2342 = vmatpush1.msra.mxu0 %v1317
        %2343 = vmatprep.subr.mxu0 %v1629
        %2344 = vmatpush1.msra.mxu0 %v1525
        %2345 = vmatprep.subr.mxu0 %v1837
        %2346 = vmatpush1.msra.mxu0 %v1733
        %2347 = vmatprep.subr.mxu0 %v2045
        %2348 = vmatpush1.msra.mxu0 %v1941
        %2349 = vmatprep.subr.mxu0 %v2253
        %2350 = vmatpush1.msra.mxu0 %v2149
        %2351 = vmatprep.subr.mxu0 0.0
        %2352 = vmatpush1.msra.mxu0 0.0
        %2353 = vmatprep.subr.mxu0 0.0
        %2354 = vmatpush1.msra.mxu0 0.0
        %2355 = vmatprep.subr.mxu0 0.0
        %2356 = vmatpush1.msra.mxu0 0.0
        %2357 = vmatprep.subr.mxu0 0.0
        %2358 = vmatpush1.msra.mxu0 0.0
        %2359 = vmatprep.subr.mxu0 0.0
        %2360 = vmatpush1.msra.mxu0 0.0
        %2361 = vmatprep.subr.mxu0 0.0
        %2362 = vmatpush1.msra.mxu0 0.0
        %2363 = vmatprep.subr.mxu0 0.0
        %2364 = vmatpush1.msra.mxu0 0.0
        %2365 = vmatprep.subr.mxu0 0.0
        %2366 = vmatpush1.msra.mxu0 0.0
        %2367 = vmatprep.subr.mxu0 0.0
        %2368 = vmatpush1.msra.mxu0 0.0
        %2369 = vmatprep.subr.mxu0 0.0
        %2370 = vmatpush1.msra.mxu0 0.0
        %2371 = vmatprep.subr.mxu0 0.0
        %2372 = vmatpush1.msra.mxu0 0.0
        %2373 = vmatprep.subr.mxu0 0.0
        %2374 = vmatpush1.msra.mxu0 0.0
        %2375 = vmatprep.subr.mxu0 0.0
        %2376 = vmatpush1.msra.mxu0 0.0
        %2377 = vmatprep.subr.mxu0 0.0
        %2378 = vmatpush1.msra.mxu0 0.0
        %2379 = vmatprep.subr.mxu0 0.0
        %2380 = vmatpush1.msra.mxu0 0.0
        %2381 = vmatprep.subr.mxu0 0.0
        %2382 = vmatpush1.msra.mxu0 0.0
        %2383 = vmatprep.subr.mxu0 0.0
        %2384 = vmatpush1.msra.mxu0 0.0
        %2385 = vmatprep.subr.mxu0 0.0
        %2386 = vmatpush1.msra.mxu0 0.0
        %2387 = vmatprep.subr.mxu0 0.0
        %2388 = vmatpush1.msra.mxu0 0.0
        %2389 = vmatprep.subr.mxu0 0.0
        %2390 = vmatpush1.msra.mxu0 0.0
        %2391 = vmatprep.subr.mxu0 0.0
        %2392 = vmatpush1.msra.mxu0 0.0
        %2393 = vmatprep.subr.mxu0 0.0
        %2394 = vmatpush1.msra.mxu0 0.0
        %2395 = vmatprep.subr.mxu0 0.0
        %2396 = vmatpush1.msra.mxu0 0.0
        %2397 = vmatprep.subr.mxu0 0.0
        %2398 = vmatpush1.msra.mxu0 0.0
        %2399 = vmatprep.mubr.f32.mxu0 0.0
        %2400 = vmatmul.mubr.f32.gmra.mrb[0].mxu0 %v2312
        %v2401 = vpop.f32.mrb[0].mxu0
        %v2402 = vadd.f32 %v2273, %v2401
        %v2403 = vpop.f32.mrb[0].mxu0
        %v2404 = vadd.f32 %v2273, %v2403
        %2405 = vmatprep.mubr.f32.mxu0 0.0
        %2406 = vmatmul.mubr.f32.gmra.mrb[0].mxu0 %v2315
        %v2407 = vpop.f32.mrb[0].mxu0
        %v2408 = vadd.f32 %v2278, %v2407
        %v2409 = vpop.f32.mrb[0].mxu0
        %v2410 = vadd.f32 %v2278, %v2409
        %2411 = vmatprep.mubr.f32.mxu0 0.0
        %2412 = vmatmul.mubr.f32.gmra.mrb[0].mxu0 %v2318
        %v2413 = vpop.f32.mrb[0].mxu0
        %v2414 = vadd.f32 %v2283, %v2413
        %v2415 = vpop.f32.mrb[0].mxu0
        %v2416 = vadd.f32 %v2283, %v2415
        %2417 = vmatprep.mubr.f32.mxu0 0.0
        %2418 = vmatmul.mubr.f32.gmra.mrb[0].mxu0 %v2321
        %v2419 = vpop.f32.mrb[0].mxu0
        %v2420 = vadd.f32 %v2288, %v2419
        %v2421 = vpop.f32.mrb[0].mxu0
        %v2422 = vadd.f32 %v2288, %v2421
        %2423 = vmatprep.mubr.f32.mxu0 0.0
        %2424 = vmatmul.mubr.f32.gmra.mrb[0].mxu0 %v2324
        %v2425 = vpop.f32.mrb[0].mxu0
        %v2426 = vadd.f32 %v2293, %v2425
        %v2427 = vpop.f32.mrb[0].mxu0
        %v2428 = vadd.f32 %v2293, %v2427
        %2429 = vmatprep.mubr.f32.mxu0 0.0
        %2430 = vmatmul.mubr.f32.gmra.mrb[0].mxu0 %v2327
        %v2431 = vpop.f32.mrb[0].mxu0
        %v2432 = vadd.f32 %v2298, %v2431
        %v2433 = vpop.f32.mrb[0].mxu0
        %v2434 = vadd.f32 %v2298, %v2433
        %2435 = vmatprep.mubr.f32.mxu0 0.0
        %2436 = vmatmul.mubr.f32.gmra.mrb[0].mxu0 %v2330
        %v2437 = vpop.f32.mrb[0].mxu0
        %v2438 = vadd.f32 %v2303, %v2437
        %v2439 = vpop.f32.mrb[0].mxu0
        %v2440 = vadd.f32 %v2303, %v2439
        %2441 = vmatprep.mubr.f32.mxu0 0.0
        %2442 = vmatmul.mubr.f32.gmra.mrb[0].mxu0 %v2333
        %v2443 = vpop.f32.mrb[0].mxu0
        %v2444 = vadd.f32 %v2308, %v2443
        %v2445 = vpop.f32.mrb[0].mxu0
        %v2446 = vadd.f32 %v2308, %v2445
        %2447 = vdwg.mxu0
        %v2448 = vand.u32 2147483647, %v2402
        %vm2449 = vcmp.le.f32.partialorder %v2448, 0.7853982
        %vm2450 = vcmp.lt.s32.totalorder %v2402, 0
        %v2451 = vand.u32 %v2402, 2139095040
        %v2452 = vshrl.u32 %v2451, 23
        %v2453 = vsub.s32 %v2452, 127
        %v2454 = vand.u32 2147483647, %v2402
        %v2455 = vand.u32 %v2454, 8388607
        %v2456 = vor.u32 %v2455, 8388608
        %v2457 = vsub.s32 0, %v2456
        %v2458 = vadd.s32 %v2453, 1
        %vm2459 = vcmp.gt.s32.totalorder %v2458, 0
        %v2460 = vsel %vm2459, %v2458, 0
        %v2461 = vshrl.u32 %v2460, 5
        %v2462 = vand.u32 %v2460, 31
        %v2463 = vsub.s32 32, %v2462
        %v2464 = vshrl.u32 683565275, %v2463
        %v2465 = vshll.u32 683565275, %v2462
        %v2466 = vshrl.u32 2475754826, %v2463
        %v2467 = vor.u32 %v2465, %v2466
        %v2468 = vshll.u32 2475754826, %v2462
        %v2469 = vshrl.u32 2131351028, %v2463
        %v2470 = vor.u32 %v2468, %v2469
        %v2471 = vshll.u32 2131351028, %v2462
        %v2472 = vshrl.u32 2102212464, %v2463
        %v2473 = vor.u32 %v2471, %v2472
        %v2474 = vshll.u32 2102212464, %v2462
        %v2475 = vshrl.u32 920167782, %v2463
        %v2476 = vor.u32 %v2474, %v2475
        %v2477 = vshll.u32 920167782, %v2462
        %v2478 = vshrl.u32 1326507024, %v2463
        %v2479 = vor.u32 %v2477, %v2478
        %vm2480 = vcmp.lt.s32.totalorder %v2461, 1
        %vm2481 = vcmp.lt.s32.totalorder %v2461, 2
        %vm2482 = vcmp.lt.s32.totalorder %v2461, 3
        %vm2483 = vcmp.lt.s32.totalorder %v2461, 4
        %v2484 = vsel %vm2480, %v2464, %v2467
        %v2485 = vsel %vm2483, %v2473, 2102212464
        %v2486 = vsel %vm2482, %v2470, %v2485
        %v2487 = vsel %vm2481, %v2484, %v2486
        %v2488 = vsel %vm2480, %v2467, %v2470
        %v2489 = vsel %vm2483, %v2476, 920167782
        %v2490 = vsel %vm2482, %v2473, %v2489
        %v2491 = vsel %vm2481, %v2488, %v2490
        %v2492 = vsel %vm2480, %v2470, %v2473
        %v2493 = vsel %vm2483, %v2479, 1326507024
        %v2494 = vsel %vm2482, %v2476, %v2493
        %v2495 = vsel %vm2481, %v2492, %v2494
        %v2496 = vshll.u32 %v2456, 8
        %v2497 = vmul.u32.u64.compose %v2496, %v2495
        %v2498 = vextract.low.u32 %v2497
        %v2499 = vextract.high.u32 %v2497
        %v2500 = vmul.u32.u64.compose %v2496, %v2491
        %v2501 = vextract.low.u32 %v2500
        %v2502 = vextract.high.u32 %v2500
        %v2503 = vmul.u32 %v2496, %v2487
        %v2504 = vadd.s32 %v2499, %v2501
        %vm2505 = vc.u32 %v2499, %v2501
        %v2506 = vadd.s32 %v2502, 1
        %v2507 = vsel %vm2505, %v2506, %v2502
        %v2508 = vadd.s32 %v2503, %v2507
        %v2509 = vadd.s32 %v2508, 536870912
        %v2510 = vshrl.u32 %v2509, 30
        %v2511 = vshll.u32 %v2510, 30
        %v2512 = vsub.s32 %v2508, %v2511
        %vm2513 = vcmp.lt.s32.totalorder %v2512, 0
        %v2514 = vsub.s32 0, %v2512
        %v2515 = vsel %vm2513, %v2514, %v2512
        %v2516 = vclz %v2515
        %v2517 = vsub.s32 %v2516, 2
        %vm2518 = vcmp.gt.s32.totalorder 0, %v2517
        %v2519 = vsel %vm2518, 0, %v2517
        %v2520 = vsub.s32 32, %v2519
        %v2521 = vshll.u32 %v2512, %v2519
        %v2522 = vshrl.u32 %v2504, %v2520
        %v2523 = vor.u32 %v2521, %v2522
        %v2524 = vsub.s32 4294967266, %v2519
        %v2525 = vadd.s32 %v2524, 127
        %v2526 = vshll.u32 %v2525, 23
        %v2527 = vor.u32 4788187, %v2526
        %v2528 = vand.u32 2147483647, %v2527
        %v2530 = vcvt.s32.f32 %v2523
        %v2531 = vmul.f32 %v2530, %v2528
        %v2532 = vxor.u32 %v2531, 2147483648
        %v2533 = vsel %vm2450, %v2532, %v2531
        %v2534 = vsub.s32 4, %v2510
        %v2535 = vsel %vm2450, %v2534, %v2510
        %v2536 = vsel %vm2449, %v2402, %v2533
        %v2537 = vsel %vm2449, 0, %v2535
        %v2538 = vcosq.f32.pop %v2536
        %v2539 = vsinq.f32.pop %v2536
        %vm2540 = vweird.f32 %v2402
        %v2541 = vadd.s32 %v2537, 3
        %v2542 = vand.u32 %v2541, 3
        %vm2543 = vcmp.lt.s32.totalorder %v2542, 2
        %vm2544 = vcmp.eq.s32.totalorder %v2542, 0
        %v2545 = vxor.u32 %v2539, 2147483648
        %v2546 = vsel %vm2544, %v2538, %v2545
        %vm2547 = vcmp.eq.s32.totalorder %v2542, 2
        %v2548 = vxor.u32 %v2538, 2147483648
        %v2549 = vsel %vm2547, %v2548, %v2539
        %v2550 = vsel %vm2543, %v2546, %v2549
        %v2551 = vsel %vm2540, nan, %v2550
        %v2552 = vand.u32 2147483647, %v2404
        %vm2553 = vcmp.le.f32.partialorder %v2552, 0.7853982
        %vm2554 = vcmp.lt.s32.totalorder %v2404, 0
        %v2555 = vand.u32 %v2404, 2139095040
        %v2556 = vshrl.u32 %v2555, 23
        %v2557 = vsub.s32 %v2556, 127
        %v2558 = vand.u32 2147483647, %v2404
        %v2559 = vand.u32 %v2558, 8388607
        %v2560 = vor.u32 %v2559, 8388608
        %v2561 = vsub.s32 0, %v2560
        %v2562 = vadd.s32 %v2557, 1
        %vm2563 = vcmp.gt.s32.totalorder %v2562, 0
        %v2564 = vsel %vm2563, %v2562, 0
        %v2565 = vshrl.u32 %v2564, 5
        %v2566 = vand.u32 %v2564, 31
        %v2567 = vsub.s32 32, %v2566
        %v2568 = vshrl.u32 683565275, %v2567
        %v2569 = vshll.u32 683565275, %v2566
        %v2570 = vshrl.u32 2475754826, %v2567
        %v2571 = vor.u32 %v2569, %v2570
        %v2572 = vshll.u32 2475754826, %v2566
        %v2573 = vshrl.u32 2131351028, %v2567
        %v2574 = vor.u32 %v2572, %v2573
        %v2575 = vshll.u32 2131351028, %v2566
        %v2576 = vshrl.u32 2102212464, %v2567
        %v2577 = vor.u32 %v2575, %v2576
        %v2578 = vshll.u32 2102212464, %v2566
        %v2579 = vshrl.u32 920167782, %v2567
        %v2580 = vor.u32 %v2578, %v2579
        %v2581 = vshll.u32 920167782, %v2566
        %v2582 = vshrl.u32 1326507024, %v2567
        %v2583 = vor.u32 %v2581, %v2582
        %vm2584 = vcmp.lt.s32.totalorder %v2565, 1
        %vm2585 = vcmp.lt.s32.totalorder %v2565, 2
        %vm2586 = vcmp.lt.s32.totalorder %v2565, 3
        %vm2587 = vcmp.lt.s32.totalorder %v2565, 4
        %v2588 = vsel %vm2584, %v2568, %v2571
        %v2589 = vsel %vm2587, %v2577, 2102212464
        %v2590 = vsel %vm2586, %v2574, %v2589
        %v2591 = vsel %vm2585, %v2588, %v2590
        %v2592 = vsel %vm2584, %v2571, %v2574
        %v2593 = vsel %vm2587, %v2580, 920167782
        %v2594 = vsel %vm2586, %v2577, %v2593
        %v2595 = vsel %vm2585, %v2592, %v2594
        %v2596 = vsel %vm2584, %v2574, %v2577
        %v2597 = vsel %vm2587, %v2583, 1326507024
        %v2598 = vsel %vm2586, %v2580, %v2597
        %v2599 = vsel %vm2585, %v2596, %v2598
        %v2600 = vshll.u32 %v2560, 8
        %v2601 = vmul.u32.u64.compose %v2600, %v2599
        %v2602 = vextract.low.u32 %v2601
        %v2603 = vextract.high.u32 %v2601
        %v2604 = vmul.u32.u64.compose %v2600, %v2595
        %v2605 = vextract.low.u32 %v2604
        %v2606 = vextract.high.u32 %v2604
        %v2607 = vmul.u32 %v2600, %v2591
        %v2608 = vadd.s32 %v2603, %v2605
        %vm2609 = vc.u32 %v2603, %v2605
        %v2610 = vadd.s32 %v2606, 1
        %v2611 = vsel %vm2609, %v2610, %v2606
        %v2612 = vadd.s32 %v2607, %v2611
        %v2613 = vadd.s32 %v2612, 536870912
        %v2614 = vshrl.u32 %v2613, 30
        %v2615 = vshll.u32 %v2614, 30
        %v2616 = vsub.s32 %v2612, %v2615
        %vm2617 = vcmp.lt.s32.totalorder %v2616, 0
        %v2618 = vsub.s32 0, %v2616
        %v2619 = vsel %vm2617, %v2618, %v2616
        %v2620 = vclz %v2619
        %v2621 = vsub.s32 %v2620, 2
        %vm2622 = vcmp.gt.s32.totalorder 0, %v2621
        %v2623 = vsel %vm2622, 0, %v2621
        %v2624 = vsub.s32 32, %v2623
        %v2625 = vshll.u32 %v2616, %v2623
        %v2626 = vshrl.u32 %v2608, %v2624
        %v2627 = vor.u32 %v2625, %v2626
        %v2628 = vsub.s32 4294967266, %v2623
        %v2629 = vadd.s32 %v2628, 127
        %v2630 = vshll.u32 %v2629, 23
        %v2631 = vor.u32 4788187, %v2630
        %v2632 = vand.u32 2147483647, %v2631
        %v2634 = vcvt.s32.f32 %v2627
        %v2635 = vmul.f32 %v2634, %v2632
        %v2636 = vxor.u32 %v2635, 2147483648
        %v2637 = vsel %vm2554, %v2636, %v2635
        %v2638 = vsub.s32 4, %v2614
        %v2639 = vsel %vm2554, %v2638, %v2614
        %v2640 = vsel %vm2553, %v2404, %v2637
        %v2641 = vsel %vm2553, 0, %v2639
        %v2642 = vcosq.f32.pop %v2640
        %v2643 = vsinq.f32.pop %v2640
        %vm2644 = vweird.f32 %v2404
        %v2645 = vadd.s32 %v2641, 3
        %v2646 = vand.u32 %v2645, 3
        %vm2647 = vcmp.lt.s32.totalorder %v2646, 2
        %vm2648 = vcmp.eq.s32.totalorder %v2646, 0
        %v2649 = vxor.u32 %v2643, 2147483648
        %v2650 = vsel %vm2648, %v2642, %v2649
        %vm2651 = vcmp.eq.s32.totalorder %v2646, 2
        %v2652 = vxor.u32 %v2642, 2147483648
        %v2653 = vsel %vm2651, %v2652, %v2643
        %v2654 = vsel %vm2647, %v2650, %v2653
        %v2655 = vsel %vm2644, nan, %v2654
        %v2656 = vand.u32 2147483647, %v2408
        %vm2657 = vcmp.le.f32.partialorder %v2656, 0.7853982
        %vm2658 = vcmp.lt.s32.totalorder %v2408, 0
        %v2659 = vand.u32 %v2408, 2139095040
        %v2660 = vshrl.u32 %v2659, 23
        %v2661 = vsub.s32 %v2660, 127
        %v2662 = vand.u32 2147483647, %v2408
        %v2663 = vand.u32 %v2662, 8388607
        %v2664 = vor.u32 %v2663, 8388608
        %v2665 = vsub.s32 0, %v2664
        %v2666 = vadd.s32 %v2661, 1
        %vm2667 = vcmp.gt.s32.totalorder %v2666, 0
        %v2668 = vsel %vm2667, %v2666, 0
        %v2669 = vshrl.u32 %v2668, 5
        %v2670 = vand.u32 %v2668, 31
        %v2671 = vsub.s32 32, %v2670
        %v2672 = vshrl.u32 683565275, %v2671
        %v2673 = vshll.u32 683565275, %v2670
        %v2674 = vshrl.u32 2475754826, %v2671
        %v2675 = vor.u32 %v2673, %v2674
        %v2676 = vshll.u32 2475754826, %v2670
        %v2677 = vshrl.u32 2131351028, %v2671
        %v2678 = vor.u32 %v2676, %v2677
        %v2679 = vshll.u32 2131351028, %v2670
        %v2680 = vshrl.u32 2102212464, %v2671
        %v2681 = vor.u32 %v2679, %v2680
        %v2682 = vshll.u32 2102212464, %v2670
        %v2683 = vshrl.u32 920167782, %v2671
        %v2684 = vor.u32 %v2682, %v2683
        %v2685 = vshll.u32 920167782, %v2670
        %v2686 = vshrl.u32 1326507024, %v2671
        %v2687 = vor.u32 %v2685, %v2686
        %vm2688 = vcmp.lt.s32.totalorder %v2669, 1
        %vm2689 = vcmp.lt.s32.totalorder %v2669, 2
        %vm2690 = vcmp.lt.s32.totalorder %v2669, 3
        %vm2691 = vcmp.lt.s32.totalorder %v2669, 4
        %v2692 = vsel %vm2688, %v2672, %v2675
        %v2693 = vsel %vm2691, %v2681, 2102212464
        %v2694 = vsel %vm2690, %v2678, %v2693
        %v2695 = vsel %vm2689, %v2692, %v2694
        %v2696 = vsel %vm2688, %v2675, %v2678
        %v2697 = vsel %vm2691, %v2684, 920167782
        %v2698 = vsel %vm2690, %v2681, %v2697
        %v2699 = vsel %vm2689, %v2696, %v2698
        %v2700 = vsel %vm2688, %v2678, %v2681
        %v2701 = vsel %vm2691, %v2687, 1326507024
        %v2702 = vsel %vm2690, %v2684, %v2701
        %v2703 = vsel %vm2689, %v2700, %v2702
        %v2704 = vshll.u32 %v2664, 8
        %v2705 = vmul.u32.u64.compose %v2704, %v2703
        %v2706 = vextract.low.u32 %v2705
        %v2707 = vextract.high.u32 %v2705
        %v2708 = vmul.u32.u64.compose %v2704, %v2699
        %v2709 = vextract.low.u32 %v2708
        %v2710 = vextract.high.u32 %v2708
        %v2711 = vmul.u32 %v2704, %v2695
        %v2712 = vadd.s32 %v2707, %v2709
        %vm2713 = vc.u32 %v2707, %v2709
        %v2714 = vadd.s32 %v2710, 1
        %v2715 = vsel %vm2713, %v2714, %v2710
        %v2716 = vadd.s32 %v2711, %v2715
        %v2717 = vadd.s32 %v2716, 536870912
        %v2718 = vshrl.u32 %v2717, 30
        %v2719 = vshll.u32 %v2718, 30
        %v2720 = vsub.s32 %v2716, %v2719
        %vm2721 = vcmp.lt.s32.totalorder %v2720, 0
        %v2722 = vsub.s32 0, %v2720
        %v2723 = vsel %vm2721, %v2722, %v2720
        %v2724 = vclz %v2723
        %v2725 = vsub.s32 %v2724, 2
        %vm2726 = vcmp.gt.s32.totalorder 0, %v2725
        %v2727 = vsel %vm2726, 0, %v2725
        %v2728 = vsub.s32 32, %v2727
        %v2729 = vshll.u32 %v2720, %v2727
        %v2730 = vshrl.u32 %v2712, %v2728
        %v2731 = vor.u32 %v2729, %v2730
        %v2732 = vsub.s32 4294967266, %v2727
        %v2733 = vadd.s32 %v2732, 127
        %v2734 = vshll.u32 %v2733, 23
        %v2735 = vor.u32 4788187, %v2734
        %v2736 = vand.u32 2147483647, %v2735
        %v2738 = vcvt.s32.f32 %v2731
        %v2739 = vmul.f32 %v2738, %v2736
        %v2740 = vxor.u32 %v2739, 2147483648
        %v2741 = vsel %vm2658, %v2740, %v2739
        %v2742 = vsub.s32 4, %v2718
        %v2743 = vsel %vm2658, %v2742, %v2718
        %v2744 = vsel %vm2657, %v2408, %v2741
        %v2745 = vsel %vm2657, 0, %v2743
        %v2746 = vcosq.f32.pop %v2744
        %v2747 = vsinq.f32.pop %v2744
        %vm2748 = vweird.f32 %v2408
        %v2749 = vadd.s32 %v2745, 3
        %v2750 = vand.u32 %v2749, 3
        %vm2751 = vcmp.lt.s32.totalorder %v2750, 2
        %vm2752 = vcmp.eq.s32.totalorder %v2750, 0
        %v2753 = vxor.u32 %v2747, 2147483648
        %v2754 = vsel %vm2752, %v2746, %v2753
        %vm2755 = vcmp.eq.s32.totalorder %v2750, 2
        %v2756 = vxor.u32 %v2746, 2147483648
        %v2757 = vsel %vm2755, %v2756, %v2747
        %v2758 = vsel %vm2751, %v2754, %v2757
        %v2759 = vsel %vm2748, nan, %v2758
        %v2760 = vand.u32 2147483647, %v2410
        %vm2761 = vcmp.le.f32.partialorder %v2760, 0.7853982
        %vm2762 = vcmp.lt.s32.totalorder %v2410, 0
        %v2763 = vand.u32 %v2410, 2139095040
        %v2764 = vshrl.u32 %v2763, 23
        %v2765 = vsub.s32 %v2764, 127
        %v2766 = vand.u32 2147483647, %v2410
        %v2767 = vand.u32 %v2766, 8388607
        %v2768 = vor.u32 %v2767, 8388608
        %v2769 = vsub.s32 0, %v2768
        %v2770 = vadd.s32 %v2765, 1
        %vm2771 = vcmp.gt.s32.totalorder %v2770, 0
        %v2772 = vsel %vm2771, %v2770, 0
        %v2773 = vshrl.u32 %v2772, 5
        %v2774 = vand.u32 %v2772, 31
        %v2775 = vsub.s32 32, %v2774
        %v2776 = vshrl.u32 683565275, %v2775
        %v2777 = vshll.u32 683565275, %v2774
        %v2778 = vshrl.u32 2475754826, %v2775
        %v2779 = vor.u32 %v2777, %v2778
        %v2780 = vshll.u32 2475754826, %v2774
        %v2781 = vshrl.u32 2131351028, %v2775
        %v2782 = vor.u32 %v2780, %v2781
        %v2783 = vshll.u32 2131351028, %v2774
        %v2784 = vshrl.u32 2102212464, %v2775
        %v2785 = vor.u32 %v2783, %v2784
        %v2786 = vshll.u32 2102212464, %v2774
        %v2787 = vshrl.u32 920167782, %v2775
        %v2788 = vor.u32 %v2786, %v2787
        %v2789 = vshll.u32 920167782, %v2774
        %v2790 = vshrl.u32 1326507024, %v2775
        %v2791 = vor.u32 %v2789, %v2790
        %vm2792 = vcmp.lt.s32.totalorder %v2773, 1
        %vm2793 = vcmp.lt.s32.totalorder %v2773, 2
        %vm2794 = vcmp.lt.s32.totalorder %v2773, 3
        %vm2795 = vcmp.lt.s32.totalorder %v2773, 4
        %v2796 = vsel %vm2792, %v2776, %v2779
        %v2797 = vsel %vm2795, %v2785, 2102212464
        %v2798 = vsel %vm2794, %v2782, %v2797
        %v2799 = vsel %vm2793, %v2796, %v2798
        %v2800 = vsel %vm2792, %v2779, %v2782
        %v2801 = vsel %vm2795, %v2788, 920167782
        %v2802 = vsel %vm2794, %v2785, %v2801
        %v2803 = vsel %vm2793, %v2800, %v2802
        %v2804 = vsel %vm2792, %v2782, %v2785
        %v2805 = vsel %vm2795, %v2791, 1326507024
        %v2806 = vsel %vm2794, %v2788, %v2805
        %v2807 = vsel %vm2793, %v2804, %v2806
        %v2808 = vshll.u32 %v2768, 8
        %v2809 = vmul.u32.u64.compose %v2808, %v2807
        %v2810 = vextract.low.u32 %v2809
        %v2811 = vextract.high.u32 %v2809
        %v2812 = vmul.u32.u64.compose %v2808, %v2803
        %v2813 = vextract.low.u32 %v2812
        %v2814 = vextract.high.u32 %v2812
        %v2815 = vmul.u32 %v2808, %v2799
        %v2816 = vadd.s32 %v2811, %v2813
        %vm2817 = vc.u32 %v2811, %v2813
        %v2818 = vadd.s32 %v2814, 1
        %v2819 = vsel %vm2817, %v2818, %v2814
        %v2820 = vadd.s32 %v2815, %v2819
        %v2821 = vadd.s32 %v2820, 536870912
        %v2822 = vshrl.u32 %v2821, 30
        %v2823 = vshll.u32 %v2822, 30
        %v2824 = vsub.s32 %v2820, %v2823
        %vm2825 = vcmp.lt.s32.totalorder %v2824, 0
        %v2826 = vsub.s32 0, %v2824
        %v2827 = vsel %vm2825, %v2826, %v2824
        %v2828 = vclz %v2827
        %v2829 = vsub.s32 %v2828, 2
        %vm2830 = vcmp.gt.s32.totalorder 0, %v2829
        %v2831 = vsel %vm2830, 0, %v2829
        %v2832 = vsub.s32 32, %v2831
        %v2833 = vshll.u32 %v2824, %v2831
        %v2834 = vshrl.u32 %v2816, %v2832
        %v2835 = vor.u32 %v2833, %v2834
        %v2836 = vsub.s32 4294967266, %v2831
        %v2837 = vadd.s32 %v2836, 127
        %v2838 = vshll.u32 %v2837, 23
        %v2839 = vor.u32 4788187, %v2838
        %v2840 = vand.u32 2147483647, %v2839
        %v2842 = vcvt.s32.f32 %v2835
        %v2843 = vmul.f32 %v2842, %v2840
        %v2844 = vxor.u32 %v2843, 2147483648
        %v2845 = vsel %vm2762, %v2844, %v2843
        %v2846 = vsub.s32 4, %v2822
        %v2847 = vsel %vm2762, %v2846, %v2822
        %v2848 = vsel %vm2761, %v2410, %v2845
        %v2849 = vsel %vm2761, 0, %v2847
        %v2850 = vcosq.f32.pop %v2848
        %v2851 = vsinq.f32.pop %v2848
        %vm2852 = vweird.f32 %v2410
        %v2853 = vadd.s32 %v2849, 3
        %v2854 = vand.u32 %v2853, 3
        %vm2855 = vcmp.lt.s32.totalorder %v2854, 2
        %vm2856 = vcmp.eq.s32.totalorder %v2854, 0
        %v2857 = vxor.u32 %v2851, 2147483648
        %v2858 = vsel %vm2856, %v2850, %v2857
        %vm2859 = vcmp.eq.s32.totalorder %v2854, 2
        %v2860 = vxor.u32 %v2850, 2147483648
        %v2861 = vsel %vm2859, %v2860, %v2851
        %v2862 = vsel %vm2855, %v2858, %v2861
        %v2863 = vsel %vm2852, nan, %v2862
        %v2864 = vand.u32 2147483647, %v2414
        %vm2865 = vcmp.le.f32.partialorder %v2864, 0.7853982
        %vm2866 = vcmp.lt.s32.totalorder %v2414, 0
        %v2867 = vand.u32 %v2414, 2139095040
        %v2868 = vshrl.u32 %v2867, 23
        %v2869 = vsub.s32 %v2868, 127
        %v2870 = vand.u32 2147483647, %v2414
        %v2871 = vand.u32 %v2870, 8388607
        %v2872 = vor.u32 %v2871, 8388608
        %v2873 = vsub.s32 0, %v2872
        %v2874 = vadd.s32 %v2869, 1
        %vm2875 = vcmp.gt.s32.totalorder %v2874, 0
        %v2876 = vsel %vm2875, %v2874, 0
        %v2877 = vshrl.u32 %v2876, 5
        %v2878 = vand.u32 %v2876, 31
        %v2879 = vsub.s32 32, %v2878
        %v2880 = vshrl.u32 683565275, %v2879
        %v2881 = vshll.u32 683565275, %v2878
        %v2882 = vshrl.u32 2475754826, %v2879
        %v2883 = vor.u32 %v2881, %v2882
        %v2884 = vshll.u32 2475754826, %v2878
        %v2885 = vshrl.u32 2131351028, %v2879
        %v2886 = vor.u32 %v2884, %v2885
        %v2887 = vshll.u32 2131351028, %v2878
        %v2888 = vshrl.u32 2102212464, %v2879
        %v2889 = vor.u32 %v2887, %v2888
        %v2890 = vshll.u32 2102212464, %v2878
        %v2891 = vshrl.u32 920167782, %v2879
        %v2892 = vor.u32 %v2890, %v2891
        %v2893 = vshll.u32 920167782, %v2878
        %v2894 = vshrl.u32 1326507024, %v2879
        %v2895 = vor.u32 %v2893, %v2894
        %vm2896 = vcmp.lt.s32.totalorder %v2877, 1
        %vm2897 = vcmp.lt.s32.totalorder %v2877, 2
        %vm2898 = vcmp.lt.s32.totalorder %v2877, 3
        %vm2899 = vcmp.lt.s32.totalorder %v2877, 4
        %v2900 = vsel %vm2896, %v2880, %v2883
        %v2901 = vsel %vm2899, %v2889, 2102212464
        %v2902 = vsel %vm2898, %v2886, %v2901
        %v2903 = vsel %vm2897, %v2900, %v2902
        %v2904 = vsel %vm2896, %v2883, %v2886
        %v2905 = vsel %vm2899, %v2892, 920167782
        %v2906 = vsel %vm2898, %v2889, %v2905
        %v2907 = vsel %vm2897, %v2904, %v2906
        %v2908 = vsel %vm2896, %v2886, %v2889
        %v2909 = vsel %vm2899, %v2895, 1326507024
        %v2910 = vsel %vm2898, %v2892, %v2909
        %v2911 = vsel %vm2897, %v2908, %v2910
        %v2912 = vshll.u32 %v2872, 8
        %v2913 = vmul.u32.u64.compose %v2912, %v2911
        %v2914 = vextract.low.u32 %v2913
        %v2915 = vextract.high.u32 %v2913
        %v2916 = vmul.u32.u64.compose %v2912, %v2907
        %v2917 = vextract.low.u32 %v2916
        %v2918 = vextract.high.u32 %v2916
        %v2919 = vmul.u32 %v2912, %v2903
        %v2920 = vadd.s32 %v2915, %v2917
        %vm2921 = vc.u32 %v2915, %v2917
        %v2922 = vadd.s32 %v2918, 1
        %v2923 = vsel %vm2921, %v2922, %v2918
        %v2924 = vadd.s32 %v2919, %v2923
        %v2925 = vadd.s32 %v2924, 536870912
        %v2926 = vshrl.u32 %v2925, 30
        %v2927 = vshll.u32 %v2926, 30
        %v2928 = vsub.s32 %v2924, %v2927
        %vm2929 = vcmp.lt.s32.totalorder %v2928, 0
        %v2930 = vsub.s32 0, %v2928
        %v2931 = vsel %vm2929, %v2930, %v2928
        %v2932 = vclz %v2931
        %v2933 = vsub.s32 %v2932, 2
        %vm2934 = vcmp.gt.s32.totalorder 0, %v2933
        %v2935 = vsel %vm2934, 0, %v2933
        %v2936 = vsub.s32 32, %v2935
        %v2937 = vshll.u32 %v2928, %v2935
        %v2938 = vshrl.u32 %v2920, %v2936
        %v2939 = vor.u32 %v2937, %v2938
        %v2940 = vsub.s32 4294967266, %v2935
        %v2941 = vadd.s32 %v2940, 127
        %v2942 = vshll.u32 %v2941, 23
        %v2943 = vor.u32 4788187, %v2942
        %v2944 = vand.u32 2147483647, %v2943
        %v2946 = vcvt.s32.f32 %v2939
        %v2947 = vmul.f32 %v2946, %v2944
        %v2948 = vxor.u32 %v2947, 2147483648
        %v2949 = vsel %vm2866, %v2948, %v2947
        %v2950 = vsub.s32 4, %v2926
        %v2951 = vsel %vm2866, %v2950, %v2926
        %v2952 = vsel %vm2865, %v2414, %v2949
        %v2953 = vsel %vm2865, 0, %v2951
        %v2954 = vcosq.f32.pop %v2952
        %v2955 = vsinq.f32.pop %v2952
        %vm2956 = vweird.f32 %v2414
        %v2957 = vadd.s32 %v2953, 3
        %v2958 = vand.u32 %v2957, 3
        %vm2959 = vcmp.lt.s32.totalorder %v2958, 2
        %vm2960 = vcmp.eq.s32.totalorder %v2958, 0
        %v2961 = vxor.u32 %v2955, 2147483648
        %v2962 = vsel %vm2960, %v2954, %v2961
        %vm2963 = vcmp.eq.s32.totalorder %v2958, 2
        %v2964 = vxor.u32 %v2954, 2147483648
        %v2965 = vsel %vm2963, %v2964, %v2955
        %v2966 = vsel %vm2959, %v2962, %v2965
        %v2967 = vsel %vm2956, nan, %v2966
        %v2968 = vand.u32 2147483647, %v2416
        %vm2969 = vcmp.le.f32.partialorder %v2968, 0.7853982
        %vm2970 = vcmp.lt.s32.totalorder %v2416, 0
        %v2971 = vand.u32 %v2416, 2139095040
        %v2972 = vshrl.u32 %v2971, 23
        %v2973 = vsub.s32 %v2972, 127
        %v2974 = vand.u32 2147483647, %v2416
        %v2975 = vand.u32 %v2974, 8388607
        %v2976 = vor.u32 %v2975, 8388608
        %v2977 = vsub.s32 0, %v2976
        %v2978 = vadd.s32 %v2973, 1
        %vm2979 = vcmp.gt.s32.totalorder %v2978, 0
        %v2980 = vsel %vm2979, %v2978, 0
        %v2981 = vshrl.u32 %v2980, 5
        %v2982 = vand.u32 %v2980, 31
        %v2983 = vsub.s32 32, %v2982
        %v2984 = vshrl.u32 683565275, %v2983
        %v2985 = vshll.u32 683565275, %v2982
        %v2986 = vshrl.u32 2475754826, %v2983
        %v2987 = vor.u32 %v2985, %v2986
        %v2988 = vshll.u32 2475754826, %v2982
        %v2989 = vshrl.u32 2131351028, %v2983
        %v2990 = vor.u32 %v2988, %v2989
        %v2991 = vshll.u32 2131351028, %v2982
        %v2992 = vshrl.u32 2102212464, %v2983
        %v2993 = vor.u32 %v2991, %v2992
        %v2994 = vshll.u32 2102212464, %v2982
        %v2995 = vshrl.u32 920167782, %v2983
        %v2996 = vor.u32 %v2994, %v2995
        %v2997 = vshll.u32 920167782, %v2982
        %v2998 = vshrl.u32 1326507024, %v2983
        %v2999 = vor.u32 %v2997, %v2998
        %vm3000 = vcmp.lt.s32.totalorder %v2981, 1
        %vm3001 = vcmp.lt.s32.totalorder %v2981, 2
        %vm3002 = vcmp.lt.s32.totalorder %v2981, 3
        %vm3003 = vcmp.lt.s32.totalorder %v2981, 4
        %v3004 = vsel %vm3000, %v2984, %v2987
        %v3005 = vsel %vm3003, %v2993, 2102212464
        %v3006 = vsel %vm3002, %v2990, %v3005
        %v3007 = vsel %vm3001, %v3004, %v3006
        %v3008 = vsel %vm3000, %v2987, %v2990
        %v3009 = vsel %vm3003, %v2996, 920167782
        %v3010 = vsel %vm3002, %v2993, %v3009
        %v3011 = vsel %vm3001, %v3008, %v3010
        %v3012 = vsel %vm3000, %v2990, %v2993
        %v3013 = vsel %vm3003, %v2999, 1326507024
        %v3014 = vsel %vm3002, %v2996, %v3013
        %v3015 = vsel %vm3001, %v3012, %v3014
        %v3016 = vshll.u32 %v2976, 8
        %v3017 = vmul.u32.u64.compose %v3016, %v3015
        %v3018 = vextract.low.u32 %v3017
        %v3019 = vextract.high.u32 %v3017
        %v3020 = vmul.u32.u64.compose %v3016, %v3011
        %v3021 = vextract.low.u32 %v3020
        %v3022 = vextract.high.u32 %v3020
        %v3023 = vmul.u32 %v3016, %v3007
        %v3024 = vadd.s32 %v3019, %v3021
        %vm3025 = vc.u32 %v3019, %v3021
        %v3026 = vadd.s32 %v3022, 1
        %v3027 = vsel %vm3025, %v3026, %v3022
        %v3028 = vadd.s32 %v3023, %v3027
        %v3029 = vadd.s32 %v3028, 536870912
        %v3030 = vshrl.u32 %v3029, 30
        %v3031 = vshll.u32 %v3030, 30
        %v3032 = vsub.s32 %v3028, %v3031
        %vm3033 = vcmp.lt.s32.totalorder %v3032, 0
        %v3034 = vsub.s32 0, %v3032
        %v3035 = vsel %vm3033, %v3034, %v3032
        %v3036 = vclz %v3035
        %v3037 = vsub.s32 %v3036, 2
        %vm3038 = vcmp.gt.s32.totalorder 0, %v3037
        %v3039 = vsel %vm3038, 0, %v3037
        %v3040 = vsub.s32 32, %v3039
        %v3041 = vshll.u32 %v3032, %v3039
        %v3042 = vshrl.u32 %v3024, %v3040
        %v3043 = vor.u32 %v3041, %v3042
        %v3044 = vsub.s32 4294967266, %v3039
        %v3045 = vadd.s32 %v3044, 127
        %v3046 = vshll.u32 %v3045, 23
        %v3047 = vor.u32 4788187, %v3046
        %v3048 = vand.u32 2147483647, %v3047
        %v3050 = vcvt.s32.f32 %v3043
        %v3051 = vmul.f32 %v3050, %v3048
        %v3052 = vxor.u32 %v3051, 2147483648
        %v3053 = vsel %vm2970, %v3052, %v3051
        %v3054 = vsub.s32 4, %v3030
        %v3055 = vsel %vm2970, %v3054, %v3030
        %v3056 = vsel %vm2969, %v2416, %v3053
        %v3057 = vsel %vm2969, 0, %v3055
        %v3058 = vcosq.f32.pop %v3056
        %v3059 = vsinq.f32.pop %v3056
        %vm3060 = vweird.f32 %v2416
        %v3061 = vadd.s32 %v3057, 3
        %v3062 = vand.u32 %v3061, 3
        %vm3063 = vcmp.lt.s32.totalorder %v3062, 2
        %vm3064 = vcmp.eq.s32.totalorder %v3062, 0
        %v3065 = vxor.u32 %v3059, 2147483648
        %v3066 = vsel %vm3064, %v3058, %v3065
        %vm3067 = vcmp.eq.s32.totalorder %v3062, 2
        %v3068 = vxor.u32 %v3058, 2147483648
        %v3069 = vsel %vm3067, %v3068, %v3059
        %v3070 = vsel %vm3063, %v3066, %v3069
        %v3071 = vsel %vm3060, nan, %v3070
        %v3072 = vand.u32 2147483647, %v2420
        %vm3073 = vcmp.le.f32.partialorder %v3072, 0.7853982
        %vm3074 = vcmp.lt.s32.totalorder %v2420, 0
        %v3075 = vand.u32 %v2420, 2139095040
        %v3076 = vshrl.u32 %v3075, 23
        %v3077 = vsub.s32 %v3076, 127
        %v3078 = vand.u32 2147483647, %v2420
        %v3079 = vand.u32 %v3078, 8388607
        %v3080 = vor.u32 %v3079, 8388608
        %v3081 = vsub.s32 0, %v3080
        %v3082 = vadd.s32 %v3077, 1
        %vm3083 = vcmp.gt.s32.totalorder %v3082, 0
        %v3084 = vsel %vm3083, %v3082, 0
        %v3085 = vshrl.u32 %v3084, 5
        %v3086 = vand.u32 %v3084, 31
        %v3087 = vsub.s32 32, %v3086
        %v3088 = vshrl.u32 683565275, %v3087
        %v3089 = vshll.u32 683565275, %v3086
        %v3090 = vshrl.u32 2475754826, %v3087
        %v3091 = vor.u32 %v3089, %v3090
        %v3092 = vshll.u32 2475754826, %v3086
        %v3093 = vshrl.u32 2131351028, %v3087
        %v3094 = vor.u32 %v3092, %v3093
        %v3095 = vshll.u32 2131351028, %v3086
        %v3096 = vshrl.u32 2102212464, %v3087
        %v3097 = vor.u32 %v3095, %v3096
        %v3098 = vshll.u32 2102212464, %v3086
        %v3099 = vshrl.u32 920167782, %v3087
        %v3100 = vor.u32 %v3098, %v3099
        %v3101 = vshll.u32 920167782, %v3086
        %v3102 = vshrl.u32 1326507024, %v3087
        %v3103 = vor.u32 %v3101, %v3102
        %vm3104 = vcmp.lt.s32.totalorder %v3085, 1
        %vm3105 = vcmp.lt.s32.totalorder %v3085, 2
        %vm3106 = vcmp.lt.s32.totalorder %v3085, 3
        %vm3107 = vcmp.lt.s32.totalorder %v3085, 4
        %v3108 = vsel %vm3104, %v3088, %v3091
        %v3109 = vsel %vm3107, %v3097, 2102212464
        %v3110 = vsel %vm3106, %v3094, %v3109
        %v3111 = vsel %vm3105, %v3108, %v3110
        %v3112 = vsel %vm3104, %v3091, %v3094
        %v3113 = vsel %vm3107, %v3100, 920167782
        %v3114 = vsel %vm3106, %v3097, %v3113
        %v3115 = vsel %vm3105, %v3112, %v3114
        %v3116 = vsel %vm3104, %v3094, %v3097
        %v3117 = vsel %vm3107, %v3103, 1326507024
        %v3118 = vsel %vm3106, %v3100, %v3117
        %v3119 = vsel %vm3105, %v3116, %v3118
        %v3120 = vshll.u32 %v3080, 8
        %v3121 = vmul.u32.u64.compose %v3120, %v3119
        %v3122 = vextract.low.u32 %v3121
        %v3123 = vextract.high.u32 %v3121
        %v3124 = vmul.u32.u64.compose %v3120, %v3115
        %v3125 = vextract.low.u32 %v3124
        %v3126 = vextract.high.u32 %v3124
        %v3127 = vmul.u32 %v3120, %v3111
        %v3128 = vadd.s32 %v3123, %v3125
        %vm3129 = vc.u32 %v3123, %v3125
        %v3130 = vadd.s32 %v3126, 1
        %v3131 = vsel %vm3129, %v3130, %v3126
        %v3132 = vadd.s32 %v3127, %v3131
        %v3133 = vadd.s32 %v3132, 536870912
        %v3134 = vshrl.u32 %v3133, 30
        %v3135 = vshll.u32 %v3134, 30
        %v3136 = vsub.s32 %v3132, %v3135
        %vm3137 = vcmp.lt.s32.totalorder %v3136, 0
        %v3138 = vsub.s32 0, %v3136
        %v3139 = vsel %vm3137, %v3138, %v3136
        %v3140 = vclz %v3139
        %v3141 = vsub.s32 %v3140, 2
        %vm3142 = vcmp.gt.s32.totalorder 0, %v3141
        %v3143 = vsel %vm3142, 0, %v3141
        %v3144 = vsub.s32 32, %v3143
        %v3145 = vshll.u32 %v3136, %v3143
        %v3146 = vshrl.u32 %v3128, %v3144
        %v3147 = vor.u32 %v3145, %v3146
        %v3148 = vsub.s32 4294967266, %v3143
        %v3149 = vadd.s32 %v3148, 127
        %v3150 = vshll.u32 %v3149, 23
        %v3151 = vor.u32 4788187, %v3150
        %v3152 = vand.u32 2147483647, %v3151
        %v3154 = vcvt.s32.f32 %v3147
        %v3155 = vmul.f32 %v3154, %v3152
        %v3156 = vxor.u32 %v3155, 2147483648
        %v3157 = vsel %vm3074, %v3156, %v3155
        %v3158 = vsub.s32 4, %v3134
        %v3159 = vsel %vm3074, %v3158, %v3134
        %v3160 = vsel %vm3073, %v2420, %v3157
        %v3161 = vsel %vm3073, 0, %v3159
        %v3162 = vcosq.f32.pop %v3160
        %v3163 = vsinq.f32.pop %v3160
        %vm3164 = vweird.f32 %v2420
        %v3165 = vadd.s32 %v3161, 3
        %v3166 = vand.u32 %v3165, 3
        %vm3167 = vcmp.lt.s32.totalorder %v3166, 2
        %vm3168 = vcmp.eq.s32.totalorder %v3166, 0
        %v3169 = vxor.u32 %v3163, 2147483648
        %v3170 = vsel %vm3168, %v3162, %v3169
        %vm3171 = vcmp.eq.s32.totalorder %v3166, 2
        %v3172 = vxor.u32 %v3162, 2147483648
        %v3173 = vsel %vm3171, %v3172, %v3163
        %v3174 = vsel %vm3167, %v3170, %v3173
        %v3175 = vsel %vm3164, nan, %v3174
        %v3176 = vand.u32 2147483647, %v2422
        %vm3177 = vcmp.le.f32.partialorder %v3176, 0.7853982
        %vm3178 = vcmp.lt.s32.totalorder %v2422, 0
        %v3179 = vand.u32 %v2422, 2139095040
        %v3180 = vshrl.u32 %v3179, 23
        %v3181 = vsub.s32 %v3180, 127
        %v3182 = vand.u32 2147483647, %v2422
        %v3183 = vand.u32 %v3182, 8388607
        %v3184 = vor.u32 %v3183, 8388608
        %v3185 = vsub.s32 0, %v3184
        %v3186 = vadd.s32 %v3181, 1
        %vm3187 = vcmp.gt.s32.totalorder %v3186, 0
        %v3188 = vsel %vm3187, %v3186, 0
        %v3189 = vshrl.u32 %v3188, 5
        %v3190 = vand.u32 %v3188, 31
        %v3191 = vsub.s32 32, %v3190
        %v3192 = vshrl.u32 683565275, %v3191
        %v3193 = vshll.u32 683565275, %v3190
        %v3194 = vshrl.u32 2475754826, %v3191
        %v3195 = vor.u32 %v3193, %v3194
        %v3196 = vshll.u32 2475754826, %v3190
        %v3197 = vshrl.u32 2131351028, %v3191
        %v3198 = vor.u32 %v3196, %v3197
        %v3199 = vshll.u32 2131351028, %v3190
        %v3200 = vshrl.u32 2102212464, %v3191
        %v3201 = vor.u32 %v3199, %v3200
        %v3202 = vshll.u32 2102212464, %v3190
        %v3203 = vshrl.u32 920167782, %v3191
        %v3204 = vor.u32 %v3202, %v3203
        %v3205 = vshll.u32 920167782, %v3190
        %v3206 = vshrl.u32 1326507024, %v3191
        %v3207 = vor.u32 %v3205, %v3206
        %vm3208 = vcmp.lt.s32.totalorder %v3189, 1
        %vm3209 = vcmp.lt.s32.totalorder %v3189, 2
        %vm3210 = vcmp.lt.s32.totalorder %v3189, 3
        %vm3211 = vcmp.lt.s32.totalorder %v3189, 4
        %v3212 = vsel %vm3208, %v3192, %v3195
        %v3213 = vsel %vm3211, %v3201, 2102212464
        %v3214 = vsel %vm3210, %v3198, %v3213
        %v3215 = vsel %vm3209, %v3212, %v3214
        %v3216 = vsel %vm3208, %v3195, %v3198
        %v3217 = vsel %vm3211, %v3204, 920167782
        %v3218 = vsel %vm3210, %v3201, %v3217
        %v3219 = vsel %vm3209, %v3216, %v3218
        %v3220 = vsel %vm3208, %v3198, %v3201
        %v3221 = vsel %vm3211, %v3207, 1326507024
        %v3222 = vsel %vm3210, %v3204, %v3221
        %v3223 = vsel %vm3209, %v3220, %v3222
        %v3224 = vshll.u32 %v3184, 8
        %v3225 = vmul.u32.u64.compose %v3224, %v3223
        %v3226 = vextract.low.u32 %v3225
        %v3227 = vextract.high.u32 %v3225
        %v3228 = vmul.u32.u64.compose %v3224, %v3219
        %v3229 = vextract.low.u32 %v3228
        %v3230 = vextract.high.u32 %v3228
        %v3231 = vmul.u32 %v3224, %v3215
        %v3232 = vadd.s32 %v3227, %v3229
        %vm3233 = vc.u32 %v3227, %v3229
        %v3234 = vadd.s32 %v3230, 1
        %v3235 = vsel %vm3233, %v3234, %v3230
        %v3236 = vadd.s32 %v3231, %v3235
        %v3237 = vadd.s32 %v3236, 536870912
        %v3238 = vshrl.u32 %v3237, 30
        %v3239 = vshll.u32 %v3238, 30
        %v3240 = vsub.s32 %v3236, %v3239
        %vm3241 = vcmp.lt.s32.totalorder %v3240, 0
        %v3242 = vsub.s32 0, %v3240
        %v3243 = vsel %vm3241, %v3242, %v3240
        %v3244 = vclz %v3243
        %v3245 = vsub.s32 %v3244, 2
        %vm3246 = vcmp.gt.s32.totalorder 0, %v3245
        %v3247 = vsel %vm3246, 0, %v3245
        %v3248 = vsub.s32 32, %v3247
        %v3249 = vshll.u32 %v3240, %v3247
        %v3250 = vshrl.u32 %v3232, %v3248
        %v3251 = vor.u32 %v3249, %v3250
        %v3252 = vsub.s32 4294967266, %v3247
        %v3253 = vadd.s32 %v3252, 127
        %v3254 = vshll.u32 %v3253, 23
        %v3255 = vor.u32 4788187, %v3254
        %v3256 = vand.u32 2147483647, %v3255
        %v3258 = vcvt.s32.f32 %v3251
        %v3259 = vmul.f32 %v3258, %v3256
        %v3260 = vxor.u32 %v3259, 2147483648
        %v3261 = vsel %vm3178, %v3260, %v3259
        %v3262 = vsub.s32 4, %v3238
        %v3263 = vsel %vm3178, %v3262, %v3238
        %v3264 = vsel %vm3177, %v2422, %v3261
        %v3265 = vsel %vm3177, 0, %v3263
        %v3266 = vcosq.f32.pop %v3264
        %v3267 = vsinq.f32.pop %v3264
        %vm3268 = vweird.f32 %v2422
        %v3269 = vadd.s32 %v3265, 3
        %v3270 = vand.u32 %v3269, 3
        %vm3271 = vcmp.lt.s32.totalorder %v3270, 2
        %vm3272 = vcmp.eq.s32.totalorder %v3270, 0
        %v3273 = vxor.u32 %v3267, 2147483648
        %v3274 = vsel %vm3272, %v3266, %v3273
        %vm3275 = vcmp.eq.s32.totalorder %v3270, 2
        %v3276 = vxor.u32 %v3266, 2147483648
        %v3277 = vsel %vm3275, %v3276, %v3267
        %v3278 = vsel %vm3271, %v3274, %v3277
        %v3279 = vsel %vm3268, nan, %v3278
        %v3280 = vand.u32 2147483647, %v2426
        %vm3281 = vcmp.le.f32.partialorder %v3280, 0.7853982
        %vm3282 = vcmp.lt.s32.totalorder %v2426, 0
        %v3283 = vand.u32 %v2426, 2139095040
        %v3284 = vshrl.u32 %v3283, 23
        %v3285 = vsub.s32 %v3284, 127
        %v3286 = vand.u32 2147483647, %v2426
        %v3287 = vand.u32 %v3286, 8388607
        %v3288 = vor.u32 %v3287, 8388608
        %v3289 = vsub.s32 0, %v3288
        %v3290 = vadd.s32 %v3285, 1
        %vm3291 = vcmp.gt.s32.totalorder %v3290, 0
        %v3292 = vsel %vm3291, %v3290, 0
        %v3293 = vshrl.u32 %v3292, 5
        %v3294 = vand.u32 %v3292, 31
        %v3295 = vsub.s32 32, %v3294
        %v3296 = vshrl.u32 683565275, %v3295
        %v3297 = vshll.u32 683565275, %v3294
        %v3298 = vshrl.u32 2475754826, %v3295
        %v3299 = vor.u32 %v3297, %v3298
        %v3300 = vshll.u32 2475754826, %v3294
        %v3301 = vshrl.u32 2131351028, %v3295
        %v3302 = vor.u32 %v3300, %v3301
        %v3303 = vshll.u32 2131351028, %v3294
        %v3304 = vshrl.u32 2102212464, %v3295
        %v3305 = vor.u32 %v3303, %v3304
        %v3306 = vshll.u32 2102212464, %v3294
        %v3307 = vshrl.u32 920167782, %v3295
        %v3308 = vor.u32 %v3306, %v3307
        %v3309 = vshll.u32 920167782, %v3294
        %v3310 = vshrl.u32 1326507024, %v3295
        %v3311 = vor.u32 %v3309, %v3310
        %vm3312 = vcmp.lt.s32.totalorder %v3293, 1
        %vm3313 = vcmp.lt.s32.totalorder %v3293, 2
        %vm3314 = vcmp.lt.s32.totalorder %v3293, 3
        %vm3315 = vcmp.lt.s32.totalorder %v3293, 4
        %v3316 = vsel %vm3312, %v3296, %v3299
        %v3317 = vsel %vm3315, %v3305, 2102212464
        %v3318 = vsel %vm3314, %v3302, %v3317
        %v3319 = vsel %vm3313, %v3316, %v3318
        %v3320 = vsel %vm3312, %v3299, %v3302
        %v3321 = vsel %vm3315, %v3308, 920167782
        %v3322 = vsel %vm3314, %v3305, %v3321
        %v3323 = vsel %vm3313, %v3320, %v3322
        %v3324 = vsel %vm3312, %v3302, %v3305
        %v3325 = vsel %vm3315, %v3311, 1326507024
        %v3326 = vsel %vm3314, %v3308, %v3325
        %v3327 = vsel %vm3313, %v3324, %v3326
        %v3328 = vshll.u32 %v3288, 8
        %v3329 = vmul.u32.u64.compose %v3328, %v3327
        %v3330 = vextract.low.u32 %v3329
        %v3331 = vextract.high.u32 %v3329
        %v3332 = vmul.u32.u64.compose %v3328, %v3323
        %v3333 = vextract.low.u32 %v3332
        %v3334 = vextract.high.u32 %v3332
        %v3335 = vmul.u32 %v3328, %v3319
        %v3336 = vadd.s32 %v3331, %v3333
        %vm3337 = vc.u32 %v3331, %v3333
        %v3338 = vadd.s32 %v3334, 1
        %v3339 = vsel %vm3337, %v3338, %v3334
        %v3340 = vadd.s32 %v3335, %v3339
        %v3341 = vadd.s32 %v3340, 536870912
        %v3342 = vshrl.u32 %v3341, 30
        %v3343 = vshll.u32 %v3342, 30
        %v3344 = vsub.s32 %v3340, %v3343
        %vm3345 = vcmp.lt.s32.totalorder %v3344, 0
        %v3346 = vsub.s32 0, %v3344
        %v3347 = vsel %vm3345, %v3346, %v3344
        %v3348 = vclz %v3347
        %v3349 = vsub.s32 %v3348, 2
        %vm3350 = vcmp.gt.s32.totalorder 0, %v3349
        %v3351 = vsel %vm3350, 0, %v3349
        %v3352 = vsub.s32 32, %v3351
        %v3353 = vshll.u32 %v3344, %v3351
        %v3354 = vshrl.u32 %v3336, %v3352
        %v3355 = vor.u32 %v3353, %v3354
        %v3356 = vsub.s32 4294967266, %v3351
        %v3357 = vadd.s32 %v3356, 127
        %v3358 = vshll.u32 %v3357, 23
        %v3359 = vor.u32 4788187, %v3358
        %v3360 = vand.u32 2147483647, %v3359
        %v3362 = vcvt.s32.f32 %v3355
        %v3363 = vmul.f32 %v3362, %v3360
        %v3364 = vxor.u32 %v3363, 2147483648
        %v3365 = vsel %vm3282, %v3364, %v3363
        %v3366 = vsub.s32 4, %v3342
        %v3367 = vsel %vm3282, %v3366, %v3342
        %v3368 = vsel %vm3281, %v2426, %v3365
        %v3369 = vsel %vm3281, 0, %v3367
        %v3370 = vcosq.f32.pop %v3368
        %v3371 = vsinq.f32.pop %v3368
        %vm3372 = vweird.f32 %v2426
        %v3373 = vadd.s32 %v3369, 3
        %v3374 = vand.u32 %v3373, 3
        %vm3375 = vcmp.lt.s32.totalorder %v3374, 2
        %vm3376 = vcmp.eq.s32.totalorder %v3374, 0
        %v3377 = vxor.u32 %v3371, 2147483648
        %v3378 = vsel %vm3376, %v3370, %v3377
        %vm3379 = vcmp.eq.s32.totalorder %v3374, 2
        %v3380 = vxor.u32 %v3370, 2147483648
        %v3381 = vsel %vm3379, %v3380, %v3371
        %v3382 = vsel %vm3375, %v3378, %v3381
        %v3383 = vsel %vm3372, nan, %v3382
        %v3384 = vand.u32 2147483647, %v2428
        %vm3385 = vcmp.le.f32.partialorder %v3384, 0.7853982
        %vm3386 = vcmp.lt.s32.totalorder %v2428, 0
        %v3387 = vand.u32 %v2428, 2139095040
        %v3388 = vshrl.u32 %v3387, 23
        %v3389 = vsub.s32 %v3388, 127
        %v3390 = vand.u32 2147483647, %v2428
        %v3391 = vand.u32 %v3390, 8388607
        %v3392 = vor.u32 %v3391, 8388608
        %v3393 = vsub.s32 0, %v3392
        %v3394 = vadd.s32 %v3389, 1
        %vm3395 = vcmp.gt.s32.totalorder %v3394, 0
        %v3396 = vsel %vm3395, %v3394, 0
        %v3397 = vshrl.u32 %v3396, 5
        %v3398 = vand.u32 %v3396, 31
        %v3399 = vsub.s32 32, %v3398
        %v3400 = vshrl.u32 683565275, %v3399
        %v3401 = vshll.u32 683565275, %v3398
        %v3402 = vshrl.u32 2475754826, %v3399
        %v3403 = vor.u32 %v3401, %v3402
        %v3404 = vshll.u32 2475754826, %v3398
        %v3405 = vshrl.u32 2131351028, %v3399
        %v3406 = vor.u32 %v3404, %v3405
        %v3407 = vshll.u32 2131351028, %v3398
        %v3408 = vshrl.u32 2102212464, %v3399
        %v3409 = vor.u32 %v3407, %v3408
        %v3410 = vshll.u32 2102212464, %v3398
        %v3411 = vshrl.u32 920167782, %v3399
        %v3412 = vor.u32 %v3410, %v3411
        %v3413 = vshll.u32 920167782, %v3398
        %v3414 = vshrl.u32 1326507024, %v3399
        %v3415 = vor.u32 %v3413, %v3414
        %vm3416 = vcmp.lt.s32.totalorder %v3397, 1
        %vm3417 = vcmp.lt.s32.totalorder %v3397, 2
        %vm3418 = vcmp.lt.s32.totalorder %v3397, 3
        %vm3419 = vcmp.lt.s32.totalorder %v3397, 4
        %v3420 = vsel %vm3416, %v3400, %v3403
        %v3421 = vsel %vm3419, %v3409, 2102212464
        %v3422 = vsel %vm3418, %v3406, %v3421
        %v3423 = vsel %vm3417, %v3420, %v3422
        %v3424 = vsel %vm3416, %v3403, %v3406
        %v3425 = vsel %vm3419, %v3412, 920167782
        %v3426 = vsel %vm3418, %v3409, %v3425
        %v3427 = vsel %vm3417, %v3424, %v3426
        %v3428 = vsel %vm3416, %v3406, %v3409
        %v3429 = vsel %vm3419, %v3415, 1326507024
        %v3430 = vsel %vm3418, %v3412, %v3429
        %v3431 = vsel %vm3417, %v3428, %v3430
        %v3432 = vshll.u32 %v3392, 8
        %v3433 = vmul.u32.u64.compose %v3432, %v3431
        %v3434 = vextract.low.u32 %v3433
        %v3435 = vextract.high.u32 %v3433
        %v3436 = vmul.u32.u64.compose %v3432, %v3427
        %v3437 = vextract.low.u32 %v3436
        %v3438 = vextract.high.u32 %v3436
        %v3439 = vmul.u32 %v3432, %v3423
        %v3440 = vadd.s32 %v3435, %v3437
        %vm3441 = vc.u32 %v3435, %v3437
        %v3442 = vadd.s32 %v3438, 1
        %v3443 = vsel %vm3441, %v3442, %v3438
        %v3444 = vadd.s32 %v3439, %v3443
        %v3445 = vadd.s32 %v3444, 536870912
        %v3446 = vshrl.u32 %v3445, 30
        %v3447 = vshll.u32 %v3446, 30
        %v3448 = vsub.s32 %v3444, %v3447
        %vm3449 = vcmp.lt.s32.totalorder %v3448, 0
        %v3450 = vsub.s32 0, %v3448
        %v3451 = vsel %vm3449, %v3450, %v3448
        %v3452 = vclz %v3451
        %v3453 = vsub.s32 %v3452, 2
        %vm3454 = vcmp.gt.s32.totalorder 0, %v3453
        %v3455 = vsel %vm3454, 0, %v3453
        %v3456 = vsub.s32 32, %v3455
        %v3457 = vshll.u32 %v3448, %v3455
        %v3458 = vshrl.u32 %v3440, %v3456
        %v3459 = vor.u32 %v3457, %v3458
        %v3460 = vsub.s32 4294967266, %v3455
        %v3461 = vadd.s32 %v3460, 127
        %v3462 = vshll.u32 %v3461, 23
        %v3463 = vor.u32 4788187, %v3462
        %v3464 = vand.u32 2147483647, %v3463
        %v3466 = vcvt.s32.f32 %v3459
        %v3467 = vmul.f32 %v3466, %v3464
        %v3468 = vxor.u32 %v3467, 2147483648
        %v3469 = vsel %vm3386, %v3468, %v3467
        %v3470 = vsub.s32 4, %v3446
        %v3471 = vsel %vm3386, %v3470, %v3446
        %v3472 = vsel %vm3385, %v2428, %v3469
        %v3473 = vsel %vm3385, 0, %v3471
        %v3474 = vcosq.f32.pop %v3472
        %v3475 = vsinq.f32.pop %v3472
        %vm3476 = vweird.f32 %v2428
        %v3477 = vadd.s32 %v3473, 3
        %v3478 = vand.u32 %v3477, 3
        %vm3479 = vcmp.lt.s32.totalorder %v3478, 2
        %vm3480 = vcmp.eq.s32.totalorder %v3478, 0
        %v3481 = vxor.u32 %v3475, 2147483648
        %v3482 = vsel %vm3480, %v3474, %v3481
        %vm3483 = vcmp.eq.s32.totalorder %v3478, 2
        %v3484 = vxor.u32 %v3474, 2147483648
        %v3485 = vsel %vm3483, %v3484, %v3475
        %v3486 = vsel %vm3479, %v3482, %v3485
        %v3487 = vsel %vm3476, nan, %v3486
        %v3488 = vand.u32 2147483647, %v2432
        %vm3489 = vcmp.le.f32.partialorder %v3488, 0.7853982
        %vm3490 = vcmp.lt.s32.totalorder %v2432, 0
        %v3491 = vand.u32 %v2432, 2139095040
        %v3492 = vshrl.u32 %v3491, 23
        %v3493 = vsub.s32 %v3492, 127
        %v3494 = vand.u32 2147483647, %v2432
        %v3495 = vand.u32 %v3494, 8388607
        %v3496 = vor.u32 %v3495, 8388608
        %v3497 = vsub.s32 0, %v3496
        %v3498 = vadd.s32 %v3493, 1
        %vm3499 = vcmp.gt.s32.totalorder %v3498, 0
        %v3500 = vsel %vm3499, %v3498, 0
        %v3501 = vshrl.u32 %v3500, 5
        %v3502 = vand.u32 %v3500, 31
        %v3503 = vsub.s32 32, %v3502
        %v3504 = vshrl.u32 683565275, %v3503
        %v3505 = vshll.u32 683565275, %v3502
        %v3506 = vshrl.u32 2475754826, %v3503
        %v3507 = vor.u32 %v3505, %v3506
        %v3508 = vshll.u32 2475754826, %v3502
        %v3509 = vshrl.u32 2131351028, %v3503
        %v3510 = vor.u32 %v3508, %v3509
        %v3511 = vshll.u32 2131351028, %v3502
        %v3512 = vshrl.u32 2102212464, %v3503
        %v3513 = vor.u32 %v3511, %v3512
        %v3514 = vshll.u32 2102212464, %v3502
        %v3515 = vshrl.u32 920167782, %v3503
        %v3516 = vor.u32 %v3514, %v3515
        %v3517 = vshll.u32 920167782, %v3502
        %v3518 = vshrl.u32 1326507024, %v3503
        %v3519 = vor.u32 %v3517, %v3518
        %vm3520 = vcmp.lt.s32.totalorder %v3501, 1
        %vm3521 = vcmp.lt.s32.totalorder %v3501, 2
        %vm3522 = vcmp.lt.s32.totalorder %v3501, 3
        %vm3523 = vcmp.lt.s32.totalorder %v3501, 4
        %v3524 = vsel %vm3520, %v3504, %v3507
        %v3525 = vsel %vm3523, %v3513, 2102212464
        %v3526 = vsel %vm3522, %v3510, %v3525
        %v3527 = vsel %vm3521, %v3524, %v3526
        %v3528 = vsel %vm3520, %v3507, %v3510
        %v3529 = vsel %vm3523, %v3516, 920167782
        %v3530 = vsel %vm3522, %v3513, %v3529
        %v3531 = vsel %vm3521, %v3528, %v3530
        %v3532 = vsel %vm3520, %v3510, %v3513
        %v3533 = vsel %vm3523, %v3519, 1326507024
        %v3534 = vsel %vm3522, %v3516, %v3533
        %v3535 = vsel %vm3521, %v3532, %v3534
        %v3536 = vshll.u32 %v3496, 8
        %v3537 = vmul.u32.u64.compose %v3536, %v3535
        %v3538 = vextract.low.u32 %v3537
        %v3539 = vextract.high.u32 %v3537
        %v3540 = vmul.u32.u64.compose %v3536, %v3531
        %v3541 = vextract.low.u32 %v3540
        %v3542 = vextract.high.u32 %v3540
        %v3543 = vmul.u32 %v3536, %v3527
        %v3544 = vadd.s32 %v3539, %v3541
        %vm3545 = vc.u32 %v3539, %v3541
        %v3546 = vadd.s32 %v3542, 1
        %v3547 = vsel %vm3545, %v3546, %v3542
        %v3548 = vadd.s32 %v3543, %v3547
        %v3549 = vadd.s32 %v3548, 536870912
        %v3550 = vshrl.u32 %v3549, 30
        %v3551 = vshll.u32 %v3550, 30
        %v3552 = vsub.s32 %v3548, %v3551
        %vm3553 = vcmp.lt.s32.totalorder %v3552, 0
        %v3554 = vsub.s32 0, %v3552
        %v3555 = vsel %vm3553, %v3554, %v3552
        %v3556 = vclz %v3555
        %v3557 = vsub.s32 %v3556, 2
        %vm3558 = vcmp.gt.s32.totalorder 0, %v3557
        %v3559 = vsel %vm3558, 0, %v3557
        %v3560 = vsub.s32 32, %v3559
        %v3561 = vshll.u32 %v3552, %v3559
        %v3562 = vshrl.u32 %v3544, %v3560
        %v3563 = vor.u32 %v3561, %v3562
        %v3564 = vsub.s32 4294967266, %v3559
        %v3565 = vadd.s32 %v3564, 127
        %v3566 = vshll.u32 %v3565, 23
        %v3567 = vor.u32 4788187, %v3566
        %v3568 = vand.u32 2147483647, %v3567
        %v3570 = vcvt.s32.f32 %v3563
        %v3571 = vmul.f32 %v3570, %v3568
        %v3572 = vxor.u32 %v3571, 2147483648
        %v3573 = vsel %vm3490, %v3572, %v3571
        %v3574 = vsub.s32 4, %v3550
        %v3575 = vsel %vm3490, %v3574, %v3550
        %v3576 = vsel %vm3489, %v2432, %v3573
        %v3577 = vsel %vm3489, 0, %v3575
        %v3578 = vcosq.f32.pop %v3576
        %v3579 = vsinq.f32.pop %v3576
        %vm3580 = vweird.f32 %v2432
        %v3581 = vadd.s32 %v3577, 3
        %v3582 = vand.u32 %v3581, 3
        %vm3583 = vcmp.lt.s32.totalorder %v3582, 2
        %vm3584 = vcmp.eq.s32.totalorder %v3582, 0
        %v3585 = vxor.u32 %v3579, 2147483648
        %v3586 = vsel %vm3584, %v3578, %v3585
        %vm3587 = vcmp.eq.s32.totalorder %v3582, 2
        %v3588 = vxor.u32 %v3578, 2147483648
        %v3589 = vsel %vm3587, %v3588, %v3579
        %v3590 = vsel %vm3583, %v3586, %v3589
        %v3591 = vsel %vm3580, nan, %v3590
        %v3592 = vand.u32 2147483647, %v2434
        %vm3593 = vcmp.le.f32.partialorder %v3592, 0.7853982
        %vm3594 = vcmp.lt.s32.totalorder %v2434, 0
        %v3595 = vand.u32 %v2434, 2139095040
        %v3596 = vshrl.u32 %v3595, 23
        %v3597 = vsub.s32 %v3596, 127
        %v3598 = vand.u32 2147483647, %v2434
        %v3599 = vand.u32 %v3598, 8388607
        %v3600 = vor.u32 %v3599, 8388608
        %v3601 = vsub.s32 0, %v3600
        %v3602 = vadd.s32 %v3597, 1
        %vm3603 = vcmp.gt.s32.totalorder %v3602, 0
        %v3604 = vsel %vm3603, %v3602, 0
        %v3605 = vshrl.u32 %v3604, 5
        %v3606 = vand.u32 %v3604, 31
        %v3607 = vsub.s32 32, %v3606
        %v3608 = vshrl.u32 683565275, %v3607
        %v3609 = vshll.u32 683565275, %v3606
        %v3610 = vshrl.u32 2475754826, %v3607
        %v3611 = vor.u32 %v3609, %v3610
        %v3612 = vshll.u32 2475754826, %v3606
        %v3613 = vshrl.u32 2131351028, %v3607
        %v3614 = vor.u32 %v3612, %v3613
        %v3615 = vshll.u32 2131351028, %v3606
        %v3616 = vshrl.u32 2102212464, %v3607
        %v3617 = vor.u32 %v3615, %v3616
        %v3618 = vshll.u32 2102212464, %v3606
        %v3619 = vshrl.u32 920167782, %v3607
        %v3620 = vor.u32 %v3618, %v3619
        %v3621 = vshll.u32 920167782, %v3606
        %v3622 = vshrl.u32 1326507024, %v3607
        %v3623 = vor.u32 %v3621, %v3622
        %vm3624 = vcmp.lt.s32.totalorder %v3605, 1
        %vm3625 = vcmp.lt.s32.totalorder %v3605, 2
        %vm3626 = vcmp.lt.s32.totalorder %v3605, 3
        %vm3627 = vcmp.lt.s32.totalorder %v3605, 4
        %v3628 = vsel %vm3624, %v3608, %v3611
        %v3629 = vsel %vm3627, %v3617, 2102212464
        %v3630 = vsel %vm3626, %v3614, %v3629
        %v3631 = vsel %vm3625, %v3628, %v3630
        %v3632 = vsel %vm3624, %v3611, %v3614
        %v3633 = vsel %vm3627, %v3620, 920167782
        %v3634 = vsel %vm3626, %v3617, %v3633
        %v3635 = vsel %vm3625, %v3632, %v3634
        %v3636 = vsel %vm3624, %v3614, %v3617
        %v3637 = vsel %vm3627, %v3623, 1326507024
        %v3638 = vsel %vm3626, %v3620, %v3637
        %v3639 = vsel %vm3625, %v3636, %v3638
        %v3640 = vshll.u32 %v3600, 8
        %v3641 = vmul.u32.u64.compose %v3640, %v3639
        %v3642 = vextract.low.u32 %v3641
        %v3643 = vextract.high.u32 %v3641
        %v3644 = vmul.u32.u64.compose %v3640, %v3635
        %v3645 = vextract.low.u32 %v3644
        %v3646 = vextract.high.u32 %v3644
        %v3647 = vmul.u32 %v3640, %v3631
        %v3648 = vadd.s32 %v3643, %v3645
        %vm3649 = vc.u32 %v3643, %v3645
        %v3650 = vadd.s32 %v3646, 1
        %v3651 = vsel %vm3649, %v3650, %v3646
        %v3652 = vadd.s32 %v3647, %v3651
        %v3653 = vadd.s32 %v3652, 536870912
        %v3654 = vshrl.u32 %v3653, 30
        %v3655 = vshll.u32 %v3654, 30
        %v3656 = vsub.s32 %v3652, %v3655
        %vm3657 = vcmp.lt.s32.totalorder %v3656, 0
        %v3658 = vsub.s32 0, %v3656
        %v3659 = vsel %vm3657, %v3658, %v3656
        %v3660 = vclz %v3659
        %v3661 = vsub.s32 %v3660, 2
        %vm3662 = vcmp.gt.s32.totalorder 0, %v3661
        %v3663 = vsel %vm3662, 0, %v3661
        %v3664 = vsub.s32 32, %v3663
        %v3665 = vshll.u32 %v3656, %v3663
        %v3666 = vshrl.u32 %v3648, %v3664
        %v3667 = vor.u32 %v3665, %v3666
        %v3668 = vsub.s32 4294967266, %v3663
        %v3669 = vadd.s32 %v3668, 127
        %v3670 = vshll.u32 %v3669, 23
        %v3671 = vor.u32 4788187, %v3670
        %v3672 = vand.u32 2147483647, %v3671
        %v3674 = vcvt.s32.f32 %v3667
        %v3675 = vmul.f32 %v3674, %v3672
        %v3676 = vxor.u32 %v3675, 2147483648
        %v3677 = vsel %vm3594, %v3676, %v3675
        %v3678 = vsub.s32 4, %v3654
        %v3679 = vsel %vm3594, %v3678, %v3654
        %v3680 = vsel %vm3593, %v2434, %v3677
        %v3681 = vsel %vm3593, 0, %v3679
        %v3682 = vcosq.f32.pop %v3680
        %v3683 = vsinq.f32.pop %v3680
        %vm3684 = vweird.f32 %v2434
        %v3685 = vadd.s32 %v3681, 3
        %v3686 = vand.u32 %v3685, 3
        %vm3687 = vcmp.lt.s32.totalorder %v3686, 2
        %vm3688 = vcmp.eq.s32.totalorder %v3686, 0
        %v3689 = vxor.u32 %v3683, 2147483648
        %v3690 = vsel %vm3688, %v3682, %v3689
        %vm3691 = vcmp.eq.s32.totalorder %v3686, 2
        %v3692 = vxor.u32 %v3682, 2147483648
        %v3693 = vsel %vm3691, %v3692, %v3683
        %v3694 = vsel %vm3687, %v3690, %v3693
        %v3695 = vsel %vm3684, nan, %v3694
        %v3696 = vand.u32 2147483647, %v2438
        %vm3697 = vcmp.le.f32.partialorder %v3696, 0.7853982
        %vm3698 = vcmp.lt.s32.totalorder %v2438, 0
        %v3699 = vand.u32 %v2438, 2139095040
        %v3700 = vshrl.u32 %v3699, 23
        %v3701 = vsub.s32 %v3700, 127
        %v3702 = vand.u32 2147483647, %v2438
        %v3703 = vand.u32 %v3702, 8388607
        %v3704 = vor.u32 %v3703, 8388608
        %v3705 = vsub.s32 0, %v3704
        %v3706 = vadd.s32 %v3701, 1
        %vm3707 = vcmp.gt.s32.totalorder %v3706, 0
        %v3708 = vsel %vm3707, %v3706, 0
        %v3709 = vshrl.u32 %v3708, 5
        %v3710 = vand.u32 %v3708, 31
        %v3711 = vsub.s32 32, %v3710
        %v3712 = vshrl.u32 683565275, %v3711
        %v3713 = vshll.u32 683565275, %v3710
        %v3714 = vshrl.u32 2475754826, %v3711
        %v3715 = vor.u32 %v3713, %v3714
        %v3716 = vshll.u32 2475754826, %v3710
        %v3717 = vshrl.u32 2131351028, %v3711
        %v3718 = vor.u32 %v3716, %v3717
        %v3719 = vshll.u32 2131351028, %v3710
        %v3720 = vshrl.u32 2102212464, %v3711
        %v3721 = vor.u32 %v3719, %v3720
        %v3722 = vshll.u32 2102212464, %v3710
        %v3723 = vshrl.u32 920167782, %v3711
        %v3724 = vor.u32 %v3722, %v3723
        %v3725 = vshll.u32 920167782, %v3710
        %v3726 = vshrl.u32 1326507024, %v3711
        %v3727 = vor.u32 %v3725, %v3726
        %vm3728 = vcmp.lt.s32.totalorder %v3709, 1
        %vm3729 = vcmp.lt.s32.totalorder %v3709, 2
        %vm3730 = vcmp.lt.s32.totalorder %v3709, 3
        %vm3731 = vcmp.lt.s32.totalorder %v3709, 4
        %v3732 = vsel %vm3728, %v3712, %v3715
        %v3733 = vsel %vm3731, %v3721, 2102212464
        %v3734 = vsel %vm3730, %v3718, %v3733
        %v3735 = vsel %vm3729, %v3732, %v3734
        %v3736 = vsel %vm3728, %v3715, %v3718
        %v3737 = vsel %vm3731, %v3724, 920167782
        %v3738 = vsel %vm3730, %v3721, %v3737
        %v3739 = vsel %vm3729, %v3736, %v3738
        %v3740 = vsel %vm3728, %v3718, %v3721
        %v3741 = vsel %vm3731, %v3727, 1326507024
        %v3742 = vsel %vm3730, %v3724, %v3741
        %v3743 = vsel %vm3729, %v3740, %v3742
        %v3744 = vshll.u32 %v3704, 8
        %v3745 = vmul.u32.u64.compose %v3744, %v3743
        %v3746 = vextract.low.u32 %v3745
        %v3747 = vextract.high.u32 %v3745
        %v3748 = vmul.u32.u64.compose %v3744, %v3739
        %v3749 = vextract.low.u32 %v3748
        %v3750 = vextract.high.u32 %v3748
        %v3751 = vmul.u32 %v3744, %v3735
        %v3752 = vadd.s32 %v3747, %v3749
        %vm3753 = vc.u32 %v3747, %v3749
        %v3754 = vadd.s32 %v3750, 1
        %v3755 = vsel %vm3753, %v3754, %v3750
        %v3756 = vadd.s32 %v3751, %v3755
        %v3757 = vadd.s32 %v3756, 536870912
        %v3758 = vshrl.u32 %v3757, 30
        %v3759 = vshll.u32 %v3758, 30
        %v3760 = vsub.s32 %v3756, %v3759
        %vm3761 = vcmp.lt.s32.totalorder %v3760, 0
        %v3762 = vsub.s32 0, %v3760
        %v3763 = vsel %vm3761, %v3762, %v3760
        %v3764 = vclz %v3763
        %v3765 = vsub.s32 %v3764, 2
        %vm3766 = vcmp.gt.s32.totalorder 0, %v3765
        %v3767 = vsel %vm3766, 0, %v3765
        %v3768 = vsub.s32 32, %v3767
        %v3769 = vshll.u32 %v3760, %v3767
        %v3770 = vshrl.u32 %v3752, %v3768
        %v3771 = vor.u32 %v3769, %v3770
        %v3772 = vsub.s32 4294967266, %v3767
        %v3773 = vadd.s32 %v3772, 127
        %v3774 = vshll.u32 %v3773, 23
        %v3775 = vor.u32 4788187, %v3774
        %v3776 = vand.u32 2147483647, %v3775
        %v3778 = vcvt.s32.f32 %v3771
        %v3779 = vmul.f32 %v3778, %v3776
        %v3780 = vxor.u32 %v3779, 2147483648
        %v3781 = vsel %vm3698, %v3780, %v3779
        %v3782 = vsub.s32 4, %v3758
        %v3783 = vsel %vm3698, %v3782, %v3758
        %v3784 = vsel %vm3697, %v2438, %v3781
        %v3785 = vsel %vm3697, 0, %v3783
        %v3786 = vcosq.f32.pop %v3784
        %v3787 = vsinq.f32.pop %v3784
        %vm3788 = vweird.f32 %v2438
        %v3789 = vadd.s32 %v3785, 3
        %v3790 = vand.u32 %v3789, 3
        %vm3791 = vcmp.lt.s32.totalorder %v3790, 2
        %vm3792 = vcmp.eq.s32.totalorder %v3790, 0
        %v3793 = vxor.u32 %v3787, 2147483648
        %v3794 = vsel %vm3792, %v3786, %v3793
        %vm3795 = vcmp.eq.s32.totalorder %v3790, 2
        %v3796 = vxor.u32 %v3786, 2147483648
        %v3797 = vsel %vm3795, %v3796, %v3787
        %v3798 = vsel %vm3791, %v3794, %v3797
        %v3799 = vsel %vm3788, nan, %v3798
        %v3800 = vand.u32 2147483647, %v2440
        %vm3801 = vcmp.le.f32.partialorder %v3800, 0.7853982
        %vm3802 = vcmp.lt.s32.totalorder %v2440, 0
        %v3803 = vand.u32 %v2440, 2139095040
        %v3804 = vshrl.u32 %v3803, 23
        %v3805 = vsub.s32 %v3804, 127
        %v3806 = vand.u32 2147483647, %v2440
        %v3807 = vand.u32 %v3806, 8388607
        %v3808 = vor.u32 %v3807, 8388608
        %v3809 = vsub.s32 0, %v3808
        %v3810 = vadd.s32 %v3805, 1
        %vm3811 = vcmp.gt.s32.totalorder %v3810, 0
        %v3812 = vsel %vm3811, %v3810, 0
        %v3813 = vshrl.u32 %v3812, 5
        %v3814 = vand.u32 %v3812, 31
        %v3815 = vsub.s32 32, %v3814
        %v3816 = vshrl.u32 683565275, %v3815
        %v3817 = vshll.u32 683565275, %v3814
        %v3818 = vshrl.u32 2475754826, %v3815
        %v3819 = vor.u32 %v3817, %v3818
        %v3820 = vshll.u32 2475754826, %v3814
        %v3821 = vshrl.u32 2131351028, %v3815
        %v3822 = vor.u32 %v3820, %v3821
        %v3823 = vshll.u32 2131351028, %v3814
        %v3824 = vshrl.u32 2102212464, %v3815
        %v3825 = vor.u32 %v3823, %v3824
        %v3826 = vshll.u32 2102212464, %v3814
        %v3827 = vshrl.u32 920167782, %v3815
        %v3828 = vor.u32 %v3826, %v3827
        %v3829 = vshll.u32 920167782, %v3814
        %v3830 = vshrl.u32 1326507024, %v3815
        %v3831 = vor.u32 %v3829, %v3830
        %vm3832 = vcmp.lt.s32.totalorder %v3813, 1
        %vm3833 = vcmp.lt.s32.totalorder %v3813, 2
        %vm3834 = vcmp.lt.s32.totalorder %v3813, 3
        %vm3835 = vcmp.lt.s32.totalorder %v3813, 4
        %v3836 = vsel %vm3832, %v3816, %v3819
        %v3837 = vsel %vm3835, %v3825, 2102212464
        %v3838 = vsel %vm3834, %v3822, %v3837
        %v3839 = vsel %vm3833, %v3836, %v3838
        %v3840 = vsel %vm3832, %v3819, %v3822
        %v3841 = vsel %vm3835, %v3828, 920167782
        %v3842 = vsel %vm3834, %v3825, %v3841
        %v3843 = vsel %vm3833, %v3840, %v3842
        %v3844 = vsel %vm3832, %v3822, %v3825
        %v3845 = vsel %vm3835, %v3831, 1326507024
        %v3846 = vsel %vm3834, %v3828, %v3845
        %v3847 = vsel %vm3833, %v3844, %v3846
        %v3848 = vshll.u32 %v3808, 8
        %v3849 = vmul.u32.u64.compose %v3848, %v3847
        %v3850 = vextract.low.u32 %v3849
        %v3851 = vextract.high.u32 %v3849
        %v3852 = vmul.u32.u64.compose %v3848, %v3843
        %v3853 = vextract.low.u32 %v3852
        %v3854 = vextract.high.u32 %v3852
        %v3855 = vmul.u32 %v3848, %v3839
        %v3856 = vadd.s32 %v3851, %v3853
        %vm3857 = vc.u32 %v3851, %v3853
        %v3858 = vadd.s32 %v3854, 1
        %v3859 = vsel %vm3857, %v3858, %v3854
        %v3860 = vadd.s32 %v3855, %v3859
        %v3861 = vadd.s32 %v3860, 536870912
        %v3862 = vshrl.u32 %v3861, 30
        %v3863 = vshll.u32 %v3862, 30
        %v3864 = vsub.s32 %v3860, %v3863
        %vm3865 = vcmp.lt.s32.totalorder %v3864, 0
        %v3866 = vsub.s32 0, %v3864
        %v3867 = vsel %vm3865, %v3866, %v3864
        %v3868 = vclz %v3867
        %v3869 = vsub.s32 %v3868, 2
        %vm3870 = vcmp.gt.s32.totalorder 0, %v3869
        %v3871 = vsel %vm3870, 0, %v3869
        %v3872 = vsub.s32 32, %v3871
        %v3873 = vshll.u32 %v3864, %v3871
        %v3874 = vshrl.u32 %v3856, %v3872
        %v3875 = vor.u32 %v3873, %v3874
        %v3876 = vsub.s32 4294967266, %v3871
        %v3877 = vadd.s32 %v3876, 127
        %v3878 = vshll.u32 %v3877, 23
        %v3879 = vor.u32 4788187, %v3878
        %v3880 = vand.u32 2147483647, %v3879
        %v3882 = vcvt.s32.f32 %v3875
        %v3883 = vmul.f32 %v3882, %v3880
        %v3884 = vxor.u32 %v3883, 2147483648
        %v3885 = vsel %vm3802, %v3884, %v3883
        %v3886 = vsub.s32 4, %v3862
        %v3887 = vsel %vm3802, %v3886, %v3862
        %v3888 = vsel %vm3801, %v2440, %v3885
        %v3889 = vsel %vm3801, 0, %v3887
        %v3890 = vcosq.f32.pop %v3888
        %v3891 = vsinq.f32.pop %v3888
        %vm3892 = vweird.f32 %v2440
        %v3893 = vadd.s32 %v3889, 3
        %v3894 = vand.u32 %v3893, 3
        %vm3895 = vcmp.lt.s32.totalorder %v3894, 2
        %vm3896 = vcmp.eq.s32.totalorder %v3894, 0
        %v3897 = vxor.u32 %v3891, 2147483648
        %v3898 = vsel %vm3896, %v3890, %v3897
        %vm3899 = vcmp.eq.s32.totalorder %v3894, 2
        %v3900 = vxor.u32 %v3890, 2147483648
        %v3901 = vsel %vm3899, %v3900, %v3891
        %v3902 = vsel %vm3895, %v3898, %v3901
        %v3903 = vsel %vm3892, nan, %v3902
        %v3904 = vand.u32 2147483647, %v2444
        %vm3905 = vcmp.le.f32.partialorder %v3904, 0.7853982
        %vm3906 = vcmp.lt.s32.totalorder %v2444, 0
        %v3907 = vand.u32 %v2444, 2139095040
        %v3908 = vshrl.u32 %v3907, 23
        %v3909 = vsub.s32 %v3908, 127
        %v3910 = vand.u32 2147483647, %v2444
        %v3911 = vand.u32 %v3910, 8388607
        %v3912 = vor.u32 %v3911, 8388608
        %v3913 = vsub.s32 0, %v3912
        %v3914 = vadd.s32 %v3909, 1
        %vm3915 = vcmp.gt.s32.totalorder %v3914, 0
        %v3916 = vsel %vm3915, %v3914, 0
        %v3917 = vshrl.u32 %v3916, 5
        %v3918 = vand.u32 %v3916, 31
        %v3919 = vsub.s32 32, %v3918
        %v3920 = vshrl.u32 683565275, %v3919
        %v3921 = vshll.u32 683565275, %v3918
        %v3922 = vshrl.u32 2475754826, %v3919
        %v3923 = vor.u32 %v3921, %v3922
        %v3924 = vshll.u32 2475754826, %v3918
        %v3925 = vshrl.u32 2131351028, %v3919
        %v3926 = vor.u32 %v3924, %v3925
        %v3927 = vshll.u32 2131351028, %v3918
        %v3928 = vshrl.u32 2102212464, %v3919
        %v3929 = vor.u32 %v3927, %v3928
        %v3930 = vshll.u32 2102212464, %v3918
        %v3931 = vshrl.u32 920167782, %v3919
        %v3932 = vor.u32 %v3930, %v3931
        %v3933 = vshll.u32 920167782, %v3918
        %v3934 = vshrl.u32 1326507024, %v3919
        %v3935 = vor.u32 %v3933, %v3934
        %vm3936 = vcmp.lt.s32.totalorder %v3917, 1
        %vm3937 = vcmp.lt.s32.totalorder %v3917, 2
        %vm3938 = vcmp.lt.s32.totalorder %v3917, 3
        %vm3939 = vcmp.lt.s32.totalorder %v3917, 4
        %v3940 = vsel %vm3936, %v3920, %v3923
        %v3941 = vsel %vm3939, %v3929, 2102212464
        %v3942 = vsel %vm3938, %v3926, %v3941
        %v3943 = vsel %vm3937, %v3940, %v3942
        %v3944 = vsel %vm3936, %v3923, %v3926
        %v3945 = vsel %vm3939, %v3932, 920167782
        %v3946 = vsel %vm3938, %v3929, %v3945
        %v3947 = vsel %vm3937, %v3944, %v3946
        %v3948 = vsel %vm3936, %v3926, %v3929
        %v3949 = vsel %vm3939, %v3935, 1326507024
        %v3950 = vsel %vm3938, %v3932, %v3949
        %v3951 = vsel %vm3937, %v3948, %v3950
        %v3952 = vshll.u32 %v3912, 8
        %v3953 = vmul.u32.u64.compose %v3952, %v3951
        %v3954 = vextract.low.u32 %v3953
        %v3955 = vextract.high.u32 %v3953
        %v3956 = vmul.u32.u64.compose %v3952, %v3947
        %v3957 = vextract.low.u32 %v3956
        %v3958 = vextract.high.u32 %v3956
        %v3959 = vmul.u32 %v3952, %v3943
        %v3960 = vadd.s32 %v3955, %v3957
        %vm3961 = vc.u32 %v3955, %v3957
        %v3962 = vadd.s32 %v3958, 1
        %v3963 = vsel %vm3961, %v3962, %v3958
        %v3964 = vadd.s32 %v3959, %v3963
        %v3965 = vadd.s32 %v3964, 536870912
        %v3966 = vshrl.u32 %v3965, 30
        %v3967 = vshll.u32 %v3966, 30
        %v3968 = vsub.s32 %v3964, %v3967
        %vm3969 = vcmp.lt.s32.totalorder %v3968, 0
        %v3970 = vsub.s32 0, %v3968
        %v3971 = vsel %vm3969, %v3970, %v3968
        %v3972 = vclz %v3971
        %v3973 = vsub.s32 %v3972, 2
        %vm3974 = vcmp.gt.s32.totalorder 0, %v3973
        %v3975 = vsel %vm3974, 0, %v3973
        %v3976 = vsub.s32 32, %v3975
        %v3977 = vshll.u32 %v3968, %v3975
        %v3978 = vshrl.u32 %v3960, %v3976
        %v3979 = vor.u32 %v3977, %v3978
        %v3980 = vsub.s32 4294967266, %v3975
        %v3981 = vadd.s32 %v3980, 127
        %v3982 = vshll.u32 %v3981, 23
        %v3983 = vor.u32 4788187, %v3982
        %v3984 = vand.u32 2147483647, %v3983
        %v3986 = vcvt.s32.f32 %v3979
        %v3987 = vmul.f32 %v3986, %v3984
        %v3988 = vxor.u32 %v3987, 2147483648
        %v3989 = vsel %vm3906, %v3988, %v3987
        %v3990 = vsub.s32 4, %v3966
        %v3991 = vsel %vm3906, %v3990, %v3966
        %v3992 = vsel %vm3905, %v2444, %v3989
        %v3993 = vsel %vm3905, 0, %v3991
        %v3994 = vcosq.f32.pop %v3992
        %v3995 = vsinq.f32.pop %v3992
        %vm3996 = vweird.f32 %v2444
        %v3997 = vadd.s32 %v3993, 3
        %v3998 = vand.u32 %v3997, 3
        %vm3999 = vcmp.lt.s32.totalorder %v3998, 2
        %vm4000 = vcmp.eq.s32.totalorder %v3998, 0
        %v4001 = vxor.u32 %v3995, 2147483648
        %v4002 = vsel %vm4000, %v3994, %v4001
        %vm4003 = vcmp.eq.s32.totalorder %v3998, 2
        %v4004 = vxor.u32 %v3994, 2147483648
        %v4005 = vsel %vm4003, %v4004, %v3995
        %v4006 = vsel %vm3999, %v4002, %v4005
        %v4007 = vsel %vm3996, nan, %v4006
        %v4008 = vand.u32 2147483647, %v2446
        %vm4009 = vcmp.le.f32.partialorder %v4008, 0.7853982
        %vm4010 = vcmp.lt.s32.totalorder %v2446, 0
        %v4011 = vand.u32 %v2446, 2139095040
        %v4012 = vshrl.u32 %v4011, 23
        %v4013 = vsub.s32 %v4012, 127
        %v4014 = vand.u32 2147483647, %v2446
        %v4015 = vand.u32 %v4014, 8388607
        %v4016 = vor.u32 %v4015, 8388608
        %v4017 = vsub.s32 0, %v4016
        %v4018 = vadd.s32 %v4013, 1
        %vm4019 = vcmp.gt.s32.totalorder %v4018, 0
        %v4020 = vsel %vm4019, %v4018, 0
        %v4021 = vshrl.u32 %v4020, 5
        %v4022 = vand.u32 %v4020, 31
        %v4023 = vsub.s32 32, %v4022
        %v4024 = vshrl.u32 683565275, %v4023
        %v4025 = vshll.u32 683565275, %v4022
        %v4026 = vshrl.u32 2475754826, %v4023
        %v4027 = vor.u32 %v4025, %v4026
        %v4028 = vshll.u32 2475754826, %v4022
        %v4029 = vshrl.u32 2131351028, %v4023
        %v4030 = vor.u32 %v4028, %v4029
        %v4031 = vshll.u32 2131351028, %v4022
        %v4032 = vshrl.u32 2102212464, %v4023
        %v4033 = vor.u32 %v4031, %v4032
        %v4034 = vshll.u32 2102212464, %v4022
        %v4035 = vshrl.u32 920167782, %v4023
        %v4036 = vor.u32 %v4034, %v4035
        %v4037 = vshll.u32 920167782, %v4022
        %v4038 = vshrl.u32 1326507024, %v4023
        %v4039 = vor.u32 %v4037, %v4038
        %vm4040 = vcmp.lt.s32.totalorder %v4021, 1
        %vm4041 = vcmp.lt.s32.totalorder %v4021, 2
        %vm4042 = vcmp.lt.s32.totalorder %v4021, 3
        %vm4043 = vcmp.lt.s32.totalorder %v4021, 4
        %v4044 = vsel %vm4040, %v4024, %v4027
        %v4045 = vsel %vm4043, %v4033, 2102212464
        %v4046 = vsel %vm4042, %v4030, %v4045
        %v4047 = vsel %vm4041, %v4044, %v4046
        %v4048 = vsel %vm4040, %v4027, %v4030
        %v4049 = vsel %vm4043, %v4036, 920167782
        %v4050 = vsel %vm4042, %v4033, %v4049
        %v4051 = vsel %vm4041, %v4048, %v4050
        %v4052 = vsel %vm4040, %v4030, %v4033
        %v4053 = vsel %vm4043, %v4039, 1326507024
        %v4054 = vsel %vm4042, %v4036, %v4053
        %v4055 = vsel %vm4041, %v4052, %v4054
        %v4056 = vshll.u32 %v4016, 8
        %v4057 = vmul.u32.u64.compose %v4056, %v4055
        %v4058 = vextract.low.u32 %v4057
        %v4059 = vextract.high.u32 %v4057
        %v4060 = vmul.u32.u64.compose %v4056, %v4051
        %v4061 = vextract.low.u32 %v4060
        %v4062 = vextract.high.u32 %v4060
        %v4063 = vmul.u32 %v4056, %v4047
        %v4064 = vadd.s32 %v4059, %v4061
        %vm4065 = vc.u32 %v4059, %v4061
        %v4066 = vadd.s32 %v4062, 1
        %v4067 = vsel %vm4065, %v4066, %v4062
        %v4068 = vadd.s32 %v4063, %v4067
        %v4069 = vadd.s32 %v4068, 536870912
        %v4070 = vshrl.u32 %v4069, 30
        %v4071 = vshll.u32 %v4070, 30
        %v4072 = vsub.s32 %v4068, %v4071
        %vm4073 = vcmp.lt.s32.totalorder %v4072, 0
        %v4074 = vsub.s32 0, %v4072
        %v4075 = vsel %vm4073, %v4074, %v4072
        %v4076 = vclz %v4075
        %v4077 = vsub.s32 %v4076, 2
        %vm4078 = vcmp.gt.s32.totalorder 0, %v4077
        %v4079 = vsel %vm4078, 0, %v4077
        %v4080 = vsub.s32 32, %v4079
        %v4081 = vshll.u32 %v4072, %v4079
        %v4082 = vshrl.u32 %v4064, %v4080
        %v4083 = vor.u32 %v4081, %v4082
        %v4084 = vsub.s32 4294967266, %v4079
        %v4085 = vadd.s32 %v4084, 127
        %v4086 = vshll.u32 %v4085, 23
        %v4087 = vor.u32 4788187, %v4086
        %v4088 = vand.u32 2147483647, %v4087
        %v4090 = vcvt.s32.f32 %v4083
        %v4091 = vmul.f32 %v4090, %v4088
        %v4092 = vxor.u32 %v4091, 2147483648
        %v4093 = vsel %vm4010, %v4092, %v4091
        %v4094 = vsub.s32 4, %v4070
        %v4095 = vsel %vm4010, %v4094, %v4070
        %v4096 = vsel %vm4009, %v2446, %v4093
        %v4097 = vsel %vm4009, 0, %v4095
        %v4098 = vcosq.f32.pop %v4096
        %v4099 = vsinq.f32.pop %v4096
        %vm4100 = vweird.f32 %v2446
        %v4101 = vadd.s32 %v4097, 3
        %v4102 = vand.u32 %v4101, 3
        %vm4103 = vcmp.lt.s32.totalorder %v4102, 2
        %vm4104 = vcmp.eq.s32.totalorder %v4102, 0
        %v4105 = vxor.u32 %v4099, 2147483648
        %v4106 = vsel %vm4104, %v4098, %v4105
        %vm4107 = vcmp.eq.s32.totalorder %v4102, 2
        %v4108 = vxor.u32 %v4098, 2147483648
        %v4109 = vsel %vm4107, %v4108, %v4099
        %v4110 = vsel %vm4103, %v4106, %v4109
        %v4111 = vsel %vm4100, nan, %v4110
        %v4112 = vld [vmem:[%s6] sm:$0xff]
        %v4113 = vld [vmem:[%s6 + $0x8] sm:$0xff]
        %v4114 = vld [vmem:[%s7] sm:$0xff]
        %v4115 = vld [vmem:[%s7 + $0x8] sm:$0xff]
        %4117 = vset.pattern.permute.xlu0 0
        %4118 = vperm.xlu0 %4117, %v4114
        %v4119 = vpop.permute.xlu0 %4118
        %4122 = vset.pattern.permute.xlu0 0
        %4123 = vperm.xlu0 %4122, %v4115
        %v4124 = vpop.permute.xlu0 %4123
        %v4127 = vsel %vm2310, %v4112, 0
        %v4130 = vsel %vm2310, %v4113, 0
        %4132 = vmatprep.subr.mxu0 %v2655
        %4133 = vmatpush1.msra.mxu0 %v2551
        %4134 = vmatprep.subr.mxu0 %v2863
        %4135 = vmatpush1.msra.mxu0 %v2759
        %4136 = vmatprep.subr.mxu0 %v3071
        %4137 = vmatpush1.msra.mxu0 %v2967
        %4138 = vmatprep.subr.mxu0 %v3279
        %4139 = vmatpush1.msra.mxu0 %v3175
        %4140 = vmatprep.subr.mxu0 %v3487
        %4141 = vmatpush1.msra.mxu0 %v3383
        %4142 = vmatprep.subr.mxu0 %v3695
        %4143 = vmatpush1.msra.mxu0 %v3591
        %4144 = vmatprep.subr.mxu0 %v3903
        %4145 = vmatpush1.msra.mxu0 %v3799
        %4146 = vmatprep.subr.mxu0 %v4111
        %4147 = vmatpush1.msra.mxu0 %v4007
        %4148 = vmatprep.subr.mxu0 0.0
        %4149 = vmatpush1.msra.mxu0 0.0
        %4150 = vmatprep.subr.mxu0 0.0
        %4151 = vmatpush1.msra.mxu0 0.0
        %4152 = vmatprep.subr.mxu0 0.0
        %4153 = vmatpush1.msra.mxu0 0.0
        %4154 = vmatprep.subr.mxu0 0.0
        %4155 = vmatpush1.msra.mxu0 0.0
        %4156 = vmatprep.subr.mxu0 0.0
        %4157 = vmatpush1.msra.mxu0 0.0
        %4158 = vmatprep.subr.mxu0 0.0
        %4159 = vmatpush1.msra.mxu0 0.0
        %4160 = vmatprep.subr.mxu0 0.0
        %4161 = vmatpush1.msra.mxu0 0.0
        %4162 = vmatprep.subr.mxu0 0.0
        %4163 = vmatpush1.msra.mxu0 0.0
        %4164 = vmatprep.subr.mxu0 0.0
        %4165 = vmatpush1.msra.mxu0 0.0
        %4166 = vmatprep.subr.mxu0 0.0
        %4167 = vmatpush1.msra.mxu0 0.0
        %4168 = vmatprep.subr.mxu0 0.0
        %4169 = vmatpush1.msra.mxu0 0.0
        %4170 = vmatprep.subr.mxu0 0.0
        %4171 = vmatpush1.msra.mxu0 0.0
        %4172 = vmatprep.subr.mxu0 0.0
        %4173 = vmatpush1.msra.mxu0 0.0
        %4174 = vmatprep.subr.mxu0 0.0
        %4175 = vmatpush1.msra.mxu0 0.0
        %4176 = vmatprep.subr.mxu0 0.0
        %4177 = vmatpush1.msra.mxu0 0.0
        %4178 = vmatprep.subr.mxu0 0.0
        %4179 = vmatpush1.msra.mxu0 0.0
        %4180 = vmatprep.subr.mxu0 0.0
        %4181 = vmatpush1.msra.mxu0 0.0
        %4182 = vmatprep.subr.mxu0 0.0
        %4183 = vmatpush1.msra.mxu0 0.0
        %4184 = vmatprep.subr.mxu0 0.0
        %4185 = vmatpush1.msra.mxu0 0.0
        %4186 = vmatprep.subr.mxu0 0.0
        %4187 = vmatpush1.msra.mxu0 0.0
        %4188 = vmatprep.subr.mxu0 0.0
        %4189 = vmatpush1.msra.mxu0 0.0
        %4190 = vmatprep.subr.mxu0 0.0
        %4191 = vmatpush1.msra.mxu0 0.0
        %4192 = vmatprep.subr.mxu0 0.0
        %4193 = vmatpush1.msra.mxu0 0.0
        %4194 = vmatprep.subr.mxu0 0.0
        %4195 = vmatpush1.msra.mxu0 0.0
        %4196 = vmatprep.mubr.f32.mxu0 0.0
        %4197 = vmatmul.mubr.f32.gmra.mrb[0].mxu0 %v4127
        %v4198 = vpop.f32.mrb[0].mxu0
        %v4199 = vadd.f32 %v4119, %v4198
        %v4200 = vpop.f32.mrb[0].mxu0
        %v4201 = vadd.f32 %v4119, %v4200
        %4202 = vmatprep.mubr.f32.mxu0 0.0
        %4203 = vmatmul.mubr.f32.gmra.mrb[0].mxu0 %v4130
        %v4204 = vpop.f32.mrb[0].mxu0
        %v4205 = vadd.f32 %v4124, %v4204
        %v4206 = vpop.f32.mrb[0].mxu0
        %v4207 = vadd.f32 %v4124, %v4206
        %4208 = vdwg.mxu0
        %v4209 = vmul.f32 %v4199, %v357
        %v4210 = vmul.f32 %v4201, %v358
        %v4211 = vmul.f32 %v4205, %v359
        %v4212 = vmul.f32 %v4207, %v360
        %vm4213 = vcmask 1046528
        %v4214 = vsel %vm4213, %v4209, 0.0
        %v4215 = vrot.slane %v4214, 4
        %v4216 = vadd.f32 %v4214, %v4215
        %v4217 = vrot.slane %v4216, 2
        %v4218 = vadd.f32 %v4216, %v4217
        %v4219 = vrot.slane %v4218, 1
        %v4220 = vadd.f32 %v4218, %v4219
        %v4221 = vsel %vm4213, %v4210, 0.0
        %v4222 = vrot.slane %v4221, 4
        %v4223 = vadd.f32 %v4221, %v4222
        %v4224 = vrot.slane %v4223, 2
        %v4225 = vadd.f32 %v4223, %v4224
        %v4226 = vrot.slane %v4225, 1
        %v4227 = vadd.f32 %v4225, %v4226
        %v4228 = vsel %vm4213, %v4211, 0.0
        %v4229 = vrot.slane %v4228, 4
        %v4230 = vadd.f32 %v4228, %v4229
        %v4231 = vrot.slane %v4230, 2
        %v4232 = vadd.f32 %v4230, %v4231
        %v4233 = vrot.slane %v4232, 1
        %v4234 = vadd.f32 %v4232, %v4233
        %v4235 = vsel %vm4213, %v4212, 0.0
        %v4236 = vrot.slane %v4235, 4
        %v4237 = vadd.f32 %v4235, %v4236
        %v4238 = vrot.slane %v4237, 2
        %v4239 = vadd.f32 %v4237, %v4238
        %v4240 = vrot.slane %v4239, 1
        %v4241 = vadd.f32 %v4239, %v4240
        %v4242 = vmul.f32 %v4220, %v4199
        %v4243 = vmul.f32 %v4227, %v4201
        %v4244 = vmul.f32 %v4234, %v4205
        %v4245 = vmul.f32 %v4241, %v4207
        %v4250 = vrot.slane %v4242, 7
        %v4251 = vrot.slane %v4244, 6
        %vm4252 = vcmask 1041409
        %v4253 = vsel %vm4252, %v4251, %v4250
        %v4254 = vrot.slane %v4243, 7
        %v4255 = vrot.slane %v4245, 6
        %v4256 = vsel %vm4252, %v4255, %v4254
        %vm4263 = vcmask 1043459
        %v4264 = vsel %vm4263, %v4234, %v4220
        %v4265 = vsel %vm4263, %v4241, %v4227
        %v4272 = vrot.slane %v4199, 3
        %v4273 = vrot.slane %v4205, 2
        %vm4274 = vcmask 1045509
        %v4275 = vsel %vm4274, %v4273, %v4272
        %v4276 = vrot.slane %v4201, 3
        %v4277 = vrot.slane %v4207, 2
        %v4278 = vsel %vm4274, %v4277, %v4276
        %vm4281 = vcmask 1041408
        %v4282 = vsel %vm4281, %v4253, %v4264
        %v4283 = vsel %vm4281, %v4256, %v4265
        %vm4284 = vcmask 1043456
        %v4285 = vsel %vm4284, %v4282, %v4275
        %v4286 = vsel %vm4284, %v4283, %v4278
        %4287 = vst [vmem:[%s354] sm:$0x3f] %v4285
        %4288 = vst [vmem:[%s354 + $0x8] sm:$0x3f] %v4286
        %s4289 = smul.u32 2, %s19
        %p4290 = scmp.lt.s32.totalorder %s4289, 7
        %s4291 = scalar_select %p4290, %s4289, 7
        %s4292 = smul.addr %s4291, 8
        %s4293 = scalar_lea.vmem %s8, %s4292
        // Predicated region
        $region76: #{local_parameter_network_forward.1} parent=70 // pred_check
          %p4294 = pneg %p215
        $region77: #{local_parameter_network_forward.1} parent=70 // pred_check_branch
          %4296 = sbr.rel (%p4294) target = $region79
        $region78: #{local_parameter_network_forward.1} parent=70 // pred_region
          %s4297 = smul.u32 2, %s19
        $region79: #{local_parameter_network_forward.1} parent=70 // pred_fallthru
          _
      $region71: #{local_parameter_network_forward.1} parent=5 // pred_fallthru
        _
      %p4298 = scmp.le.s32.totalorder 2, %s14
      // Predicated region
      $region80: #{local_parameter_network_forward.1} parent=5 // pred_check
        %p4299 = pneg %p4298
      $region81: #{local_parameter_network_forward.1} parent=5 // pred_check_branch
        %4301 = sbr.rel (%p4299) target = $region83
      $region82: #{local_parameter_network_forward.1} parent=5 // pred_region
        %s4302 = ssub.s32 %s14, 2
        // Predicated region
        $region84: #{local_parameter_network_forward.1} parent=82 // pred_check
          %p4303 = pneg %p221
        $region85: #{local_parameter_network_forward.1} parent=82 // pred_check_branch
          %4305 = sbr.rel (%p4303) target = $region87
        $region86: #{local_parameter_network_forward.1} parent=82 // pred_region
          %s4306 = smul.u32 2, %s20
          %p4307 = scmp.lt.s32.totalorder %s4306, 7
          %s4308 = scalar_select %p4307, %s4306, 7
          %s4309 = smul.addr %s4308, 8
          %s4310 = scalar_lea.vmem %s8, %s4309
        $region87: #{local_parameter_network_forward.1} parent=82 // pred_fallthru
          _
      $region83: #{local_parameter_network_forward.1} parent=5 // pred_fallthru
        _
    $region6: #{local_parameter_network_forward.1} parent=1 // loop_footer
      %s18 = sadd.s32 1, %s14
    $region7: #{local_parameter_network_forward.1} parent=1 // loop_footer_branch
      %13 = sbr.rel target = $region3
    $region8: #{local_parameter_network_forward.1} parent=1 // loop_exit
      _

</llo_original>
